<compile_context>
chip_gen: v7x
topology: tpu7x:2x2x1
jax: 0.10.0
libtpu: 0.0.40
codegen_flags: <defaults>
</compile_context>

<pallas_src>
import functools

import jax
import jax.numpy as jnp
from jax.experimental import pallas as pl
from jax.experimental.pallas import tpu as pltpu


# Activation after each of the 12 linear layers (encoder then decoder).
_ACTS = ("relu",) * 5 + ("none",) + ("relu",) * 5 + ("sigmoid",)


def _round_up(x, m):
    return ((x + m - 1) // m) * m


# ----------------------------- Pallas kernel ---------------------------------
def _fused_mlp_kernel(*refs, layer_shapes, activations):
    """Entire autoencoder forward in a single kernel invocation.

    Ref layout:
      inputs : x_ref, bias_ref (packed (L, max_N) f32), w_hbm[0..L-1] (pl.ANY)
      outputs: o_ref
      scratch: w_vmem[0..L-1] (per-layer padded bf16 slabs), sem (DMA, (L,))

    All 12 weight copies are started immediately; compute waits per layer, so
    HBM->VMEM weight streaming overlaps the MXU work of earlier layers.
    """
    n = len(layer_shapes)
    x_ref = refs[0]
    b_ref = refs[1]
    w_hbm = refs[2:2 + n]
    o_ref = refs[2 + n]
    w_vmem = refs[3 + n:3 + 2 * n]
    sem = refs[3 + 2 * n]

    # Kick off every weight DMA now (in layer order); they stream while the
    # MXU is busy with earlier layers.
    copies = []
    for l in range(n):
        cp = pltpu.make_async_copy(w_hbm[l], w_vmem[l], sem.at[l])
        cp.start()
        copies.append(cp)

    x = x_ref[...]                                   # (M_pad, D0_pad) f32
    for l, act in enumerate(activations):
        copies[l].wait()                             # block only if DMA lags
        n_pad = layer_shapes[l][1]
        w = w_vmem[l][...]                           # (K_pad, N_pad) bf16
        y = jnp.dot(x.astype(w.dtype), w, preferred_element_type=jnp.float32)
        y = y + b_ref[l:l + 1, :n_pad]               # bias/activation in f32
        if act == "relu":
            y = jnp.maximum(y, 0.0)
        elif act == "sigmoid":
            y = jax.nn.sigmoid(y)
        # act == "none": identity
        x = y
    o_ref[...] = x.astype(o_ref.dtype)


# ------------------------------ Host wrappers ---------------------------------
def pack_params(params):
    """Zero-pad feature dims to multiples of 128, cast weights to bf16, and
    pack all biases into one (L, max_N_pad) f32 buffer.  Done once.

    Returns (w_padded_list, bias_packed, layer_shapes, out_dim).
    """
    w_padded, shapes = [], []
    for (w, _b) in params:
        K, N = w.shape
        K_pad, N_pad = _round_up(K, 128), _round_up(N, 128)
        w_p = jnp.zeros((K_pad, N_pad), jnp.bfloat16)
        w_p = w_p.at[:K, :N].set(w.astype(jnp.bfloat16))
        w_padded.append(w_p)
        shapes.append((K_pad, N_pad))

    max_n = max(n for (_k, n) in shapes)
    b_packed = jnp.zeros((len(params), max_n), jnp.float32)
    for l, (_w, b) in enumerate(params):
        b_packed = b_packed.at[l, :b.shape[0]].set(b)

    out_dim = params[-1][0].shape[1]
    return w_padded, b_packed, tuple(shapes), out_dim


def autoencoder_forward(packed, x):
    """x: (M, input_dim) f32 -> (M, input_dim) f32."""
    w_padded, b_packed, shapes, out_dim = packed
    n = len(shapes)

    M, D_in = x.shape
    M_pad = _round_up(M, 8)
    D_in_pad = shapes[0][0]
    out_dim_pad = shapes[-1][1]

    x_p = jnp.zeros((M_pad, D_in_pad), jnp.float32)
    x_p = x_p.at[:M, :D_in].set(x)

    vmem_spec = pl.BlockSpec(memory_space=pltpu.MemorySpace.VMEM)
    hbm_spec = pl.BlockSpec(memory_space=pl.ANY)

    out = pl.pallas_call(
        functools.partial(
            _fused_mlp_kernel, layer_shapes=shapes, activations=_ACTS
        ),
        out_shape=jax.ShapeDtypeStruct((M_pad, out_dim_pad), jnp.float32),
        in_specs=[vmem_spec, vmem_spec] + [hbm_spec] * n,
        out_specs=vmem_spec,
        scratch_shapes=(
            [pltpu.VMEM(s, jnp.bfloat16) for s in shapes]
            + [pltpu.SemaphoreType.DMA((n,))]
        ),
        compiler_params=pltpu.CompilerParams(
            vmem_limit_bytes=32 * 1024 * 1024,
        ),
    )(x_p, b_packed, *w_padded)

    return out[:M, :out_dim]


# --------------------------- Parameter creation -------------------------------
def _init_linear(key, fan_in, fan_out):
    """Deterministic init mimicking PyTorch's U(-1/sqrt(fan_in), 1/sqrt(fan_in)).

    Weights stored as (in_features, out_features), i.e. transpose of the
    PyTorch nn.Linear weight, so each layer is `x @ W + b`.
    """
    kw, kb = jax.random.split(key)
    bound = 1.0 / jnp.sqrt(jnp.float32(fan_in))
    w = jax.random.uniform(kw, (fan_in, fan_out), jnp.float32, -bound, bound)
    b = jax.random.uniform(kb, (fan_out,), jnp.float32, -bound, bound)
    return w, b


def make_autoencoder_params(key, input_dim, encoding_dim):
    enc_dims = [input_dim, 1024, 512, 256, 128, 64, encoding_dim]
    dec_dims = [encoding_dim, 64, 128, 256, 512, 1024, input_dim]
    dims = list(zip(enc_dims[:-1], enc_dims[1:])) + list(
        zip(dec_dims[:-1], dec_dims[1:])
    )
    keys = jax.random.split(key, len(dims))
    return [_init_linear(k, fi, fo) for k, (fi, fo) in zip(keys, dims)]


# Pure-JAX f32 reference for verification.
def autoencoder_reference(params, x):
    for (w, b), act in zip(params, _ACTS):
        x = x @ w + b
        if act == "relu":
            x = jnp.maximum(x, 0.0)
        elif act == "sigmoid":
            x = jax.nn.sigmoid(x)
    return x


if __name__ == "__main__":
    input_dim = 256
    encoding_dim = 32
    batch = 8

    root = jax.random.PRNGKey(0)
    k_params, k_x = jax.random.split(root)

    params = make_autoencoder_params(k_params, input_dim, encoding_dim)
    x = jax.random.uniform(k_x, (batch, input_dim), jnp.float32)

    packed = pack_params(params)

    out = autoencoder_forward(packed, x)
    out = jax.block_until_ready(out)

    ref = autoencoder_reference(params, x)
    assert out.shape == (batch, input_dim)
    # Kernel uses bf16 weights/activation-LHS (f32 accumulation); allow
    # bf16-level tolerance vs the f32 reference. Post-sigmoid values are
    # O(0.5); observed error is ~1e-3, so this still catches real bugs.
    assert jnp.allclose(out, ref, rtol=2e-2, atol=2e-2), "mismatch vs reference"

    print("KERNEL_OK")
</pallas_src>

<mosaic_0001>
module attributes {stable_mosaic.version = 11 : i64} {
  func.func @_fused_mlp_kernel(%arg0: memref<8x256xf32, #tpu.memory_space<vmem>>, %arg1: memref<12x1024xf32, #tpu.memory_space<vmem>>, %arg2: memref<256x1024xbf16, #tpu.memory_space<any>>, %arg3: memref<1024x512xbf16, #tpu.memory_space<any>>, %arg4: memref<512x256xbf16, #tpu.memory_space<any>>, %arg5: memref<256x128xbf16, #tpu.memory_space<any>>, %arg6: memref<128x128xbf16, #tpu.memory_space<any>>, %arg7: memref<128x128xbf16, #tpu.memory_space<any>>, %arg8: memref<128x128xbf16, #tpu.memory_space<any>>, %arg9: memref<128x128xbf16, #tpu.memory_space<any>>, %arg10: memref<128x256xbf16, #tpu.memory_space<any>>, %arg11: memref<256x512xbf16, #tpu.memory_space<any>>, %arg12: memref<512x1024xbf16, #tpu.memory_space<any>>, %arg13: memref<1024x256xbf16, #tpu.memory_space<any>>, %arg14: memref<8x256xf32, #tpu.memory_space<vmem>>, %arg15: memref<256x1024xbf16, #tpu.memory_space<vmem>>, %arg16: memref<1024x512xbf16, #tpu.memory_space<vmem>>, %arg17: memref<512x256xbf16, #tpu.memory_space<vmem>>, %arg18: memref<256x128xbf16, #tpu.memory_space<vmem>>, %arg19: memref<128x128xbf16, #tpu.memory_space<vmem>>, %arg20: memref<128x128xbf16, #tpu.memory_space<vmem>>, %arg21: memref<128x128xbf16, #tpu.memory_space<vmem>>, %arg22: memref<128x128xbf16, #tpu.memory_space<vmem>>, %arg23: memref<128x256xbf16, #tpu.memory_space<vmem>>, %arg24: memref<256x512xbf16, #tpu.memory_space<vmem>>, %arg25: memref<512x1024xbf16, #tpu.memory_space<vmem>>, %arg26: memref<1024x256xbf16, #tpu.memory_space<vmem>>, %arg27: memref<12x!tpu.dma_semaphore, #tpu.memory_space<semaphore_mem>>) attributes {dimension_semantics = [], scalar_prefetch = 0 : i64, scratch_operands = 13 : i64, tpu.core_type = #tpu.core_type<tc>} {
    %c0_i32 = arith.constant 0 : i32
    %0 = tpu.memref_slice %arg27[%c0_i32] : memref<12x!tpu.dma_semaphore, #tpu.memory_space<semaphore_mem>> -> memref<1x!tpu.dma_semaphore, #tpu.memory_space<semaphore_mem>>
    %1 = tpu.memref_squeeze %0 : memref<1x!tpu.dma_semaphore, #tpu.memory_space<semaphore_mem>> -> memref<!tpu.dma_semaphore, #tpu.memory_space<semaphore_mem>>
    tpu.enqueue_dma source(%arg2 : memref<256x1024xbf16, #tpu.memory_space<any>>) target(%arg15 : memref<256x1024xbf16, #tpu.memory_space<vmem>>) target_semaphore(%1 : memref<!tpu.dma_semaphore, #tpu.memory_space<semaphore_mem>>)
    %c1_i32 = arith.constant 1 : i32
    %2 = tpu.memref_slice %arg27[%c1_i32] : memref<12x!tpu.dma_semaphore, #tpu.memory_space<semaphore_mem>> -> memref<1x!tpu.dma_semaphore, #tpu.memory_space<semaphore_mem>>
    %3 = tpu.memref_squeeze %2 : memref<1x!tpu.dma_semaphore, #tpu.memory_space<semaphore_mem>> -> memref<!tpu.dma_semaphore, #tpu.memory_space<semaphore_mem>>
    tpu.enqueue_dma source(%arg3 : memref<1024x512xbf16, #tpu.memory_space<any>>) target(%arg16 : memref<1024x512xbf16, #tpu.memory_space<vmem>>) target_semaphore(%3 : memref<!tpu.dma_semaphore, #tpu.memory_space<semaphore_mem>>)
    %c2_i32 = arith.constant 2 : i32
    %4 = tpu.memref_slice %arg27[%c2_i32] : memref<12x!tpu.dma_semaphore, #tpu.memory_space<semaphore_mem>> -> memref<1x!tpu.dma_semaphore, #tpu.memory_space<semaphore_mem>>
    %5 = tpu.memref_squeeze %4 : memref<1x!tpu.dma_semaphore, #tpu.memory_space<semaphore_mem>> -> memref<!tpu.dma_semaphore, #tpu.memory_space<semaphore_mem>>
    tpu.enqueue_dma source(%arg4 : memref<512x256xbf16, #tpu.memory_space<any>>) target(%arg17 : memref<512x256xbf16, #tpu.memory_space<vmem>>) target_semaphore(%5 : memref<!tpu.dma_semaphore, #tpu.memory_space<semaphore_mem>>)
    %c3_i32 = arith.constant 3 : i32
    %6 = tpu.memref_slice %arg27[%c3_i32] : memref<12x!tpu.dma_semaphore, #tpu.memory_space<semaphore_mem>> -> memref<1x!tpu.dma_semaphore, #tpu.memory_space<semaphore_mem>>
    %7 = tpu.memref_squeeze %6 : memref<1x!tpu.dma_semaphore, #tpu.memory_space<semaphore_mem>> -> memref<!tpu.dma_semaphore, #tpu.memory_space<semaphore_mem>>
    tpu.enqueue_dma source(%arg5 : memref<256x128xbf16, #tpu.memory_space<any>>) target(%arg18 : memref<256x128xbf16, #tpu.memory_space<vmem>>) target_semaphore(%7 : memref<!tpu.dma_semaphore, #tpu.memory_space<semaphore_mem>>)
    %c4_i32 = arith.constant 4 : i32
    %8 = tpu.memref_slice %arg27[%c4_i32] : memref<12x!tpu.dma_semaphore, #tpu.memory_space<semaphore_mem>> -> memref<1x!tpu.dma_semaphore, #tpu.memory_space<semaphore_mem>>
    %9 = tpu.memref_squeeze %8 : memref<1x!tpu.dma_semaphore, #tpu.memory_space<semaphore_mem>> -> memref<!tpu.dma_semaphore, #tpu.memory_space<semaphore_mem>>
    tpu.enqueue_dma source(%arg6 : memref<128x128xbf16, #tpu.memory_space<any>>) target(%arg19 : memref<128x128xbf16, #tpu.memory_space<vmem>>) target_semaphore(%9 : memref<!tpu.dma_semaphore, #tpu.memory_space<semaphore_mem>>)
    %c5_i32 = arith.constant 5 : i32
    %10 = tpu.memref_slice %arg27[%c5_i32] : memref<12x!tpu.dma_semaphore, #tpu.memory_space<semaphore_mem>> -> memref<1x!tpu.dma_semaphore, #tpu.memory_space<semaphore_mem>>
    %11 = tpu.memref_squeeze %10 : memref<1x!tpu.dma_semaphore, #tpu.memory_space<semaphore_mem>> -> memref<!tpu.dma_semaphore, #tpu.memory_space<semaphore_mem>>
    tpu.enqueue_dma source(%arg7 : memref<128x128xbf16, #tpu.memory_space<any>>) target(%arg20 : memref<128x128xbf16, #tpu.memory_space<vmem>>) target_semaphore(%11 : memref<!tpu.dma_semaphore, #tpu.memory_space<semaphore_mem>>)
    %c6_i32 = arith.constant 6 : i32
    %12 = tpu.memref_slice %arg27[%c6_i32] : memref<12x!tpu.dma_semaphore, #tpu.memory_space<semaphore_mem>> -> memref<1x!tpu.dma_semaphore, #tpu.memory_space<semaphore_mem>>
    %13 = tpu.memref_squeeze %12 : memref<1x!tpu.dma_semaphore, #tpu.memory_space<semaphore_mem>> -> memref<!tpu.dma_semaphore, #tpu.memory_space<semaphore_mem>>
    tpu.enqueue_dma source(%arg8 : memref<128x128xbf16, #tpu.memory_space<any>>) target(%arg21 : memref<128x128xbf16, #tpu.memory_space<vmem>>) target_semaphore(%13 : memref<!tpu.dma_semaphore, #tpu.memory_space<semaphore_mem>>)
    %c7_i32 = arith.constant 7 : i32
    %14 = tpu.memref_slice %arg27[%c7_i32] : memref<12x!tpu.dma_semaphore, #tpu.memory_space<semaphore_mem>> -> memref<1x!tpu.dma_semaphore, #tpu.memory_space<semaphore_mem>>
    %15 = tpu.memref_squeeze %14 : memref<1x!tpu.dma_semaphore, #tpu.memory_space<semaphore_mem>> -> memref<!tpu.dma_semaphore, #tpu.memory_space<semaphore_mem>>
    tpu.enqueue_dma source(%arg9 : memref<128x128xbf16, #tpu.memory_space<any>>) target(%arg22 : memref<128x128xbf16, #tpu.memory_space<vmem>>) target_semaphore(%15 : memref<!tpu.dma_semaphore, #tpu.memory_space<semaphore_mem>>)
    %c8_i32 = arith.constant 8 : i32
    %16 = tpu.memref_slice %arg27[%c8_i32] : memref<12x!tpu.dma_semaphore, #tpu.memory_space<semaphore_mem>> -> memref<1x!tpu.dma_semaphore, #tpu.memory_space<semaphore_mem>>
    %17 = tpu.memref_squeeze %16 : memref<1x!tpu.dma_semaphore, #tpu.memory_space<semaphore_mem>> -> memref<!tpu.dma_semaphore, #tpu.memory_space<semaphore_mem>>
    tpu.enqueue_dma source(%arg10 : memref<128x256xbf16, #tpu.memory_space<any>>) target(%arg23 : memref<128x256xbf16, #tpu.memory_space<vmem>>) target_semaphore(%17 : memref<!tpu.dma_semaphore, #tpu.memory_space<semaphore_mem>>)
    %c9_i32 = arith.constant 9 : i32
    %18 = tpu.memref_slice %arg27[%c9_i32] : memref<12x!tpu.dma_semaphore, #tpu.memory_space<semaphore_mem>> -> memref<1x!tpu.dma_semaphore, #tpu.memory_space<semaphore_mem>>
    %19 = tpu.memref_squeeze %18 : memref<1x!tpu.dma_semaphore, #tpu.memory_space<semaphore_mem>> -> memref<!tpu.dma_semaphore, #tpu.memory_space<semaphore_mem>>
    tpu.enqueue_dma source(%arg11 : memref<256x512xbf16, #tpu.memory_space<any>>) target(%arg24 : memref<256x512xbf16, #tpu.memory_space<vmem>>) target_semaphore(%19 : memref<!tpu.dma_semaphore, #tpu.memory_space<semaphore_mem>>)
    %c10_i32 = arith.constant 10 : i32
    %20 = tpu.memref_slice %arg27[%c10_i32] : memref<12x!tpu.dma_semaphore, #tpu.memory_space<semaphore_mem>> -> memref<1x!tpu.dma_semaphore, #tpu.memory_space<semaphore_mem>>
    %21 = tpu.memref_squeeze %20 : memref<1x!tpu.dma_semaphore, #tpu.memory_space<semaphore_mem>> -> memref<!tpu.dma_semaphore, #tpu.memory_space<semaphore_mem>>
    tpu.enqueue_dma source(%arg12 : memref<512x1024xbf16, #tpu.memory_space<any>>) target(%arg25 : memref<512x1024xbf16, #tpu.memory_space<vmem>>) target_semaphore(%21 : memref<!tpu.dma_semaphore, #tpu.memory_space<semaphore_mem>>)
    %c11_i32 = arith.constant 11 : i32
    %22 = tpu.memref_slice %arg27[%c11_i32] : memref<12x!tpu.dma_semaphore, #tpu.memory_space<semaphore_mem>> -> memref<1x!tpu.dma_semaphore, #tpu.memory_space<semaphore_mem>>
    %23 = tpu.memref_squeeze %22 : memref<1x!tpu.dma_semaphore, #tpu.memory_space<semaphore_mem>> -> memref<!tpu.dma_semaphore, #tpu.memory_space<semaphore_mem>>
    tpu.enqueue_dma source(%arg13 : memref<1024x256xbf16, #tpu.memory_space<any>>) target(%arg26 : memref<1024x256xbf16, #tpu.memory_space<vmem>>) target_semaphore(%23 : memref<!tpu.dma_semaphore, #tpu.memory_space<semaphore_mem>>)
    %c0 = arith.constant 0 : index
    %c0_0 = arith.constant 0 : index
    %24 = vector.load %arg0[%c0, %c0_0] : memref<8x256xf32, #tpu.memory_space<vmem>>, vector<8x256xf32>
    %c0_i32_1 = arith.constant 0 : i32
    %25 = tpu.memref_slice %arg27[%c0_i32_1] : memref<12x!tpu.dma_semaphore, #tpu.memory_space<semaphore_mem>> -> memref<1x!tpu.dma_semaphore, #tpu.memory_space<semaphore_mem>>
    %26 = tpu.memref_squeeze %25 : memref<1x!tpu.dma_semaphore, #tpu.memory_space<semaphore_mem>> -> memref<!tpu.dma_semaphore, #tpu.memory_space<semaphore_mem>>
    tpu.wait_dma2 semaphore(%26 : memref<!tpu.dma_semaphore, #tpu.memory_space<semaphore_mem>>) src(%arg2 : memref<256x1024xbf16, #tpu.memory_space<any>>) dst(%arg15 : memref<256x1024xbf16, #tpu.memory_space<vmem>>)
    %c0_2 = arith.constant 0 : index
    %c0_3 = arith.constant 0 : index
    %27 = vector.load %arg15[%c0_2, %c0_3] : memref<256x1024xbf16, #tpu.memory_space<vmem>>, vector<256x1024xbf16>
    %28 = arith.truncf %24 : vector<8x256xf32> to vector<8x256xbf16>
    %cst = arith.constant dense<0.000000e+00> : vector<8x1024xf32>
    %29 = tpu.matmul %28, %27, %cst {dimension_numbers = #tpu.dot_dimension_numbers<[1], [0], [0], [1], [0, 0, 1, 1], [], []>} : vector<8x256xbf16>, vector<256x1024xbf16>, vector<8x1024xf32> -> vector<8x1024xf32>
    %c0_4 = arith.constant 0 : index
    %c0_5 = arith.constant 0 : index
    %30 = vector.load %arg1[%c0_4, %c0_5] : memref<12x1024xf32, #tpu.memory_space<vmem>>, vector<1x1024xf32>
    %31 = vector.broadcast %30 : vector<1x1024xf32> to vector<8x1024xf32>
    %32 = arith.addf %29, %31 : vector<8x1024xf32>
    %cst_6 = arith.constant 0.000000e+00 : f32
    %33 = vector.broadcast %cst_6 : f32 to vector<8x1024xf32>
    %34 = arith.maximumf %32, %33 : vector<8x1024xf32>
    %c1_i32_7 = arith.constant 1 : i32
    %35 = tpu.memref_slice %arg27[%c1_i32_7] : memref<12x!tpu.dma_semaphore, #tpu.memory_space<semaphore_mem>> -> memref<1x!tpu.dma_semaphore, #tpu.memory_space<semaphore_mem>>
    %36 = tpu.memref_squeeze %35 : memref<1x!tpu.dma_semaphore, #tpu.memory_space<semaphore_mem>> -> memref<!tpu.dma_semaphore, #tpu.memory_space<semaphore_mem>>
    tpu.wait_dma2 semaphore(%36 : memref<!tpu.dma_semaphore, #tpu.memory_space<semaphore_mem>>) src(%arg3 : memref<1024x512xbf16, #tpu.memory_space<any>>) dst(%arg16 : memref<1024x512xbf16, #tpu.memory_space<vmem>>)
    %c0_8 = arith.constant 0 : index
    %c0_9 = arith.constant 0 : index
    %37 = vector.load %arg16[%c0_8, %c0_9] : memref<1024x512xbf16, #tpu.memory_space<vmem>>, vector<1024x512xbf16>
    %38 = arith.truncf %34 : vector<8x1024xf32> to vector<8x1024xbf16>
    %cst_10 = arith.constant dense<0.000000e+00> : vector<8x512xf32>
    %39 = tpu.matmul %38, %37, %cst_10 {dimension_numbers = #tpu.dot_dimension_numbers<[1], [0], [0], [1], [0, 0, 1, 1], [], []>} : vector<8x1024xbf16>, vector<1024x512xbf16>, vector<8x512xf32> -> vector<8x512xf32>
    %c1 = arith.constant 1 : index
    %c0_11 = arith.constant 0 : index
    %40 = vector.load %arg1[%c1, %c0_11] : memref<12x1024xf32, #tpu.memory_space<vmem>>, vector<1x512xf32>
    %41 = vector.broadcast %40 : vector<1x512xf32> to vector<8x512xf32>
    %42 = arith.addf %39, %41 : vector<8x512xf32>
    %cst_12 = arith.constant 0.000000e+00 : f32
    %43 = vector.broadcast %cst_12 : f32 to vector<8x512xf32>
    %44 = arith.maximumf %42, %43 : vector<8x512xf32>
    %c2_i32_13 = arith.constant 2 : i32
    %45 = tpu.memref_slice %arg27[%c2_i32_13] : memref<12x!tpu.dma_semaphore, #tpu.memory_space<semaphore_mem>> -> memref<1x!tpu.dma_semaphore, #tpu.memory_space<semaphore_mem>>
    %46 = tpu.memref_squeeze %45 : memref<1x!tpu.dma_semaphore, #tpu.memory_space<semaphore_mem>> -> memref<!tpu.dma_semaphore, #tpu.memory_space<semaphore_mem>>
    tpu.wait_dma2 semaphore(%46 : memref<!tpu.dma_semaphore, #tpu.memory_space<semaphore_mem>>) src(%arg4 : memref<512x256xbf16, #tpu.memory_space<any>>) dst(%arg17 : memref<512x256xbf16, #tpu.memory_space<vmem>>)
    %c0_14 = arith.constant 0 : index
    %c0_15 = arith.constant 0 : index
    %47 = vector.load %arg17[%c0_14, %c0_15] : memref<512x256xbf16, #tpu.memory_space<vmem>>, vector<512x256xbf16>
    %48 = arith.truncf %44 : vector<8x512xf32> to vector<8x512xbf16>
    %cst_16 = arith.constant dense<0.000000e+00> : vector<8x256xf32>
    %49 = tpu.matmul %48, %47, %cst_16 {dimension_numbers = #tpu.dot_dimension_numbers<[1], [0], [0], [1], [0, 0, 1, 1], [], []>} : vector<8x512xbf16>, vector<512x256xbf16>, vector<8x256xf32> -> vector<8x256xf32>
    %c2 = arith.constant 2 : index
    %c0_17 = arith.constant 0 : index
    %50 = vector.load %arg1[%c2, %c0_17] : memref<12x1024xf32, #tpu.memory_space<vmem>>, vector<1x256xf32>
    %51 = vector.broadcast %50 : vector<1x256xf32> to vector<8x256xf32>
    %52 = arith.addf %49, %51 : vector<8x256xf32>
    %cst_18 = arith.constant 0.000000e+00 : f32
    %53 = vector.broadcast %cst_18 : f32 to vector<8x256xf32>
    %54 = arith.maximumf %52, %53 : vector<8x256xf32>
    %c3_i32_19 = arith.constant 3 : i32
    %55 = tpu.memref_slice %arg27[%c3_i32_19] : memref<12x!tpu.dma_semaphore, #tpu.memory_space<semaphore_mem>> -> memref<1x!tpu.dma_semaphore, #tpu.memory_space<semaphore_mem>>
    %56 = tpu.memref_squeeze %55 : memref<1x!tpu.dma_semaphore, #tpu.memory_space<semaphore_mem>> -> memref<!tpu.dma_semaphore, #tpu.memory_space<semaphore_mem>>
    tpu.wait_dma2 semaphore(%56 : memref<!tpu.dma_semaphore, #tpu.memory_space<semaphore_mem>>) src(%arg5 : memref<256x128xbf16, #tpu.memory_space<any>>) dst(%arg18 : memref<256x128xbf16, #tpu.memory_space<vmem>>)
    %c0_20 = arith.constant 0 : index
    %c0_21 = arith.constant 0 : index
    %57 = vector.load %arg18[%c0_20, %c0_21] : memref<256x128xbf16, #tpu.memory_space<vmem>>, vector<256x128xbf16>
    %58 = arith.truncf %54 : vector<8x256xf32> to vector<8x256xbf16>
    %cst_22 = arith.constant dense<0.000000e+00> : vector<8x128xf32>
    %59 = tpu.matmul %58, %57, %cst_22 {dimension_numbers = #tpu.dot_dimension_numbers<[1], [0], [0], [1], [0, 0, 1, 1], [], []>} : vector<8x256xbf16>, vector<256x128xbf16>, vector<8x128xf32> -> vector<8x128xf32>
    %c3 = arith.constant 3 : index
    %c0_23 = arith.constant 0 : index
    %60 = vector.load %arg1[%c3, %c0_23] : memref<12x1024xf32, #tpu.memory_space<vmem>>, vector<1x128xf32>
    %61 = vector.broadcast %60 : vector<1x128xf32> to vector<8x128xf32>
    %62 = arith.addf %59, %61 : vector<8x128xf32>
    %cst_24 = arith.constant 0.000000e+00 : f32
    %63 = vector.broadcast %cst_24 : f32 to vector<8x128xf32>
    %64 = arith.maximumf %62, %63 : vector<8x128xf32>
    %c4_i32_25 = arith.constant 4 : i32
    %65 = tpu.memref_slice %arg27[%c4_i32_25] : memref<12x!tpu.dma_semaphore, #tpu.memory_space<semaphore_mem>> -> memref<1x!tpu.dma_semaphore, #tpu.memory_space<semaphore_mem>>
    %66 = tpu.memref_squeeze %65 : memref<1x!tpu.dma_semaphore, #tpu.memory_space<semaphore_mem>> -> memref<!tpu.dma_semaphore, #tpu.memory_space<semaphore_mem>>
    tpu.wait_dma2 semaphore(%66 : memref<!tpu.dma_semaphore, #tpu.memory_space<semaphore_mem>>) src(%arg6 : memref<128x128xbf16, #tpu.memory_space<any>>) dst(%arg19 : memref<128x128xbf16, #tpu.memory_space<vmem>>)
    %c0_26 = arith.constant 0 : index
    %c0_27 = arith.constant 0 : index
    %67 = vector.load %arg19[%c0_26, %c0_27] : memref<128x128xbf16, #tpu.memory_space<vmem>>, vector<128x128xbf16>
    %68 = arith.truncf %64 : vector<8x128xf32> to vector<8x128xbf16>
    %cst_28 = arith.constant dense<0.000000e+00> : vector<8x128xf32>
    %69 = tpu.matmul %68, %67, %cst_28 {dimension_numbers = #tpu.dot_dimension_numbers<[1], [0], [0], [1], [0, 0, 1, 1], [], []>} : vector<8x128xbf16>, vector<128x128xbf16>, vector<8x128xf32> -> vector<8x128xf32>
    %c4 = arith.constant 4 : index
    %c0_29 = arith.constant 0 : index
    %70 = vector.load %arg1[%c4, %c0_29] : memref<12x1024xf32, #tpu.memory_space<vmem>>, vector<1x128xf32>
    %71 = vector.broadcast %70 : vector<1x128xf32> to vector<8x128xf32>
    %72 = arith.addf %69, %71 : vector<8x128xf32>
    %cst_30 = arith.constant 0.000000e+00 : f32
    %73 = vector.broadcast %cst_30 : f32 to vector<8x128xf32>
    %74 = arith.maximumf %72, %73 : vector<8x128xf32>
    %c5_i32_31 = arith.constant 5 : i32
    %75 = tpu.memref_slice %arg27[%c5_i32_31] : memref<12x!tpu.dma_semaphore, #tpu.memory_space<semaphore_mem>> -> memref<1x!tpu.dma_semaphore, #tpu.memory_space<semaphore_mem>>
    %76 = tpu.memref_squeeze %75 : memref<1x!tpu.dma_semaphore, #tpu.memory_space<semaphore_mem>> -> memref<!tpu.dma_semaphore, #tpu.memory_space<semaphore_mem>>
    tpu.wait_dma2 semaphore(%76 : memref<!tpu.dma_semaphore, #tpu.memory_space<semaphore_mem>>) src(%arg7 : memref<128x128xbf16, #tpu.memory_space<any>>) dst(%arg20 : memref<128x128xbf16, #tpu.memory_space<vmem>>)
    %c0_32 = arith.constant 0 : index
    %c0_33 = arith.constant 0 : index
    %77 = vector.load %arg20[%c0_32, %c0_33] : memref<128x128xbf16, #tpu.memory_space<vmem>>, vector<128x128xbf16>
    %78 = arith.truncf %74 : vector<8x128xf32> to vector<8x128xbf16>
    %cst_34 = arith.constant dense<0.000000e+00> : vector<8x128xf32>
    %79 = tpu.matmul %78, %77, %cst_34 {dimension_numbers = #tpu.dot_dimension_numbers<[1], [0], [0], [1], [0, 0, 1, 1], [], []>} : vector<8x128xbf16>, vector<128x128xbf16>, vector<8x128xf32> -> vector<8x128xf32>
    %c5 = arith.constant 5 : index
    %c0_35 = arith.constant 0 : index
    %80 = vector.load %arg1[%c5, %c0_35] : memref<12x1024xf32, #tpu.memory_space<vmem>>, vector<1x128xf32>
    %81 = vector.broadcast %80 : vector<1x128xf32> to vector<8x128xf32>
    %82 = arith.addf %79, %81 : vector<8x128xf32>
    %c6_i32_36 = arith.constant 6 : i32
    %83 = tpu.memref_slice %arg27[%c6_i32_36] : memref<12x!tpu.dma_semaphore, #tpu.memory_space<semaphore_mem>> -> memref<1x!tpu.dma_semaphore, #tpu.memory_space<semaphore_mem>>
    %84 = tpu.memref_squeeze %83 : memref<1x!tpu.dma_semaphore, #tpu.memory_space<semaphore_mem>> -> memref<!tpu.dma_semaphore, #tpu.memory_space<semaphore_mem>>
    tpu.wait_dma2 semaphore(%84 : memref<!tpu.dma_semaphore, #tpu.memory_space<semaphore_mem>>) src(%arg8 : memref<128x128xbf16, #tpu.memory_space<any>>) dst(%arg21 : memref<128x128xbf16, #tpu.memory_space<vmem>>)
    %c0_37 = arith.constant 0 : index
    %c0_38 = arith.constant 0 : index
    %85 = vector.load %arg21[%c0_37, %c0_38] : memref<128x128xbf16, #tpu.memory_space<vmem>>, vector<128x128xbf16>
    %86 = arith.truncf %82 : vector<8x128xf32> to vector<8x128xbf16>
    %cst_39 = arith.constant dense<0.000000e+00> : vector<8x128xf32>
    %87 = tpu.matmul %86, %85, %cst_39 {dimension_numbers = #tpu.dot_dimension_numbers<[1], [0], [0], [1], [0, 0, 1, 1], [], []>} : vector<8x128xbf16>, vector<128x128xbf16>, vector<8x128xf32> -> vector<8x128xf32>
    %c6 = arith.constant 6 : index
    %c0_40 = arith.constant 0 : index
    %88 = vector.load %arg1[%c6, %c0_40] : memref<12x1024xf32, #tpu.memory_space<vmem>>, vector<1x128xf32>
    %89 = vector.broadcast %88 : vector<1x128xf32> to vector<8x128xf32>
    %90 = arith.addf %87, %89 : vector<8x128xf32>
    %cst_41 = arith.constant 0.000000e+00 : f32
    %91 = vector.broadcast %cst_41 : f32 to vector<8x128xf32>
    %92 = arith.maximumf %90, %91 : vector<8x128xf32>
    %c7_i32_42 = arith.constant 7 : i32
    %93 = tpu.memref_slice %arg27[%c7_i32_42] : memref<12x!tpu.dma_semaphore, #tpu.memory_space<semaphore_mem>> -> memref<1x!tpu.dma_semaphore, #tpu.memory_space<semaphore_mem>>
    %94 = tpu.memref_squeeze %93 : memref<1x!tpu.dma_semaphore, #tpu.memory_space<semaphore_mem>> -> memref<!tpu.dma_semaphore, #tpu.memory_space<semaphore_mem>>
    tpu.wait_dma2 semaphore(%94 : memref<!tpu.dma_semaphore, #tpu.memory_space<semaphore_mem>>) src(%arg9 : memref<128x128xbf16, #tpu.memory_space<any>>) dst(%arg22 : memref<128x128xbf16, #tpu.memory_space<vmem>>)
    %c0_43 = arith.constant 0 : index
    %c0_44 = arith.constant 0 : index
    %95 = vector.load %arg22[%c0_43, %c0_44] : memref<128x128xbf16, #tpu.memory_space<vmem>>, vector<128x128xbf16>
    %96 = arith.truncf %92 : vector<8x128xf32> to vector<8x128xbf16>
    %cst_45 = arith.constant dense<0.000000e+00> : vector<8x128xf32>
    %97 = tpu.matmul %96, %95, %cst_45 {dimension_numbers = #tpu.dot_dimension_numbers<[1], [0], [0], [1], [0, 0, 1, 1], [], []>} : vector<8x128xbf16>, vector<128x128xbf16>, vector<8x128xf32> -> vector<8x128xf32>
    %c7 = arith.constant 7 : index
    %c0_46 = arith.constant 0 : index
    %98 = vector.load %arg1[%c7, %c0_46] : memref<12x1024xf32, #tpu.memory_space<vmem>>, vector<1x128xf32>
    %99 = vector.broadcast %98 : vector<1x128xf32> to vector<8x128xf32>
    %100 = arith.addf %97, %99 : vector<8x128xf32>
    %cst_47 = arith.constant 0.000000e+00 : f32
    %101 = vector.broadcast %cst_47 : f32 to vector<8x128xf32>
    %102 = arith.maximumf %100, %101 : vector<8x128xf32>
    %c8_i32_48 = arith.constant 8 : i32
    %103 = tpu.memref_slice %arg27[%c8_i32_48] : memref<12x!tpu.dma_semaphore, #tpu.memory_space<semaphore_mem>> -> memref<1x!tpu.dma_semaphore, #tpu.memory_space<semaphore_mem>>
    %104 = tpu.memref_squeeze %103 : memref<1x!tpu.dma_semaphore, #tpu.memory_space<semaphore_mem>> -> memref<!tpu.dma_semaphore, #tpu.memory_space<semaphore_mem>>
    tpu.wait_dma2 semaphore(%104 : memref<!tpu.dma_semaphore, #tpu.memory_space<semaphore_mem>>) src(%arg10 : memref<128x256xbf16, #tpu.memory_space<any>>) dst(%arg23 : memref<128x256xbf16, #tpu.memory_space<vmem>>)
    %c0_49 = arith.constant 0 : index
    %c0_50 = arith.constant 0 : index
    %105 = vector.load %arg23[%c0_49, %c0_50] : memref<128x256xbf16, #tpu.memory_space<vmem>>, vector<128x256xbf16>
    %106 = arith.truncf %102 : vector<8x128xf32> to vector<8x128xbf16>
    %cst_51 = arith.constant dense<0.000000e+00> : vector<8x256xf32>
    %107 = tpu.matmul %106, %105, %cst_51 {dimension_numbers = #tpu.dot_dimension_numbers<[1], [0], [0], [1], [0, 0, 1, 1], [], []>} : vector<8x128xbf16>, vector<128x256xbf16>, vector<8x256xf32> -> vector<8x256xf32>
    %c8 = arith.constant 8 : index
    %c0_52 = arith.constant 0 : index
    %108 = vector.load %arg1[%c8, %c0_52] : memref<12x1024xf32, #tpu.memory_space<vmem>>, vector<1x256xf32>
    %109 = vector.broadcast %108 : vector<1x256xf32> to vector<8x256xf32>
    %110 = arith.addf %107, %109 : vector<8x256xf32>
    %cst_53 = arith.constant 0.000000e+00 : f32
    %111 = vector.broadcast %cst_53 : f32 to vector<8x256xf32>
    %112 = arith.maximumf %110, %111 : vector<8x256xf32>
    %c9_i32_54 = arith.constant 9 : i32
    %113 = tpu.memref_slice %arg27[%c9_i32_54] : memref<12x!tpu.dma_semaphore, #tpu.memory_space<semaphore_mem>> -> memref<1x!tpu.dma_semaphore, #tpu.memory_space<semaphore_mem>>
    %114 = tpu.memref_squeeze %113 : memref<1x!tpu.dma_semaphore, #tpu.memory_space<semaphore_mem>> -> memref<!tpu.dma_semaphore, #tpu.memory_space<semaphore_mem>>
    tpu.wait_dma2 semaphore(%114 : memref<!tpu.dma_semaphore, #tpu.memory_space<semaphore_mem>>) src(%arg11 : memref<256x512xbf16, #tpu.memory_space<any>>) dst(%arg24 : memref<256x512xbf16, #tpu.memory_space<vmem>>)
    %c0_55 = arith.constant 0 : index
    %c0_56 = arith.constant 0 : index
    %115 = vector.load %arg24[%c0_55, %c0_56] : memref<256x512xbf16, #tpu.memory_space<vmem>>, vector<256x512xbf16>
    %116 = arith.truncf %112 : vector<8x256xf32> to vector<8x256xbf16>
    %cst_57 = arith.constant dense<0.000000e+00> : vector<8x512xf32>
    %117 = tpu.matmul %116, %115, %cst_57 {dimension_numbers = #tpu.dot_dimension_numbers<[1], [0], [0], [1], [0, 0, 1, 1], [], []>} : vector<8x256xbf16>, vector<256x512xbf16>, vector<8x512xf32> -> vector<8x512xf32>
    %c9 = arith.constant 9 : index
    %c0_58 = arith.constant 0 : index
    %118 = vector.load %arg1[%c9, %c0_58] : memref<12x1024xf32, #tpu.memory_space<vmem>>, vector<1x512xf32>
    %119 = vector.broadcast %118 : vector<1x512xf32> to vector<8x512xf32>
    %120 = arith.addf %117, %119 : vector<8x512xf32>
    %cst_59 = arith.constant 0.000000e+00 : f32
    %121 = vector.broadcast %cst_59 : f32 to vector<8x512xf32>
    %122 = arith.maximumf %120, %121 : vector<8x512xf32>
    %c10_i32_60 = arith.constant 10 : i32
    %123 = tpu.memref_slice %arg27[%c10_i32_60] : memref<12x!tpu.dma_semaphore, #tpu.memory_space<semaphore_mem>> -> memref<1x!tpu.dma_semaphore, #tpu.memory_space<semaphore_mem>>
    %124 = tpu.memref_squeeze %123 : memref<1x!tpu.dma_semaphore, #tpu.memory_space<semaphore_mem>> -> memref<!tpu.dma_semaphore, #tpu.memory_space<semaphore_mem>>
    tpu.wait_dma2 semaphore(%124 : memref<!tpu.dma_semaphore, #tpu.memory_space<semaphore_mem>>) src(%arg12 : memref<512x1024xbf16, #tpu.memory_space<any>>) dst(%arg25 : memref<512x1024xbf16, #tpu.memory_space<vmem>>)
    %c0_61 = arith.constant 0 : index
    %c0_62 = arith.constant 0 : index
    %125 = vector.load %arg25[%c0_61, %c0_62] : memref<512x1024xbf16, #tpu.memory_space<vmem>>, vector<512x1024xbf16>
    %126 = arith.truncf %122 : vector<8x512xf32> to vector<8x512xbf16>
    %cst_63 = arith.constant dense<0.000000e+00> : vector<8x1024xf32>
    %127 = tpu.matmul %126, %125, %cst_63 {dimension_numbers = #tpu.dot_dimension_numbers<[1], [0], [0], [1], [0, 0, 1, 1], [], []>} : vector<8x512xbf16>, vector<512x1024xbf16>, vector<8x1024xf32> -> vector<8x1024xf32>
    %c10 = arith.constant 10 : index
    %c0_64 = arith.constant 0 : index
    %128 = vector.load %arg1[%c10, %c0_64] : memref<12x1024xf32, #tpu.memory_space<vmem>>, vector<1x1024xf32>
    %129 = vector.broadcast %128 : vector<1x1024xf32> to vector<8x1024xf32>
    %130 = arith.addf %127, %129 : vector<8x1024xf32>
    %cst_65 = arith.constant 0.000000e+00 : f32
    %131 = vector.broadcast %cst_65 : f32 to vector<8x1024xf32>
    %132 = arith.maximumf %130, %131 : vector<8x1024xf32>
    %c11_i32_66 = arith.constant 11 : i32
    %133 = tpu.memref_slice %arg27[%c11_i32_66] : memref<12x!tpu.dma_semaphore, #tpu.memory_space<semaphore_mem>> -> memref<1x!tpu.dma_semaphore, #tpu.memory_space<semaphore_mem>>
    %134 = tpu.memref_squeeze %133 : memref<1x!tpu.dma_semaphore, #tpu.memory_space<semaphore_mem>> -> memref<!tpu.dma_semaphore, #tpu.memory_space<semaphore_mem>>
    tpu.wait_dma2 semaphore(%134 : memref<!tpu.dma_semaphore, #tpu.memory_space<semaphore_mem>>) src(%arg13 : memref<1024x256xbf16, #tpu.memory_space<any>>) dst(%arg26 : memref<1024x256xbf16, #tpu.memory_space<vmem>>)
    %c0_67 = arith.constant 0 : index
    %c0_68 = arith.constant 0 : index
    %135 = vector.load %arg26[%c0_67, %c0_68] : memref<1024x256xbf16, #tpu.memory_space<vmem>>, vector<1024x256xbf16>
    %136 = arith.truncf %132 : vector<8x1024xf32> to vector<8x1024xbf16>
    %cst_69 = arith.constant dense<0.000000e+00> : vector<8x256xf32>
    %137 = tpu.matmul %136, %135, %cst_69 {dimension_numbers = #tpu.dot_dimension_numbers<[1], [0], [0], [1], [0, 0, 1, 1], [], []>} : vector<8x1024xbf16>, vector<1024x256xbf16>, vector<8x256xf32> -> vector<8x256xf32>
    %c11 = arith.constant 11 : index
    %c0_70 = arith.constant 0 : index
    %138 = vector.load %arg1[%c11, %c0_70] : memref<12x1024xf32, #tpu.memory_space<vmem>>, vector<1x256xf32>
    %139 = vector.broadcast %138 : vector<1x256xf32> to vector<8x256xf32>
    %140 = arith.addf %137, %139 : vector<8x256xf32>
    %141 = arith.negf %140 : vector<8x256xf32>
    %142 = math.exp %141 : vector<8x256xf32>
    %cst_71 = arith.constant 1.000000e+00 : f32
    %143 = vector.broadcast %cst_71 : f32 to vector<8x256xf32>
    %144 = arith.addf %143, %142 : vector<8x256xf32>
    %145 = arith.divf %143, %144 : vector<8x256xf32>
    %c0_72 = arith.constant 0 : index
    %c0_73 = arith.constant 0 : index
    %146 = vector.load %arg14[%c0_72, %c0_73] : memref<8x256xf32, #tpu.memory_space<vmem>>, vector<8x256xf32>
    tpu.vector_store %arg14[%c0_72, %c0_73], %145 {strides = array<i32>} : memref<8x256xf32, #tpu.memory_space<vmem>>, vector<8x256xf32>,
    return
  }
}

</mosaic_0001>

<llo_original>
// kernel: tpu_custom_call.1
$region0: #{tpu_custom_call.1}
  #allocation0 [shape = 'u32[]', space=smem, size = 0x4, offset = 0x4, fixed_abs, tag = 'smem constant byte address 0x4 - core index']
  #allocation1 [shape = 'u32[144,128]{1,0:T(1,128)}', space=vmem, size = 0x12000, scoped, tag = 'internal scratch']
  #allocation2 [shape = 'bf16[256,1024]{1,0:T(16,128)(2,1)}', space=vmem, size = 0x80000, scoped, tag = 'scratch operand']
  #allocation3 [shape = 'bf16[1024,512]{1,0:T(16,128)(2,1)}', space=vmem, size = 0x100000, scoped, tag = 'scratch operand']
  #allocation4 [shape = 'bf16[512,256]{1,0:T(16,128)(2,1)}', space=vmem, size = 0x40000, scoped, tag = 'scratch operand']
  #allocation5 [shape = 'bf16[256,128]{1,0:T(16,128)(2,1)}', space=vmem, size = 0x10000, scoped, tag = 'scratch operand']
  #allocation6 [shape = 'bf16[128,128]{1,0:T(16,128)(2,1)}', space=vmem, size = 0x8000, scoped, tag = 'scratch operand']
  #allocation7 [shape = 'bf16[128,128]{1,0:T(16,128)(2,1)}', space=vmem, size = 0x8000, scoped, tag = 'scratch operand']
  #allocation8 [shape = 'bf16[128,128]{1,0:T(16,128)(2,1)}', space=vmem, size = 0x8000, scoped, tag = 'scratch operand']
  #allocation9 [shape = 'bf16[128,128]{1,0:T(16,128)(2,1)}', space=vmem, size = 0x8000, scoped, tag = 'scratch operand']
  #allocation10 [shape = 'bf16[128,256]{1,0:T(16,128)(2,1)}', space=vmem, size = 0x10000, scoped, tag = 'scratch operand']
  #allocation11 [shape = 'bf16[256,512]{1,0:T(16,128)(2,1)}', space=vmem, size = 0x40000, scoped, tag = 'scratch operand']
  #allocation12 [shape = 'bf16[512,1024]{1,0:T(16,128)(2,1)}', space=vmem, size = 0x100000, scoped, tag = 'scratch operand']
  #allocation13 [shape = 'bf16[1024,256]{1,0:T(16,128)(2,1)}', space=vmem, size = 0x80000, scoped, tag = 'scratch operand']
  #allocation14 [shape = 's32[12]{0}', space=sflag, size = 0x30, scoped, tag = 'scratch operand']
  #allocation21 [shape = 's32[]', space=sflag, size = 0x4, offset = 0, fixed_abs, tag = 'sflag constant byte address 0x0 - dummy sync flag']
  #allocation23 [shape = 's32[]', space=sflag, size = 0x4, offset = 0, fixed_abs, tag = 'sflag constant byte address 0x0 - dummy sync flag']
  #allocation25 [shape = 's32[]', space=sflag, size = 0x4, offset = 0, fixed_abs, tag = 'sflag constant byte address 0x0 - dummy sync flag']
  #allocation27 [shape = 's32[]', space=sflag, size = 0x4, offset = 0, fixed_abs, tag = 'sflag constant byte address 0x0 - dummy sync flag']
  #allocation28 [shape = 's32[]', space=sflag, size = 0x4, offset = 0, fixed_abs, tag = 'sflag constant byte address 0x0 - dummy sync flag']
  #allocation29 [shape = 'u32[]', space=smem, size = 0x4, offset = 0x44, fixed_abs, tag = 'smem constant byte address 0x44 - assertion arg 0']
  #allocation30 [shape = 'u32[]', space=smem, size = 0x4, offset = 0x48, fixed_abs, tag = 'smem constant byte address 0x48 - assertion arg 1']
  #allocation31 [shape = 's32[]', space=sflag, size = 0x4, offset = 0, fixed_abs, tag = 'sflag constant byte address 0x0 - dummy sync flag']
  #allocation32 [shape = 's32[]', space=sflag, size = 0x4, offset = 0, fixed_abs, tag = 'sflag constant byte address 0x0 - dummy sync flag']
  #allocation33 [shape = 's32[]', space=sflag, size = 0x4, offset = 0, fixed_abs, tag = 'sflag constant byte address 0x0 - dummy sync flag']
  #allocation34 [shape = 's32[]', space=sflag, size = 0x4, offset = 0, fixed_abs, tag = 'sflag constant byte address 0x0 - dummy sync flag']
  #allocation35 [shape = 's32[]', space=sflag, size = 0x4, offset = 0, fixed_abs, tag = 'sflag constant byte address 0x0 - dummy sync flag']
  #allocation36 [shape = 's32[]', space=sflag, size = 0x4, offset = 0, fixed_abs, tag = 'sflag constant byte address 0x0 - dummy sync flag']
  #allocation37 [shape = 's32[]', space=sflag, size = 0x4, offset = 0, fixed_abs, tag = 'sflag constant byte address 0x0 - dummy sync flag']
  #allocation38 [shape = 's32[]', space=sflag, size = 0x4, offset = 0, fixed_abs, tag = 'sflag constant byte address 0x0 - dummy sync flag']
  #allocation39 [shape = 's32[]', space=sflag, size = 0x4, offset = 0, fixed_abs, tag = 'sflag constant byte address 0x0 - dummy sync flag']
  #allocation41 [shape = 's32[]', space=sflag, size = 0x4, offset = 0, fixed_abs, tag = 'sflag constant byte address 0x0 - dummy sync flag']
  #allocation43 [shape = 's32[]', space=sflag, size = 0x4, offset = 0, fixed_abs, tag = 'sflag constant byte address 0x0 - dummy sync flag']
  #allocation45 [shape = 's32[]', space=sflag, size = 0x4, offset = 0, fixed_abs, tag = 'sflag constant byte address 0x0 - dummy sync flag']
  %s0 = inlined_call_operand.hbm [shape: f32[8,256], index: 0, kind: input, shape index: {}]
  %s1 = inlined_call_operand.hbm [shape: f32[12,1024], index: 1, kind: input, shape index: {}]
  %s2 = inlined_call_operand.hbm [shape: bf16[256,1024], index: 2, kind: input, shape index: {}]
  %s3 = inlined_call_operand.hbm [shape: bf16[1024,512], index: 3, kind: input, shape index: {}]
  %s4 = inlined_call_operand.hbm [shape: bf16[512,256], index: 4, kind: input, shape index: {}]
  %s5 = inlined_call_operand.hbm [shape: bf16[256,128], index: 5, kind: input, shape index: {}]
  %s6 = inlined_call_operand.hbm [shape: bf16[128,128], index: 6, kind: input, shape index: {}]
  %s7 = inlined_call_operand.hbm [shape: bf16[128,128], index: 7, kind: input, shape index: {}]
  %s8 = inlined_call_operand.hbm [shape: bf16[128,128], index: 8, kind: input, shape index: {}]
  %s9 = inlined_call_operand.hbm [shape: bf16[128,128], index: 9, kind: input, shape index: {}]
  %s10 = inlined_call_operand.hbm [shape: bf16[128,256], index: 10, kind: input, shape index: {}]
  %s11 = inlined_call_operand.hbm [shape: bf16[256,512], index: 11, kind: input, shape index: {}]
  %s12 = inlined_call_operand.hbm [shape: bf16[512,1024], index: 12, kind: input, shape index: {}]
  %s13 = inlined_call_operand.hbm [shape: bf16[1024,256], index: 13, kind: input, shape index: {}]
  %s14 = inlined_call_operand.hbm [shape: f32[8,256], index: 14, kind: output, shape index: {}]
  %s15 = sld [smem:[#allocation0]]
  $region46: #{tpu_custom_call.1} parent=0
    _
  %s17 = ssub.s32 1, %s15
  %s18 = scalar_select 0, %s17, %s15
  $region1: #{tpu_custom_call.1} parent=0
    #allocation15 [shape = 'u8[8192]{0}', space=vmem, size = 0x2000, scoped, tag = 'input window, operand 0, single buffered']
    #allocation16 [shape = 's32[1]{0}', space=sflag, size = 0x4, scoped, tag = 'scoped memory for tpu_custom_call.1']
    #allocation17 [shape = 's32[1]{0}', space=sflag, size = 0x4, scoped, tag = 'scoped memory for tpu_custom_call.1']
    #allocation18 [shape = 'u8[65536]{0}', space=vmem, size = 0x10000, scoped, tag = 'input window, operand 1, single buffered']
    #allocation19 [shape = 's32[1]{0}', space=sflag, size = 0x4, scoped, tag = 'scoped memory for tpu_custom_call.1']
    #allocation20 [shape = 'u8[8192]{0}', space=vmem, size = 0x2000, scoped, tag = 'output window, operand 0, single buffered']
    #allocation22 [shape = 'u32[9]{0}', space=smem, size = 0x24, scoped, tag = 'DMA stride descriptor']
    #allocation24 [shape = 'u32[9]{0}', space=smem, size = 0x24, scoped, tag = 'DMA stride descriptor']
    #allocation26 [shape = 'u32[9]{0}', space=smem, size = 0x24, scoped, tag = 'DMA stride descriptor']
    #allocation40 [shape = 'u32[9]{0}', space=smem, size = 0x24, scoped, tag = 'DMA stride descriptor']
    #allocation42 [shape = 'u32[9]{0}', space=smem, size = 0x24, scoped, tag = 'DMA stride descriptor']
    #allocation44 [shape = 'u32[9]{0}', space=smem, size = 0x24, scoped, tag = 'DMA stride descriptor']
    #allocation46 [shape = 'u32[9]{0}', space=smem, size = 0x24, scoped, tag = 'DMA stride descriptor']
    %19 = vsyncpa [#allocation16], 0
    %20 = vsyncpa [#allocation19], 0
    %21 = vsyncpa [#allocation17], 0
    // Predicated region
    $region2: #{tpu_custom_call.1} parent=1 // pred_check
      _
    $region3: #{tpu_custom_call.1} parent=1 // pred_check_branch
      %23 = sbr.rel (0) target = $region5
    $region4: #{tpu_custom_call.1} parent=1 // pred_region
      %s25 = ssub.s32 256, 256
      %26 = vsyncadd [#allocation16], %s25
      %s28 = sshll.u32 [#allocation15], 4
      %s29 = int_to_ptr.vmem [resolvable:$true] %s28
      %31 = dma.hbm_to_vmem [thread:$0]  %s0, 256, %s29, [#allocation16]
    $region5: #{tpu_custom_call.1} parent=1 // pred_fallthru
      _
    // Predicated region
    $region6: #{tpu_custom_call.1} parent=1 // pred_check
      _
    $region7: #{tpu_custom_call.1} parent=1 // pred_check_branch
      %33 = sbr.rel (0) target = $region9
    $region8: #{tpu_custom_call.1} parent=1 // pred_region
      %s35 = ssub.s32 2048, 2048
      %36 = vsyncadd [#allocation19], %s35
      %s37 = sshll.u32 [#allocation18], 4
      %s38 = int_to_ptr.vmem [resolvable:$true] %s37
      %43 = dma.hbm_to_vmem [thread:$0]  %s1, 2048, %s38, [#allocation19], 1024, 1024, 64
    $region9: #{tpu_custom_call.1} parent=1 // pred_fallthru
      _
    // Predicated region
    $region10: #{tpu_custom_call.1} parent=1 // pred_check
      _
    $region11: #{tpu_custom_call.1} parent=1 // pred_check_branch
      %45 = sbr.rel (0) target = $region13
    $region12: #{tpu_custom_call.1} parent=1 // pred_region
      %46 = dma.done [#allocation16], 256
    $region13: #{tpu_custom_call.1} parent=1 // pred_fallthru
      _
    // Predicated region
    $region14: #{tpu_custom_call.1} parent=1 // pred_check
      _
    $region15: #{tpu_custom_call.1} parent=1 // pred_check_branch
      %48 = sbr.rel (0) target = $region17
    $region16: #{tpu_custom_call.1} parent=1 // pred_region
      %49 = dma.done [#allocation19], 2048
    $region17: #{tpu_custom_call.1} parent=1 // pred_fallthru
      _
    %s52 = sshll.u32 1, 14
    %s53 = sxor.u32 4294967295, %s52
    %s55 = sld [smem:[#allocation0]]
    %s56 = sadd.s32 2, %s55
    %s58 = sshll.u32 7, 26
    %s59 = sxor.u32 4294967295, %s58
    %s60 = sand.u32 0, %s59
    %s61 = sshll.u32 %s56, 26
    %s62 = sor.u32 %s60, %s61
    %s63 = sshll.u32 [#allocation2], 4
    %s64 = int_to_ptr.vmem [resolvable:$true] %s63
    %67 = sst [smem:[#allocation22]] 1024
    %s68 = scalar_lea.smem [#allocation22], 1
    %69 = sst [smem:[%s68]] 1024
    %s70 = scalar_lea.smem [#allocation22], 2
    %71 = sst [smem:[%s70]] 8
    %s72 = scalar_lea.smem [#allocation22], 3
    %73 = sst [smem:[%s72]] 64
    %s74 = scalar_lea.smem [#allocation22], 4
    %75 = sst [smem:[%s74]] 128
    %s76 = scalar_lea.smem [#allocation22], 5
    %77 = sst [smem:[%s76]] 2
    %s78 = scalar_lea.smem [#allocation22], 6
    %79 = sst [smem:[%s78]] 512
    %s80 = scalar_lea.smem [#allocation22], 7
    %81 = sst [smem:[%s80]] 64
    %s82 = scalar_lea.smem [#allocation22], 8
    %83 = sst [smem:[%s82]] 4
    %85 = dma.general %s2, 16384, %s64, [#allocation14], [#allocation21], [#allocation22], %s62, 0
    %s86 = scalar_lea.sflag [#allocation14], 1
    %s88 = sshll.u32 1, 14
    %s89 = sxor.u32 4294967295, %s88
    %s91 = sadd.s32 2, %s55
    %s93 = sshll.u32 7, 26
    %s94 = sxor.u32 4294967295, %s93
    %s95 = sand.u32 0, %s94
    %s96 = sshll.u32 %s91, 26
    %s97 = sor.u32 %s95, %s96
    %s98 = sshll.u32 [#allocation3], 4
    %s99 = int_to_ptr.vmem [resolvable:$true] %s98
    %102 = sst [smem:[#allocation24]] 512
    %s103 = scalar_lea.smem [#allocation24], 1
    %104 = sst [smem:[%s103]] 512
    %s105 = scalar_lea.smem [#allocation24], 2
    %106 = sst [smem:[%s105]] 4
    %s107 = scalar_lea.smem [#allocation24], 3
    %108 = sst [smem:[%s107]] 64
    %s109 = scalar_lea.smem [#allocation24], 4
    %110 = sst [smem:[%s109]] 128
    %s111 = scalar_lea.smem [#allocation24], 5
    %112 = sst [smem:[%s111]] 2
    %s113 = scalar_lea.smem [#allocation24], 6
    %114 = sst [smem:[%s113]] 256
    %s115 = scalar_lea.smem [#allocation24], 7
    %116 = sst [smem:[%s115]] 64
    %s117 = scalar_lea.smem [#allocation24], 8
    %118 = sst [smem:[%s117]] 4
    %120 = dma.general %s3, 32768, %s99, %s86, [#allocation23], [#allocation24], %s97, 0
    %s121 = scalar_lea.sflag [#allocation14], 2
    %s123 = sshll.u32 1, 14
    %s124 = sxor.u32 4294967295, %s123
    %s126 = sadd.s32 2, %s55
    %s128 = sshll.u32 7, 26
    %s129 = sxor.u32 4294967295, %s128
    %s130 = sand.u32 0, %s129
    %s131 = sshll.u32 %s126, 26
    %s132 = sor.u32 %s130, %s131
    %s133 = sshll.u32 [#allocation4], 4
    %s134 = int_to_ptr.vmem [resolvable:$true] %s133
    %137 = sst [smem:[#allocation26]] 256
    %s138 = scalar_lea.smem [#allocation26], 1
    %139 = sst [smem:[%s138]] 256
    %s140 = scalar_lea.smem [#allocation26], 2
    %141 = sst [smem:[%s140]] 2
    %s142 = scalar_lea.smem [#allocation26], 3
    %143 = sst [smem:[%s142]] 64
    %s144 = scalar_lea.smem [#allocation26], 4
    %145 = sst [smem:[%s144]] 128
    %s146 = scalar_lea.smem [#allocation26], 5
    %147 = sst [smem:[%s146]] 2
    %s148 = scalar_lea.smem [#allocation26], 6
    %149 = sst [smem:[%s148]] 128
    %s150 = scalar_lea.smem [#allocation26], 7
    %151 = sst [smem:[%s150]] 64
    %s152 = scalar_lea.smem [#allocation26], 8
    %153 = sst [smem:[%s152]] 4
    %155 = dma.general %s4, 8192, %s134, %s121, [#allocation25], [#allocation26], %s132, 0
    %s156 = scalar_lea.sflag [#allocation14], 3
    // Predicated region
    $region18: #{tpu_custom_call.1} parent=1 // pred_check
      _
    $region19: #{tpu_custom_call.1} parent=1 // pred_check_branch
      %158 = sbr.rel target = $region21
    $region20: #{tpu_custom_call.1} parent=1 // pred_region
      %159 = sst [smem:[#allocation29]] [#allocation28]
      %160 = sst [smem:[#allocation30]] [#allocation27]
    $region21: #{tpu_custom_call.1} parent=1 // pred_fallthru
      _
    %162 = shalt.err (0)
    %s164 = sshll.u32 [#allocation5], 4
    %s165 = int_to_ptr.vmem [resolvable:$true] %s164
    %167 = dma.hbm_to_vmem [thread:$0]  %s5, 2048, %s165, %s156
    %s168 = scalar_lea.sflag [#allocation14], 4
    // Predicated region
    $region22: #{tpu_custom_call.1} parent=1 // pred_check
      _
    $region23: #{tpu_custom_call.1} parent=1 // pred_check_branch
      %170 = sbr.rel target = $region25
    $region24: #{tpu_custom_call.1} parent=1 // pred_region
      %171 = sst [smem:[#allocation29]] [#allocation32]
      %172 = sst [smem:[#allocation30]] [#allocation31]
    $region25: #{tpu_custom_call.1} parent=1 // pred_fallthru
      _
    %174 = shalt.err (0)
    %s176 = sshll.u32 [#allocation6], 4
    %s177 = int_to_ptr.vmem [resolvable:$true] %s176
    %179 = dma.hbm_to_vmem [thread:$0]  %s6, 1024, %s177, %s168
    %s180 = scalar_lea.sflag [#allocation14], 5
    // Predicated region
    $region26: #{tpu_custom_call.1} parent=1 // pred_check
      _
    $region27: #{tpu_custom_call.1} parent=1 // pred_check_branch
      %182 = sbr.rel target = $region29
    $region28: #{tpu_custom_call.1} parent=1 // pred_region
      %183 = sst [smem:[#allocation29]] [#allocation34]
      %184 = sst [smem:[#allocation30]] [#allocation33]
    $region29: #{tpu_custom_call.1} parent=1 // pred_fallthru
      _
    %186 = shalt.err (0)
    %s188 = sshll.u32 [#allocation7], 4
    %s189 = int_to_ptr.vmem [resolvable:$true] %s188
    %191 = dma.hbm_to_vmem [thread:$0]  %s7, 1024, %s189, %s180
    %s192 = scalar_lea.sflag [#allocation14], 6
    // Predicated region
    $region30: #{tpu_custom_call.1} parent=1 // pred_check
      _
    $region31: #{tpu_custom_call.1} parent=1 // pred_check_branch
      %194 = sbr.rel target = $region33
    $region32: #{tpu_custom_call.1} parent=1 // pred_region
      %195 = sst [smem:[#allocation29]] [#allocation36]
      %196 = sst [smem:[#allocation30]] [#allocation35]
    $region33: #{tpu_custom_call.1} parent=1 // pred_fallthru
      _
    %198 = shalt.err (0)
    %s200 = sshll.u32 [#allocation8], 4
    %s201 = int_to_ptr.vmem [resolvable:$true] %s200
    %203 = dma.hbm_to_vmem [thread:$0]  %s8, 1024, %s201, %s192
    %s204 = scalar_lea.sflag [#allocation14], 7
    // Predicated region
    $region34: #{tpu_custom_call.1} parent=1 // pred_check
      _
    $region35: #{tpu_custom_call.1} parent=1 // pred_check_branch
      %206 = sbr.rel target = $region37
    $region36: #{tpu_custom_call.1} parent=1 // pred_region
      %207 = sst [smem:[#allocation29]] [#allocation38]
      %208 = sst [smem:[#allocation30]] [#allocation37]
    $region37: #{tpu_custom_call.1} parent=1 // pred_fallthru
      _
    %210 = shalt.err (0)
    %s212 = sshll.u32 [#allocation9], 4
    %s213 = int_to_ptr.vmem [resolvable:$true] %s212
    %215 = dma.hbm_to_vmem [thread:$0]  %s9, 1024, %s213, %s204
    %s216 = scalar_lea.sflag [#allocation14], 8
    %s218 = sshll.u32 1, 14
    %s219 = sxor.u32 4294967295, %s218
    %s221 = sadd.s32 2, %s55
    %s223 = sshll.u32 7, 26
    %s224 = sxor.u32 4294967295, %s223
    %s225 = sand.u32 0, %s224
    %s226 = sshll.u32 %s221, 26
    %s227 = sor.u32 %s225, %s226
    %s228 = sshll.u32 [#allocation10], 4
    %s229 = int_to_ptr.vmem [resolvable:$true] %s228
    %232 = sst [smem:[#allocation40]] 256
    %s233 = scalar_lea.smem [#allocation40], 1
    %234 = sst [smem:[%s233]] 256
    %s235 = scalar_lea.smem [#allocation40], 2
    %236 = sst [smem:[%s235]] 2
    %s237 = scalar_lea.smem [#allocation40], 3
    %238 = sst [smem:[%s237]] 64
    %s239 = scalar_lea.smem [#allocation40], 4
    %240 = sst [smem:[%s239]] 128
    %s241 = scalar_lea.smem [#allocation40], 5
    %242 = sst [smem:[%s241]] 2
    %s243 = scalar_lea.smem [#allocation40], 6
    %244 = sst [smem:[%s243]] 128
    %s245 = scalar_lea.smem [#allocation40], 7
    %246 = sst [smem:[%s245]] 64
    %s247 = scalar_lea.smem [#allocation40], 8
    %248 = sst [smem:[%s247]] 4
    %250 = dma.general %s10, 2048, %s229, %s216, [#allocation39], [#allocation40], %s227, 0
    %s251 = scalar_lea.sflag [#allocation14], 9
    %s253 = sshll.u32 1, 14
    %s254 = sxor.u32 4294967295, %s253
    %s256 = sadd.s32 2, %s55
    %s258 = sshll.u32 7, 26
    %s259 = sxor.u32 4294967295, %s258
    %s260 = sand.u32 0, %s259
    %s261 = sshll.u32 %s256, 26
    %s262 = sor.u32 %s260, %s261
    %s263 = sshll.u32 [#allocation11], 4
    %s264 = int_to_ptr.vmem [resolvable:$true] %s263
    %267 = sst [smem:[#allocation42]] 512
    %s268 = scalar_lea.smem [#allocation42], 1
    %269 = sst [smem:[%s268]] 512
    %s270 = scalar_lea.smem [#allocation42], 2
    %271 = sst [smem:[%s270]] 4
    %s272 = scalar_lea.smem [#allocation42], 3
    %273 = sst [smem:[%s272]] 64
    %s274 = scalar_lea.smem [#allocation42], 4
    %275 = sst [smem:[%s274]] 128
    %s276 = scalar_lea.smem [#allocation42], 5
    %277 = sst [smem:[%s276]] 2
    %s278 = scalar_lea.smem [#allocation42], 6
    %279 = sst [smem:[%s278]] 256
    %s280 = scalar_lea.smem [#allocation42], 7
    %281 = sst [smem:[%s280]] 64
    %s282 = scalar_lea.smem [#allocation42], 8
    %283 = sst [smem:[%s282]] 4
    %285 = dma.general %s11, 8192, %s264, %s251, [#allocation41], [#allocation42], %s262, 0
    %s286 = scalar_lea.sflag [#allocation14], 10
    %s288 = sshll.u32 1, 14
    %s289 = sxor.u32 4294967295, %s288
    %s291 = sadd.s32 2, %s55
    %s293 = sshll.u32 7, 26
    %s294 = sxor.u32 4294967295, %s293
    %s295 = sand.u32 0, %s294
    %s296 = sshll.u32 %s291, 26
    %s297 = sor.u32 %s295, %s296
    %s298 = sshll.u32 [#allocation12], 4
    %s299 = int_to_ptr.vmem [resolvable:$true] %s298
    %302 = sst [smem:[#allocation44]] 1024
    %s303 = scalar_lea.smem [#allocation44], 1
    %304 = sst [smem:[%s303]] 1024
    %s305 = scalar_lea.smem [#allocation44], 2
    %306 = sst [smem:[%s305]] 8
    %s307 = scalar_lea.smem [#allocation44], 3
    %308 = sst [smem:[%s307]] 64
    %s309 = scalar_lea.smem [#allocation44], 4
    %310 = sst [smem:[%s309]] 128
    %s311 = scalar_lea.smem [#allocation44], 5
    %312 = sst [smem:[%s311]] 2
    %s313 = scalar_lea.smem [#allocation44], 6
    %314 = sst [smem:[%s313]] 512
    %s315 = scalar_lea.smem [#allocation44], 7
    %316 = sst [smem:[%s315]] 64
    %s317 = scalar_lea.smem [#allocation44], 8
    %318 = sst [smem:[%s317]] 4
    %320 = dma.general %s12, 32768, %s299, %s286, [#allocation43], [#allocation44], %s297, 0
    %s321 = scalar_lea.sflag [#allocation14], 11
    %s323 = sshll.u32 1, 14
    %s324 = sxor.u32 4294967295, %s323
    %s326 = sadd.s32 2, %s55
    %s328 = sshll.u32 7, 26
    %s329 = sxor.u32 4294967295, %s328
    %s330 = sand.u32 0, %s329
    %s331 = sshll.u32 %s326, 26
    %s332 = sor.u32 %s330, %s331
    %s333 = sshll.u32 [#allocation13], 4
    %s334 = int_to_ptr.vmem [resolvable:$true] %s333
    %337 = sst [smem:[#allocation46]] 256
    %s338 = scalar_lea.smem [#allocation46], 1
    %339 = sst [smem:[%s338]] 256
    %s340 = scalar_lea.smem [#allocation46], 2
    %341 = sst [smem:[%s340]] 2
    %s342 = scalar_lea.smem [#allocation46], 3
    %343 = sst [smem:[%s342]] 64
    %s344 = scalar_lea.smem [#allocation46], 4
    %345 = sst [smem:[%s344]] 128
    %s346 = scalar_lea.smem [#allocation46], 5
    %347 = sst [smem:[%s346]] 2
    %s348 = scalar_lea.smem [#allocation46], 6
    %349 = sst [smem:[%s348]] 128
    %s350 = scalar_lea.smem [#allocation46], 7
    %351 = sst [smem:[%s350]] 64
    %s352 = scalar_lea.smem [#allocation46], 8
    %353 = sst [smem:[%s352]] 4
    %355 = dma.general %s13, 16384, %s334, %s321, [#allocation45], [#allocation46], %s332, 0
    %v356 = vld [vmem:[#allocation15] sm:$0xff]
    %v357 = vld [vmem:[#allocation15 + $0x8] sm:$0xff]
    %s358 = smul.u32 4, 32
    %s359 = smul.u32 %s358, 8
    %s360 = sshll.u32 %s359, 4
    %361 = dma.done [#allocation14], %s360
    %v362 = vld [vmem:[#allocation2] sm:$0xff]
    %v363 = vld [vmem:[#allocation2 + $0x8] sm:$0xff]
    %v364 = vld [vmem:[#allocation2 + $0x10] sm:$0xff]
    %v365 = vld [vmem:[#allocation2 + $0x18] sm:$0xff]
    %v366 = vld [vmem:[#allocation2 + $0x20] sm:$0xff]
    %v367 = vld [vmem:[#allocation2 + $0x28] sm:$0xff]
    %v368 = vld [vmem:[#allocation2 + $0x30] sm:$0xff]
    %v369 = vld [vmem:[#allocation2 + $0x38] sm:$0xff]
    %v370 = vld [vmem:[#allocation2 + $0x40] sm:$0xff]
    %v371 = vld [vmem:[#allocation2 + $0x48] sm:$0xff]
    %v372 = vld [vmem:[#allocation2 + $0x50] sm:$0xff]
    %v373 = vld [vmem:[#allocation2 + $0x58] sm:$0xff]
    %v374 = vld [vmem:[#allocation2 + $0x60] sm:$0xff]
    %v375 = vld [vmem:[#allocation2 + $0x68] sm:$0xff]
    %v376 = vld [vmem:[#allocation2 + $0x70] sm:$0xff]
    %v377 = vld [vmem:[#allocation2 + $0x78] sm:$0xff]
    %v378 = vld [vmem:[#allocation2 + $0x80] sm:$0xff]
    %v379 = vld [vmem:[#allocation2 + $0x88] sm:$0xff]
    %v380 = vld [vmem:[#allocation2 + $0x90] sm:$0xff]
    %v381 = vld [vmem:[#allocation2 + $0x98] sm:$0xff]
    %v382 = vld [vmem:[#allocation2 + $0xa0] sm:$0xff]
    %v383 = vld [vmem:[#allocation2 + $0xa8] sm:$0xff]
    %v384 = vld [vmem:[#allocation2 + $0xb0] sm:$0xff]
    %v385 = vld [vmem:[#allocation2 + $0xb8] sm:$0xff]
    %v386 = vld [vmem:[#allocation2 + $0xc0] sm:$0xff]
    %v387 = vld [vmem:[#allocation2 + $0xc8] sm:$0xff]
    %v388 = vld [vmem:[#allocation2 + $0xd0] sm:$0xff]
    %v389 = vld [vmem:[#allocation2 + $0xd8] sm:$0xff]
    %v390 = vld [vmem:[#allocation2 + $0xe0] sm:$0xff]
    %v391 = vld [vmem:[#allocation2 + $0xe8] sm:$0xff]
    %v392 = vld [vmem:[#allocation2 + $0xf0] sm:$0xff]
    %v393 = vld [vmem:[#allocation2 + $0xf8] sm:$0xff]
    %v394 = vld [vmem:[#allocation2 + $0x100] sm:$0xff]
    %v395 = vld [vmem:[#allocation2 + $0x108] sm:$0xff]
    %v396 = vld [vmem:[#allocation2 + $0x110] sm:$0xff]
    %v397 = vld [vmem:[#allocation2 + $0x118] sm:$0xff]
    %v398 = vld [vmem:[#allocation2 + $0x120] sm:$0xff]
    %v399 = vld [vmem:[#allocation2 + $0x128] sm:$0xff]
    %v400 = vld [vmem:[#allocation2 + $0x130] sm:$0xff]
    %v401 = vld [vmem:[#allocation2 + $0x138] sm:$0xff]
    %v402 = vld [vmem:[#allocation2 + $0x140] sm:$0xff]
    %v403 = vld [vmem:[#allocation2 + $0x148] sm:$0xff]
    %v404 = vld [vmem:[#allocation2 + $0x150] sm:$0xff]
    %v405 = vld [vmem:[#allocation2 + $0x158] sm:$0xff]
    %v406 = vld [vmem:[#allocation2 + $0x160] sm:$0xff]
    %v407 = vld [vmem:[#allocation2 + $0x168] sm:$0xff]
    %v408 = vld [vmem:[#allocation2 + $0x170] sm:$0xff]
    %v409 = vld [vmem:[#allocation2 + $0x178] sm:$0xff]
    %v410 = vld [vmem:[#allocation2 + $0x180] sm:$0xff]
    %v411 = vld [vmem:[#allocation2 + $0x188] sm:$0xff]
    %v412 = vld [vmem:[#allocation2 + $0x190] sm:$0xff]
    %v413 = vld [vmem:[#allocation2 + $0x198] sm:$0xff]
    %v414 = vld [vmem:[#allocation2 + $0x1a0] sm:$0xff]
    %v415 = vld [vmem:[#allocation2 + $0x1a8] sm:$0xff]
    %v416 = vld [vmem:[#allocation2 + $0x1b0] sm:$0xff]
    %v417 = vld [vmem:[#allocation2 + $0x1b8] sm:$0xff]
    %v418 = vld [vmem:[#allocation2 + $0x1c0] sm:$0xff]
    %v419 = vld [vmem:[#allocation2 + $0x1c8] sm:$0xff]
    %v420 = vld [vmem:[#allocation2 + $0x1d0] sm:$0xff]
    %v421 = vld [vmem:[#allocation2 + $0x1d8] sm:$0xff]
    %v422 = vld [vmem:[#allocation2 + $0x1e0] sm:$0xff]
    %v423 = vld [vmem:[#allocation2 + $0x1e8] sm:$0xff]
    %v424 = vld [vmem:[#allocation2 + $0x1f0] sm:$0xff]
    %v425 = vld [vmem:[#allocation2 + $0x1f8] sm:$0xff]
    %v426 = vld [vmem:[#allocation2 + $0x200] sm:$0xff]
    %v427 = vld [vmem:[#allocation2 + $0x208] sm:$0xff]
    %v428 = vld [vmem:[#allocation2 + $0x210] sm:$0xff]
    %v429 = vld [vmem:[#allocation2 + $0x218] sm:$0xff]
    %v430 = vld [vmem:[#allocation2 + $0x220] sm:$0xff]
    %v431 = vld [vmem:[#allocation2 + $0x228] sm:$0xff]
    %v432 = vld [vmem:[#allocation2 + $0x230] sm:$0xff]
    %v433 = vld [vmem:[#allocation2 + $0x238] sm:$0xff]
    %v434 = vld [vmem:[#allocation2 + $0x240] sm:$0xff]
    %v435 = vld [vmem:[#allocation2 + $0x248] sm:$0xff]
    %v436 = vld [vmem:[#allocation2 + $0x250] sm:$0xff]
    %v437 = vld [vmem:[#allocation2 + $0x258] sm:$0xff]
    %v438 = vld [vmem:[#allocation2 + $0x260] sm:$0xff]
    %v439 = vld [vmem:[#allocation2 + $0x268] sm:$0xff]
    %v440 = vld [vmem:[#allocation2 + $0x270] sm:$0xff]
    %v441 = vld [vmem:[#allocation2 + $0x278] sm:$0xff]
    %v442 = vld [vmem:[#allocation2 + $0x280] sm:$0xff]
    %v443 = vld [vmem:[#allocation2 + $0x288] sm:$0xff]
    %v444 = vld [vmem:[#allocation2 + $0x290] sm:$0xff]
    %v445 = vld [vmem:[#allocation2 + $0x298] sm:$0xff]
    %v446 = vld [vmem:[#allocation2 + $0x2a0] sm:$0xff]
    %v447 = vld [vmem:[#allocation2 + $0x2a8] sm:$0xff]
    %v448 = vld [vmem:[#allocation2 + $0x2b0] sm:$0xff]
    %v449 = vld [vmem:[#allocation2 + $0x2b8] sm:$0xff]
    %v450 = vld [vmem:[#allocation2 + $0x2c0] sm:$0xff]
    %v451 = vld [vmem:[#allocation2 + $0x2c8] sm:$0xff]
    %v452 = vld [vmem:[#allocation2 + $0x2d0] sm:$0xff]
    %v453 = vld [vmem:[#allocation2 + $0x2d8] sm:$0xff]
    %v454 = vld [vmem:[#allocation2 + $0x2e0] sm:$0xff]
    %v455 = vld [vmem:[#allocation2 + $0x2e8] sm:$0xff]
    %v456 = vld [vmem:[#allocation2 + $0x2f0] sm:$0xff]
    %v457 = vld [vmem:[#allocation2 + $0x2f8] sm:$0xff]
    %v458 = vld [vmem:[#allocation2 + $0x300] sm:$0xff]
    %v459 = vld [vmem:[#allocation2 + $0x308] sm:$0xff]
    %v460 = vld [vmem:[#allocation2 + $0x310] sm:$0xff]
    %v461 = vld [vmem:[#allocation2 + $0x318] sm:$0xff]
    %v462 = vld [vmem:[#allocation2 + $0x320] sm:$0xff]
    %v463 = vld [vmem:[#allocation2 + $0x328] sm:$0xff]
    %v464 = vld [vmem:[#allocation2 + $0x330] sm:$0xff]
    %v465 = vld [vmem:[#allocation2 + $0x338] sm:$0xff]
    %v466 = vld [vmem:[#allocation2 + $0x340] sm:$0xff]
    %v467 = vld [vmem:[#allocation2 + $0x348] sm:$0xff]
    %v468 = vld [vmem:[#allocation2 + $0x350] sm:$0xff]
    %v469 = vld [vmem:[#allocation2 + $0x358] sm:$0xff]
    %v470 = vld [vmem:[#allocation2 + $0x360] sm:$0xff]
    %v471 = vld [vmem:[#allocation2 + $0x368] sm:$0xff]
    %v472 = vld [vmem:[#allocation2 + $0x370] sm:$0xff]
    %v473 = vld [vmem:[#allocation2 + $0x378] sm:$0xff]
    %v474 = vld [vmem:[#allocation2 + $0x380] sm:$0xff]
    %v475 = vld [vmem:[#allocation2 + $0x388] sm:$0xff]
    %v476 = vld [vmem:[#allocation2 + $0x390] sm:$0xff]
    %v477 = vld [vmem:[#allocation2 + $0x398] sm:$0xff]
    %v478 = vld [vmem:[#allocation2 + $0x3a0] sm:$0xff]
    %v479 = vld [vmem:[#allocation2 + $0x3a8] sm:$0xff]
    %v480 = vld [vmem:[#allocation2 + $0x3b0] sm:$0xff]
    %v481 = vld [vmem:[#allocation2 + $0x3b8] sm:$0xff]
    %v482 = vld [vmem:[#allocation2 + $0x3c0] sm:$0xff]
    %v483 = vld [vmem:[#allocation2 + $0x3c8] sm:$0xff]
    %v484 = vld [vmem:[#allocation2 + $0x3d0] sm:$0xff]
    %v485 = vld [vmem:[#allocation2 + $0x3d8] sm:$0xff]
    %v486 = vld [vmem:[#allocation2 + $0x3e0] sm:$0xff]
    %v487 = vld [vmem:[#allocation2 + $0x3e8] sm:$0xff]
    %v488 = vld [vmem:[#allocation2 + $0x3f0] sm:$0xff]
    %v489 = vld [vmem:[#allocation2 + $0x3f8] sm:$0xff]
    %v490 = vpack.c.bf16 %v356, %v356
    %v491 = vpack.c.bf16 %v357, %v357
    %v492 = vld [vmem:[#allocation18] ss:$8 sm:$0xf]
    %v493 = vld [vmem:[#allocation18] ss:$8 sm:$0xf0]
    %v494 = vor.u32 %v492, %v493
    %v496 = vlaneseq
    %v497 = vshrl.u32 %v496, 7
    %v498 = vsub.s32 0, %v497
    %v499 = vrot.slane %v494, %v498
    %v500 = vlaneseq
    %v501 = vshrl.u32 %v500, 7
    %v502 = vsub.s32 1, %v501
    %v503 = vrot.slane %v494, %v502
    %v504 = vlaneseq
    %v505 = vshrl.u32 %v504, 7
    %v506 = vsub.s32 2, %v505
    %v507 = vrot.slane %v494, %v506
    %v508 = vlaneseq
    %v509 = vshrl.u32 %v508, 7
    %v510 = vsub.s32 3, %v509
    %v511 = vrot.slane %v494, %v510
    %v512 = vlaneseq
    %v513 = vshrl.u32 %v512, 7
    %v514 = vsub.s32 4, %v513
    %v515 = vrot.slane %v494, %v514
    %v516 = vlaneseq
    %v517 = vshrl.u32 %v516, 7
    %v518 = vsub.s32 5, %v517
    %v519 = vrot.slane %v494, %v518
    %v520 = vlaneseq
    %v521 = vshrl.u32 %v520, 7
    %v522 = vsub.s32 6, %v521
    %v523 = vrot.slane %v494, %v522
    %v524 = vlaneseq
    %v525 = vshrl.u32 %v524, 7
    %v526 = vsub.s32 7, %v525
    %v527 = vrot.slane %v494, %v526
    %536 = vmatprep.subr.bf16.mxu0 %v363
    %537 = vmatpush1.bf16.msra.mxu0 %v362
    %538 = vmatprep.subr.bf16.mxu0 %v371
    %539 = vmatpush1.bf16.msra.mxu0 %v370
    %540 = vmatprep.subr.bf16.mxu0 %v379
    %541 = vmatpush1.bf16.msra.mxu0 %v378
    %542 = vmatprep.subr.bf16.mxu0 %v387
    %543 = vmatpush1.bf16.msra.mxu0 %v386
    %544 = vmatprep.subr.bf16.mxu0 %v395
    %545 = vmatpush1.bf16.msra.mxu0 %v394
    %546 = vmatprep.subr.bf16.mxu0 %v403
    %547 = vmatpush1.bf16.msra.mxu0 %v402
    %548 = vmatprep.subr.bf16.mxu0 %v411
    %549 = vmatpush1.bf16.msra.mxu0 %v410
    %550 = vmatprep.subr.bf16.mxu0 %v419
    %551 = vmatpush1.bf16.msra.mxu0 %v418
    %552 = vmatprep.subr.bf16.mxu0 %v427
    %553 = vmatpush1.bf16.msra.mxu0 %v426
    %554 = vmatprep.subr.bf16.mxu0 %v435
    %555 = vmatpush1.bf16.msra.mxu0 %v434
    %556 = vmatprep.subr.bf16.mxu0 %v443
    %557 = vmatpush1.bf16.msra.mxu0 %v442
    %558 = vmatprep.subr.bf16.mxu0 %v451
    %559 = vmatpush1.bf16.msra.mxu0 %v450
    %560 = vmatprep.subr.bf16.mxu0 %v459
    %561 = vmatpush1.bf16.msra.mxu0 %v458
    %562 = vmatprep.subr.bf16.mxu0 %v467
    %563 = vmatpush1.bf16.msra.mxu0 %v466
    %564 = vmatprep.subr.bf16.mxu0 %v475
    %565 = vmatpush1.bf16.msra.mxu0 %v474
    %566 = vmatprep.subr.bf16.mxu0 %v483
    %567 = vmatpush1.bf16.msra.mxu0 %v482
    %568 = vmatprep.mubr.bf16.mxu0 %v491
    %569 = vmatmul.mubr.bf16.gmra.mrb[0].mxu0 %v490
    %v570 = vpop.f32.mrb[0].mxu0
    %v571 = vadd.f32 %v499, %v570
    %v572 = vpop.f32.mrb[0].mxu0
    %v573 = vadd.f32 %v503, %v572
    %v574 = vpop.f32.mrb[0].mxu0
    %v575 = vpop.f32.mrb[0].mxu0
    %576 = vdwg.mxu0
    %577 = vmatprep.subr.bf16.mxu0 %v365
    %578 = vmatpush1.bf16.msra.mxu0 %v364
    %579 = vmatprep.subr.bf16.mxu0 %v373
    %580 = vmatpush1.bf16.msra.mxu0 %v372
    %581 = vmatprep.subr.bf16.mxu0 %v381
    %582 = vmatpush1.bf16.msra.mxu0 %v380
    %583 = vmatprep.subr.bf16.mxu0 %v389
    %584 = vmatpush1.bf16.msra.mxu0 %v388
    %585 = vmatprep.subr.bf16.mxu0 %v397
    %586 = vmatpush1.bf16.msra.mxu0 %v396
    %587 = vmatprep.subr.bf16.mxu0 %v405
    %588 = vmatpush1.bf16.msra.mxu0 %v404
    %589 = vmatprep.subr.bf16.mxu0 %v413
    %590 = vmatpush1.bf16.msra.mxu0 %v412
    %591 = vmatprep.subr.bf16.mxu0 %v421
    %592 = vmatpush1.bf16.msra.mxu0 %v420
    %593 = vmatprep.subr.bf16.mxu0 %v429
    %594 = vmatpush1.bf16.msra.mxu0 %v428
    %595 = vmatprep.subr.bf16.mxu0 %v437
    %596 = vmatpush1.bf16.msra.mxu0 %v436
    %597 = vmatprep.subr.bf16.mxu0 %v445
    %598 = vmatpush1.bf16.msra.mxu0 %v444
    %599 = vmatprep.subr.bf16.mxu0 %v453
    %600 = vmatpush1.bf16.msra.mxu0 %v452
    %601 = vmatprep.subr.bf16.mxu0 %v461
    %602 = vmatpush1.bf16.msra.mxu0 %v460
    %603 = vmatprep.subr.bf16.mxu0 %v469
    %604 = vmatpush1.bf16.msra.mxu0 %v468
    %605 = vmatprep.subr.bf16.mxu0 %v477
    %606 = vmatpush1.bf16.msra.mxu0 %v476
    %607 = vmatprep.subr.bf16.mxu0 %v485
    %608 = vmatpush1.bf16.msra.mxu0 %v484
    %609 = vmatprep.mubr.bf16.mxu0 %v491
    %610 = vmatmul.mubr.bf16.gmra.mrb[0].mxu0 %v490
    %v611 = vpop.f32.mrb[0].mxu0
    %v612 = vadd.f32 %v507, %v611
    %v613 = vpop.f32.mrb[0].mxu0
    %v614 = vadd.f32 %v511, %v613
    %v615 = vpop.f32.mrb[0].mxu0
    %v616 = vpop.f32.mrb[0].mxu0
    %617 = vdwg.mxu0
    %618 = vmatprep.subr.bf16.mxu0 %v367
    %619 = vmatpush1.bf16.msra.mxu0 %v366
    %620 = vmatprep.subr.bf16.mxu0 %v375
    %621 = vmatpush1.bf16.msra.mxu0 %v374
    %622 = vmatprep.subr.bf16.mxu0 %v383
    %623 = vmatpush1.bf16.msra.mxu0 %v382
    %624 = vmatprep.subr.bf16.mxu0 %v391
    %625 = vmatpush1.bf16.msra.mxu0 %v390
    %626 = vmatprep.subr.bf16.mxu0 %v399
    %627 = vmatpush1.bf16.msra.mxu0 %v398
    %628 = vmatprep.subr.bf16.mxu0 %v407
    %629 = vmatpush1.bf16.msra.mxu0 %v406
    %630 = vmatprep.subr.bf16.mxu0 %v415
    %631 = vmatpush1.bf16.msra.mxu0 %v414
    %632 = vmatprep.subr.bf16.mxu0 %v423
    %633 = vmatpush1.bf16.msra.mxu0 %v422
    %634 = vmatprep.subr.bf16.mxu0 %v431
    %635 = vmatpush1.bf16.msra.mxu0 %v430
    %636 = vmatprep.subr.bf16.mxu0 %v439
    %637 = vmatpush1.bf16.msra.mxu0 %v438
    %638 = vmatprep.subr.bf16.mxu0 %v447
    %639 = vmatpush1.bf16.msra.mxu0 %v446
    %640 = vmatprep.subr.bf16.mxu0 %v455
    %641 = vmatpush1.bf16.msra.mxu0 %v454
    %642 = vmatprep.subr.bf16.mxu0 %v463
    %643 = vmatpush1.bf16.msra.mxu0 %v462
    %644 = vmatprep.subr.bf16.mxu0 %v471
    %645 = vmatpush1.bf16.msra.mxu0 %v470
    %646 = vmatprep.subr.bf16.mxu0 %v479
    %647 = vmatpush1.bf16.msra.mxu0 %v478
    %648 = vmatprep.subr.bf16.mxu0 %v487
    %649 = vmatpush1.bf16.msra.mxu0 %v486
    %650 = vmatprep.mubr.bf16.mxu0 %v491
    %651 = vmatmul.mubr.bf16.gmra.mrb[0].mxu0 %v490
    %v652 = vpop.f32.mrb[0].mxu0
    %v653 = vadd.f32 %v515, %v652
    %v654 = vpop.f32.mrb[0].mxu0
    %v655 = vadd.f32 %v519, %v654
    %v656 = vpop.f32.mrb[0].mxu0
    %v657 = vpop.f32.mrb[0].mxu0
    %658 = vdwg.mxu0
    %659 = vmatprep.subr.bf16.mxu0 %v369
    %660 = vmatpush1.bf16.msra.mxu0 %v368
    %661 = vmatprep.subr.bf16.mxu0 %v377
    %662 = vmatpush1.bf16.msra.mxu0 %v376
    %663 = vmatprep.subr.bf16.mxu0 %v385
    %664 = vmatpush1.bf16.msra.mxu0 %v384
    %665 = vmatprep.subr.bf16.mxu0 %v393
    %666 = vmatpush1.bf16.msra.mxu0 %v392
    %667 = vmatprep.subr.bf16.mxu0 %v401
    %668 = vmatpush1.bf16.msra.mxu0 %v400
    %669 = vmatprep.subr.bf16.mxu0 %v409
    %670 = vmatpush1.bf16.msra.mxu0 %v408
    %671 = vmatprep.subr.bf16.mxu0 %v417
    %672 = vmatpush1.bf16.msra.mxu0 %v416
    %673 = vmatprep.subr.bf16.mxu0 %v425
    %674 = vmatpush1.bf16.msra.mxu0 %v424
    %675 = vmatprep.subr.bf16.mxu0 %v433
    %676 = vmatpush1.bf16.msra.mxu0 %v432
    %677 = vmatprep.subr.bf16.mxu0 %v441
    %678 = vmatpush1.bf16.msra.mxu0 %v440
    %679 = vmatprep.subr.bf16.mxu0 %v449
    %680 = vmatpush1.bf16.msra.mxu0 %v448
    %681 = vmatprep.subr.bf16.mxu0 %v457
    %682 = vmatpush1.bf16.msra.mxu0 %v456
    %683 = vmatprep.subr.bf16.mxu0 %v465
    %684 = vmatpush1.bf16.msra.mxu0 %v464
    %685 = vmatprep.subr.bf16.mxu0 %v473
    %686 = vmatpush1.bf16.msra.mxu0 %v472
    %687 = vmatprep.subr.bf16.mxu0 %v481
    %688 = vmatpush1.bf16.msra.mxu0 %v480
    %689 = vmatprep.subr.bf16.mxu0 %v489
    %690 = vmatpush1.bf16.msra.mxu0 %v488
    %691 = vmatprep.mubr.bf16.mxu0 %v491
    %692 = vmatmul.mubr.bf16.gmra.mrb[0].mxu0 %v490
    %v693 = vpop.f32.mrb[0].mxu0
    %v694 = vadd.f32 %v523, %v693
    %v695 = vpop.f32.mrb[0].mxu0
    %v696 = vadd.f32 %v527, %v695
    %v697 = vpop.f32.mrb[0].mxu0
    %v698 = vpop.f32.mrb[0].mxu0
    %699 = vdwg.mxu0
    %v700 = vmax.f32 %v571, 0.0
    %v701 = vmax.f32 %v573, 0.0
    %v702 = vmax.f32 %v612, 0.0
    %v703 = vmax.f32 %v614, 0.0
    %v704 = vmax.f32 %v653, 0.0
    %v705 = vmax.f32 %v655, 0.0
    %v706 = vmax.f32 %v694, 0.0
    %v707 = vmax.f32 %v696, 0.0
    %s708 = smul.u32 4, 128
    %s709 = smul.u32 %s708, 4
    %s710 = sshll.u32 %s709, 4
    %711 = dma.done %s86, %s710
    %v712 = vld [vmem:[#allocation3] sm:$0xff]
    %v713 = vld [vmem:[#allocation3 + $0x8] sm:$0xff]
    %v714 = vld [vmem:[#allocation3 + $0x10] sm:$0xff]
    %v715 = vld [vmem:[#allocation3 + $0x18] sm:$0xff]
    %v716 = vld [vmem:[#allocation3 + $0x20] sm:$0xff]
    %v717 = vld [vmem:[#allocation3 + $0x28] sm:$0xff]
    %v718 = vld [vmem:[#allocation3 + $0x30] sm:$0xff]
    %v719 = vld [vmem:[#allocation3 + $0x38] sm:$0xff]
    %v720 = vld [vmem:[#allocation3 + $0x40] sm:$0xff]
    %v721 = vld [vmem:[#allocation3 + $0x48] sm:$0xff]
    %v722 = vld [vmem:[#allocation3 + $0x50] sm:$0xff]
    %v723 = vld [vmem:[#allocation3 + $0x58] sm:$0xff]
    %v724 = vld [vmem:[#allocation3 + $0x60] sm:$0xff]
    %v725 = vld [vmem:[#allocation3 + $0x68] sm:$0xff]
    %v726 = vld [vmem:[#allocation3 + $0x70] sm:$0xff]
    %v727 = vld [vmem:[#allocation3 + $0x78] sm:$0xff]
    %v728 = vld [vmem:[#allocation3 + $0x80] sm:$0xff]
    %v729 = vld [vmem:[#allocation3 + $0x88] sm:$0xff]
    %v730 = vld [vmem:[#allocation3 + $0x90] sm:$0xff]
    %v731 = vld [vmem:[#allocation3 + $0x98] sm:$0xff]
    %v732 = vld [vmem:[#allocation3 + $0xa0] sm:$0xff]
    %v733 = vld [vmem:[#allocation3 + $0xa8] sm:$0xff]
    %v734 = vld [vmem:[#allocation3 + $0xb0] sm:$0xff]
    %v735 = vld [vmem:[#allocation3 + $0xb8] sm:$0xff]
    %v736 = vld [vmem:[#allocation3 + $0xc0] sm:$0xff]
    %v737 = vld [vmem:[#allocation3 + $0xc8] sm:$0xff]
    %v738 = vld [vmem:[#allocation3 + $0xd0] sm:$0xff]
    %v739 = vld [vmem:[#allocation3 + $0xd8] sm:$0xff]
    %v740 = vld [vmem:[#allocation3 + $0xe0] sm:$0xff]
    %v741 = vld [vmem:[#allocation3 + $0xe8] sm:$0xff]
    %v742 = vld [vmem:[#allocation3 + $0xf0] sm:$0xff]
    %v743 = vld [vmem:[#allocation3 + $0xf8] sm:$0xff]
    %v744 = vld [vmem:[#allocation3 + $0x100] sm:$0xff]
    %v745 = vld [vmem:[#allocation3 + $0x108] sm:$0xff]
    %v746 = vld [vmem:[#allocation3 + $0x110] sm:$0xff]
    %v747 = vld [vmem:[#allocation3 + $0x118] sm:$0xff]
    %v748 = vld [vmem:[#allocation3 + $0x120] sm:$0xff]
    %v749 = vld [vmem:[#allocation3 + $0x128] sm:$0xff]
    %v750 = vld [vmem:[#allocation3 + $0x130] sm:$0xff]
    %v751 = vld [vmem:[#allocation3 + $0x138] sm:$0xff]
    %v752 = vld [vmem:[#allocation3 + $0x140] sm:$0xff]
    %v753 = vld [vmem:[#allocation3 + $0x148] sm:$0xff]
    %v754 = vld [vmem:[#allocation3 + $0x150] sm:$0xff]
    %v755 = vld [vmem:[#allocation3 + $0x158] sm:$0xff]
    %v756 = vld [vmem:[#allocation3 + $0x160] sm:$0xff]
    %v757 = vld [vmem:[#allocation3 + $0x168] sm:$0xff]
    %v758 = vld [vmem:[#allocation3 + $0x170] sm:$0xff]
    %v759 = vld [vmem:[#allocation3 + $0x178] sm:$0xff]
    %v760 = vld [vmem:[#allocation3 + $0x180] sm:$0xff]
    %v761 = vld [vmem:[#allocation3 + $0x188] sm:$0xff]
    %v762 = vld [vmem:[#allocation3 + $0x190] sm:$0xff]
    %v763 = vld [vmem:[#allocation3 + $0x198] sm:$0xff]
    %v764 = vld [vmem:[#allocation3 + $0x1a0] sm:$0xff]
    %v765 = vld [vmem:[#allocation3 + $0x1a8] sm:$0xff]
    %v766 = vld [vmem:[#allocation3 + $0x1b0] sm:$0xff]
    %v767 = vld [vmem:[#allocation3 + $0x1b8] sm:$0xff]
    %v768 = vld [vmem:[#allocation3 + $0x1c0] sm:$0xff]
    %v769 = vld [vmem:[#allocation3 + $0x1c8] sm:$0xff]
    %v770 = vld [vmem:[#allocation3 + $0x1d0] sm:$0xff]
    %v771 = vld [vmem:[#allocation3 + $0x1d8] sm:$0xff]
    %v772 = vld [vmem:[#allocation3 + $0x1e0] sm:$0xff]
    %v773 = vld [vmem:[#allocation3 + $0x1e8] sm:$0xff]
    %v774 = vld [vmem:[#allocation3 + $0x1f0] sm:$0xff]
    %v775 = vld [vmem:[#allocation3 + $0x1f8] sm:$0xff]
    %v776 = vld [vmem:[#allocation3 + $0x200] sm:$0xff]
    %v777 = vld [vmem:[#allocation3 + $0x208] sm:$0xff]
    %v778 = vld [vmem:[#allocation3 + $0x210] sm:$0xff]
    %v779 = vld [vmem:[#allocation3 + $0x218] sm:$0xff]
    %v780 = vld [vmem:[#allocation3 + $0x220] sm:$0xff]
    %v781 = vld [vmem:[#allocation3 + $0x228] sm:$0xff]
    %v782 = vld [vmem:[#allocation3 + $0x230] sm:$0xff]
    %v783 = vld [vmem:[#allocation3 + $0x238] sm:$0xff]
    %v784 = vld [vmem:[#allocation3 + $0x240] sm:$0xff]
    %v785 = vld [vmem:[#allocation3 + $0x248] sm:$0xff]
    %v786 = vld [vmem:[#allocation3 + $0x250] sm:$0xff]
    %v787 = vld [vmem:[#allocation3 + $0x258] sm:$0xff]
    %v788 = vld [vmem:[#allocation3 + $0x260] sm:$0xff]
    %v789 = vld [vmem:[#allocation3 + $0x268] sm:$0xff]
    %v790 = vld [vmem:[#allocation3 + $0x270] sm:$0xff]
    %v791 = vld [vmem:[#allocation3 + $0x278] sm:$0xff]
    %v792 = vld [vmem:[#allocation3 + $0x280] sm:$0xff]
    %v793 = vld [vmem:[#allocation3 + $0x288] sm:$0xff]
    %v794 = vld [vmem:[#allocation3 + $0x290] sm:$0xff]
    %v795 = vld [vmem:[#allocation3 + $0x298] sm:$0xff]
    %v796 = vld [vmem:[#allocation3 + $0x2a0] sm:$0xff]
    %v797 = vld [vmem:[#allocation3 + $0x2a8] sm:$0xff]
    %v798 = vld [vmem:[#allocation3 + $0x2b0] sm:$0xff]
    %v799 = vld [vmem:[#allocation3 + $0x2b8] sm:$0xff]
    %v800 = vld [vmem:[#allocation3 + $0x2c0] sm:$0xff]
    %v801 = vld [vmem:[#allocation3 + $0x2c8] sm:$0xff]
    %v802 = vld [vmem:[#allocation3 + $0x2d0] sm:$0xff]
    %v803 = vld [vmem:[#allocation3 + $0x2d8] sm:$0xff]
    %v804 = vld [vmem:[#allocation3 + $0x2e0] sm:$0xff]
    %v805 = vld [vmem:[#allocation3 + $0x2e8] sm:$0xff]
    %v806 = vld [vmem:[#allocation3 + $0x2f0] sm:$0xff]
    %v807 = vld [vmem:[#allocation3 + $0x2f8] sm:$0xff]
    %v808 = vld [vmem:[#allocation3 + $0x300] sm:$0xff]
    %v809 = vld [vmem:[#allocation3 + $0x308] sm:$0xff]
    %v810 = vld [vmem:[#allocation3 + $0x310] sm:$0xff]
    %v811 = vld [vmem:[#allocation3 + $0x318] sm:$0xff]
    %v812 = vld [vmem:[#allocation3 + $0x320] sm:$0xff]
    %v813 = vld [vmem:[#allocation3 + $0x328] sm:$0xff]
    %v814 = vld [vmem:[#allocation3 + $0x330] sm:$0xff]
    %v815 = vld [vmem:[#allocation3 + $0x338] sm:$0xff]
    %v816 = vld [vmem:[#allocation3 + $0x340] sm:$0xff]
    %v817 = vld [vmem:[#allocation3 + $0x348] sm:$0xff]
    %v818 = vld [vmem:[#allocation3 + $0x350] sm:$0xff]
    %v819 = vld [vmem:[#allocation3 + $0x358] sm:$0xff]
    %v820 = vld [vmem:[#allocation3 + $0x360] sm:$0xff]
    %v821 = vld [vmem:[#allocation3 + $0x368] sm:$0xff]
    %v822 = vld [vmem:[#allocation3 + $0x370] sm:$0xff]
    %v823 = vld [vmem:[#allocation3 + $0x378] sm:$0xff]
    %v824 = vld [vmem:[#allocation3 + $0x380] sm:$0xff]
    %v825 = vld [vmem:[#allocation3 + $0x388] sm:$0xff]
    %v826 = vld [vmem:[#allocation3 + $0x390] sm:$0xff]
    %v827 = vld [vmem:[#allocation3 + $0x398] sm:$0xff]
    %v828 = vld [vmem:[#allocation3 + $0x3a0] sm:$0xff]
    %v829 = vld [vmem:[#allocation3 + $0x3a8] sm:$0xff]
    %v830 = vld [vmem:[#allocation3 + $0x3b0] sm:$0xff]
    %v831 = vld [vmem:[#allocation3 + $0x3b8] sm:$0xff]
    %v832 = vld [vmem:[#allocation3 + $0x3c0] sm:$0xff]
    %v833 = vld [vmem:[#allocation3 + $0x3c8] sm:$0xff]
    %v834 = vld [vmem:[#allocation3 + $0x3d0] sm:$0xff]
    %v835 = vld [vmem:[#allocation3 + $0x3d8] sm:$0xff]
    %v836 = vld [vmem:[#allocation3 + $0x3e0] sm:$0xff]
    %v837 = vld [vmem:[#allocation3 + $0x3e8] sm:$0xff]
    %v838 = vld [vmem:[#allocation3 + $0x3f0] sm:$0xff]
    %v839 = vld [vmem:[#allocation3 + $0x3f8] sm:$0xff]
    %v840 = vld [vmem:[#allocation3 + $0x400] sm:$0xff]
    %v841 = vld [vmem:[#allocation3 + $0x408] sm:$0xff]
    %v842 = vld [vmem:[#allocation3 + $0x410] sm:$0xff]
    %v843 = vld [vmem:[#allocation3 + $0x418] sm:$0xff]
    %v844 = vld [vmem:[#allocation3 + $0x420] sm:$0xff]
    %v845 = vld [vmem:[#allocation3 + $0x428] sm:$0xff]
    %v846 = vld [vmem:[#allocation3 + $0x430] sm:$0xff]
    %v847 = vld [vmem:[#allocation3 + $0x438] sm:$0xff]
    %v848 = vld [vmem:[#allocation3 + $0x440] sm:$0xff]
    %v849 = vld [vmem:[#allocation3 + $0x448] sm:$0xff]
    %v850 = vld [vmem:[#allocation3 + $0x450] sm:$0xff]
    %v851 = vld [vmem:[#allocation3 + $0x458] sm:$0xff]
    %v852 = vld [vmem:[#allocation3 + $0x460] sm:$0xff]
    %v853 = vld [vmem:[#allocation3 + $0x468] sm:$0xff]
    %v854 = vld [vmem:[#allocation3 + $0x470] sm:$0xff]
    %v855 = vld [vmem:[#allocation3 + $0x478] sm:$0xff]
    %v856 = vld [vmem:[#allocation3 + $0x480] sm:$0xff]
    %v857 = vld [vmem:[#allocation3 + $0x488] sm:$0xff]
    %v858 = vld [vmem:[#allocation3 + $0x490] sm:$0xff]
    %v859 = vld [vmem:[#allocation3 + $0x498] sm:$0xff]
    %v860 = vld [vmem:[#allocation3 + $0x4a0] sm:$0xff]
    %v861 = vld [vmem:[#allocation3 + $0x4a8] sm:$0xff]
    %v862 = vld [vmem:[#allocation3 + $0x4b0] sm:$0xff]
    %v863 = vld [vmem:[#allocation3 + $0x4b8] sm:$0xff]
    %v864 = vld [vmem:[#allocation3 + $0x4c0] sm:$0xff]
    %v865 = vld [vmem:[#allocation3 + $0x4c8] sm:$0xff]
    %v866 = vld [vmem:[#allocation3 + $0x4d0] sm:$0xff]
    %v867 = vld [vmem:[#allocation3 + $0x4d8] sm:$0xff]
    %v868 = vld [vmem:[#allocation3 + $0x4e0] sm:$0xff]
    %v869 = vld [vmem:[#allocation3 + $0x4e8] sm:$0xff]
    %v870 = vld [vmem:[#allocation3 + $0x4f0] sm:$0xff]
    %v871 = vld [vmem:[#allocation3 + $0x4f8] sm:$0xff]
    %v872 = vld [vmem:[#allocation3 + $0x500] sm:$0xff]
    %v873 = vld [vmem:[#allocation3 + $0x508] sm:$0xff]
    %v874 = vld [vmem:[#allocation3 + $0x510] sm:$0xff]
    %v875 = vld [vmem:[#allocation3 + $0x518] sm:$0xff]
    %v876 = vld [vmem:[#allocation3 + $0x520] sm:$0xff]
    %v877 = vld [vmem:[#allocation3 + $0x528] sm:$0xff]
    %v878 = vld [vmem:[#allocation3 + $0x530] sm:$0xff]
    %v879 = vld [vmem:[#allocation3 + $0x538] sm:$0xff]
    %v880 = vld [vmem:[#allocation3 + $0x540] sm:$0xff]
    %v881 = vld [vmem:[#allocation3 + $0x548] sm:$0xff]
    %v882 = vld [vmem:[#allocation3 + $0x550] sm:$0xff]
    %v883 = vld [vmem:[#allocation3 + $0x558] sm:$0xff]
    %v884 = vld [vmem:[#allocation3 + $0x560] sm:$0xff]
    %v885 = vld [vmem:[#allocation3 + $0x568] sm:$0xff]
    %v886 = vld [vmem:[#allocation3 + $0x570] sm:$0xff]
    %v887 = vld [vmem:[#allocation3 + $0x578] sm:$0xff]
    %v888 = vld [vmem:[#allocation3 + $0x580] sm:$0xff]
    %v889 = vld [vmem:[#allocation3 + $0x588] sm:$0xff]
    %v890 = vld [vmem:[#allocation3 + $0x590] sm:$0xff]
    %v891 = vld [vmem:[#allocation3 + $0x598] sm:$0xff]
    %v892 = vld [vmem:[#allocation3 + $0x5a0] sm:$0xff]
    %v893 = vld [vmem:[#allocation3 + $0x5a8] sm:$0xff]
    %v894 = vld [vmem:[#allocation3 + $0x5b0] sm:$0xff]
    %v895 = vld [vmem:[#allocation3 + $0x5b8] sm:$0xff]
    %v896 = vld [vmem:[#allocation3 + $0x5c0] sm:$0xff]
    %v897 = vld [vmem:[#allocation3 + $0x5c8] sm:$0xff]
    %v898 = vld [vmem:[#allocation3 + $0x5d0] sm:$0xff]
    %v899 = vld [vmem:[#allocation3 + $0x5d8] sm:$0xff]
    %v900 = vld [vmem:[#allocation3 + $0x5e0] sm:$0xff]
    %v901 = vld [vmem:[#allocation3 + $0x5e8] sm:$0xff]
    %v902 = vld [vmem:[#allocation3 + $0x5f0] sm:$0xff]
    %v903 = vld [vmem:[#allocation3 + $0x5f8] sm:$0xff]
    %v904 = vld [vmem:[#allocation3 + $0x600] sm:$0xff]
    %v905 = vld [vmem:[#allocation3 + $0x608] sm:$0xff]
    %v906 = vld [vmem:[#allocation3 + $0x610] sm:$0xff]
    %v907 = vld [vmem:[#allocation3 + $0x618] sm:$0xff]
    %v908 = vld [vmem:[#allocation3 + $0x620] sm:$0xff]
    %v909 = vld [vmem:[#allocation3 + $0x628] sm:$0xff]
    %v910 = vld [vmem:[#allocation3 + $0x630] sm:$0xff]
    %v911 = vld [vmem:[#allocation3 + $0x638] sm:$0xff]
    %v912 = vld [vmem:[#allocation3 + $0x640] sm:$0xff]
    %v913 = vld [vmem:[#allocation3 + $0x648] sm:$0xff]
    %v914 = vld [vmem:[#allocation3 + $0x650] sm:$0xff]
    %v915 = vld [vmem:[#allocation3 + $0x658] sm:$0xff]
    %v916 = vld [vmem:[#allocation3 + $0x660] sm:$0xff]
    %v917 = vld [vmem:[#allocation3 + $0x668] sm:$0xff]
    %v918 = vld [vmem:[#allocation3 + $0x670] sm:$0xff]
    %v919 = vld [vmem:[#allocation3 + $0x678] sm:$0xff]
    %v920 = vld [vmem:[#allocation3 + $0x680] sm:$0xff]
    %v921 = vld [vmem:[#allocation3 + $0x688] sm:$0xff]
    %v922 = vld [vmem:[#allocation3 + $0x690] sm:$0xff]
    %v923 = vld [vmem:[#allocation3 + $0x698] sm:$0xff]
    %v924 = vld [vmem:[#allocation3 + $0x6a0] sm:$0xff]
    %v925 = vld [vmem:[#allocation3 + $0x6a8] sm:$0xff]
    %v926 = vld [vmem:[#allocation3 + $0x6b0] sm:$0xff]
    %v927 = vld [vmem:[#allocation3 + $0x6b8] sm:$0xff]
    %v928 = vld [vmem:[#allocation3 + $0x6c0] sm:$0xff]
    %v929 = vld [vmem:[#allocation3 + $0x6c8] sm:$0xff]
    %v930 = vld [vmem:[#allocation3 + $0x6d0] sm:$0xff]
    %v931 = vld [vmem:[#allocation3 + $0x6d8] sm:$0xff]
    %v932 = vld [vmem:[#allocation3 + $0x6e0] sm:$0xff]
    %v933 = vld [vmem:[#allocation3 + $0x6e8] sm:$0xff]
    %v934 = vld [vmem:[#allocation3 + $0x6f0] sm:$0xff]
    %v935 = vld [vmem:[#allocation3 + $0x6f8] sm:$0xff]
    %v936 = vld [vmem:[#allocation3 + $0x700] sm:$0xff]
    %v937 = vld [vmem:[#allocation3 + $0x708] sm:$0xff]
    %v938 = vld [vmem:[#allocation3 + $0x710] sm:$0xff]
    %v939 = vld [vmem:[#allocation3 + $0x718] sm:$0xff]
    %v940 = vld [vmem:[#allocation3 + $0x720] sm:$0xff]
    %v941 = vld [vmem:[#allocation3 + $0x728] sm:$0xff]
    %v942 = vld [vmem:[#allocation3 + $0x730] sm:$0xff]
    %v943 = vld [vmem:[#allocation3 + $0x738] sm:$0xff]
    %v944 = vld [vmem:[#allocation3 + $0x740] sm:$0xff]
    %v945 = vld [vmem:[#allocation3 + $0x748] sm:$0xff]
    %v946 = vld [vmem:[#allocation3 + $0x750] sm:$0xff]
    %v947 = vld [vmem:[#allocation3 + $0x758] sm:$0xff]
    %v948 = vld [vmem:[#allocation3 + $0x760] sm:$0xff]
    %v949 = vld [vmem:[#allocation3 + $0x768] sm:$0xff]
    %v950 = vld [vmem:[#allocation3 + $0x770] sm:$0xff]
    %v951 = vld [vmem:[#allocation3 + $0x778] sm:$0xff]
    %v952 = vld [vmem:[#allocation3 + $0x780] sm:$0xff]
    %v953 = vld [vmem:[#allocation3 + $0x788] sm:$0xff]
    %v954 = vld [vmem:[#allocation3 + $0x790] sm:$0xff]
    %v955 = vld [vmem:[#allocation3 + $0x798] sm:$0xff]
    %v956 = vld [vmem:[#allocation3 + $0x7a0] sm:$0xff]
    %v957 = vld [vmem:[#allocation3 + $0x7a8] sm:$0xff]
    %v958 = vld [vmem:[#allocation3 + $0x7b0] sm:$0xff]
    %v959 = vld [vmem:[#allocation3 + $0x7b8] sm:$0xff]
    %v960 = vld [vmem:[#allocation3 + $0x7c0] sm:$0xff]
    %v961 = vld [vmem:[#allocation3 + $0x7c8] sm:$0xff]
    %v962 = vld [vmem:[#allocation3 + $0x7d0] sm:$0xff]
    %v963 = vld [vmem:[#allocation3 + $0x7d8] sm:$0xff]
    %v964 = vld [vmem:[#allocation3 + $0x7e0] sm:$0xff]
    %v965 = vld [vmem:[#allocation3 + $0x7e8] sm:$0xff]
    %v966 = vld [vmem:[#allocation3 + $0x7f0] sm:$0xff]
    %v967 = vld [vmem:[#allocation3 + $0x7f8] sm:$0xff]
    %v968 = vpack.c.bf16 %v700, %v700
    %v969 = vpack.c.bf16 %v701, %v701
    %v970 = vpack.c.bf16 %v702, %v702
    %v971 = vpack.c.bf16 %v703, %v703
    %v972 = vpack.c.bf16 %v704, %v704
    %v973 = vpack.c.bf16 %v705, %v705
    %v974 = vpack.c.bf16 %v706, %v706
    %v975 = vpack.c.bf16 %v707, %v707
    %s976 = scalar_lea.vmem [#allocation18], 1
    %v977 = vld [vmem:[%s976] ss:$8 sm:$0xf]
    %v979 = vlaneseq
    %v980 = vshrl.u32 %v979, 7
    %v981 = vsub.s32 0, %v980
    %v982 = vrot.slane %v977, %v981
    %v983 = vlaneseq
    %v984 = vshrl.u32 %v983, 7
    %v985 = vsub.s32 1, %v984
    %v986 = vrot.slane %v977, %v985
    %v987 = vlaneseq
    %v988 = vshrl.u32 %v987, 7
    %v989 = vsub.s32 2, %v988
    %v990 = vrot.slane %v977, %v989
    %v991 = vlaneseq
    %v992 = vshrl.u32 %v991, 7
    %v993 = vsub.s32 3, %v992
    %v994 = vrot.slane %v977, %v993
    %999 = vmatprep.subr.bf16.mxu0 %v713
    %1000 = vmatpush1.bf16.msra.mxu0 %v712
    %1001 = vmatprep.subr.bf16.mxu0 %v717
    %1002 = vmatpush1.bf16.msra.mxu0 %v716
    %1003 = vmatprep.subr.bf16.mxu0 %v721
    %1004 = vmatpush1.bf16.msra.mxu0 %v720
    %1005 = vmatprep.subr.bf16.mxu0 %v725
    %1006 = vmatpush1.bf16.msra.mxu0 %v724
    %1007 = vmatprep.subr.bf16.mxu0 %v729
    %1008 = vmatpush1.bf16.msra.mxu0 %v728
    %1009 = vmatprep.subr.bf16.mxu0 %v733
    %1010 = vmatpush1.bf16.msra.mxu0 %v732
    %1011 = vmatprep.subr.bf16.mxu0 %v737
    %1012 = vmatpush1.bf16.msra.mxu0 %v736
    %1013 = vmatprep.subr.bf16.mxu0 %v741
    %1014 = vmatpush1.bf16.msra.mxu0 %v740
    %1015 = vmatprep.subr.bf16.mxu0 %v745
    %1016 = vmatpush1.bf16.msra.mxu0 %v744
    %1017 = vmatprep.subr.bf16.mxu0 %v749
    %1018 = vmatpush1.bf16.msra.mxu0 %v748
    %1019 = vmatprep.subr.bf16.mxu0 %v753
    %1020 = vmatpush1.bf16.msra.mxu0 %v752
    %1021 = vmatprep.subr.bf16.mxu0 %v757
    %1022 = vmatpush1.bf16.msra.mxu0 %v756
    %1023 = vmatprep.subr.bf16.mxu0 %v761
    %1024 = vmatpush1.bf16.msra.mxu0 %v760
    %1025 = vmatprep.subr.bf16.mxu0 %v765
    %1026 = vmatpush1.bf16.msra.mxu0 %v764
    %1027 = vmatprep.subr.bf16.mxu0 %v769
    %1028 = vmatpush1.bf16.msra.mxu0 %v768
    %1029 = vmatprep.subr.bf16.mxu0 %v773
    %1030 = vmatpush1.bf16.msra.mxu0 %v772
    %1031 = vmatprep.mubr.bf16.mxu0 %v969
    %1032 = vmatmul.mubr.bf16.gmra.mrb[0].mxu0 %v968
    %v1033 = vpop.f32.mrb[0].mxu0
    %v1034 = vadd.f32 %v982, %v1033
    %v1035 = vpop.f32.mrb[0].mxu0
    %v1036 = vadd.f32 %v986, %v1035
    %v1037 = vpop.f32.mrb[0].mxu0
    %v1038 = vpop.f32.mrb[0].mxu0
    %1039 = vdwg.mxu0
    %1040 = vmatprep.subr.bf16.mxu0 %v777
    %1041 = vmatpush1.bf16.msra.mxu0 %v776
    %1042 = vmatprep.subr.bf16.mxu0 %v781
    %1043 = vmatpush1.bf16.msra.mxu0 %v780
    %1044 = vmatprep.subr.bf16.mxu0 %v785
    %1045 = vmatpush1.bf16.msra.mxu0 %v784
    %1046 = vmatprep.subr.bf16.mxu0 %v789
    %1047 = vmatpush1.bf16.msra.mxu0 %v788
    %1048 = vmatprep.subr.bf16.mxu0 %v793
    %1049 = vmatpush1.bf16.msra.mxu0 %v792
    %1050 = vmatprep.subr.bf16.mxu0 %v797
    %1051 = vmatpush1.bf16.msra.mxu0 %v796
    %1052 = vmatprep.subr.bf16.mxu0 %v801
    %1053 = vmatpush1.bf16.msra.mxu0 %v800
    %1054 = vmatprep.subr.bf16.mxu0 %v805
    %1055 = vmatpush1.bf16.msra.mxu0 %v804
    %1056 = vmatprep.subr.bf16.mxu0 %v809
    %1057 = vmatpush1.bf16.msra.mxu0 %v808
    %1058 = vmatprep.subr.bf16.mxu0 %v813
    %1059 = vmatpush1.bf16.msra.mxu0 %v812
    %1060 = vmatprep.subr.bf16.mxu0 %v817
    %1061 = vmatpush1.bf16.msra.mxu0 %v816
    %1062 = vmatprep.subr.bf16.mxu0 %v821
    %1063 = vmatpush1.bf16.msra.mxu0 %v820
    %1064 = vmatprep.subr.bf16.mxu0 %v825
    %1065 = vmatpush1.bf16.msra.mxu0 %v824
    %1066 = vmatprep.subr.bf16.mxu0 %v829
    %1067 = vmatpush1.bf16.msra.mxu0 %v828
    %1068 = vmatprep.subr.bf16.mxu0 %v833
    %1069 = vmatpush1.bf16.msra.mxu0 %v832
    %1070 = vmatprep.subr.bf16.mxu0 %v837
    %1071 = vmatpush1.bf16.msra.mxu0 %v836
    %1072 = vmatprep.mubr.bf16.mxu0 %v971
    %1073 = vmatmul.mubr.bf16.gmra.mrb[0].mxu0 %v970
    %v1074 = vpop.f32.mrb[0].mxu0
    %v1075 = vadd.f32 %v1034, %v1074
    %v1076 = vpop.f32.mrb[0].mxu0
    %v1077 = vadd.f32 %v1036, %v1076
    %v1078 = vpop.f32.mrb[0].mxu0
    %v1079 = vpop.f32.mrb[0].mxu0
    %1080 = vdwg.mxu0
    %1081 = vmatprep.subr.bf16.mxu0 %v841
    %1082 = vmatpush1.bf16.msra.mxu0 %v840
    %1083 = vmatprep.subr.bf16.mxu0 %v845
    %1084 = vmatpush1.bf16.msra.mxu0 %v844
    %1085 = vmatprep.subr.bf16.mxu0 %v849
    %1086 = vmatpush1.bf16.msra.mxu0 %v848
    %1087 = vmatprep.subr.bf16.mxu0 %v853
    %1088 = vmatpush1.bf16.msra.mxu0 %v852
    %1089 = vmatprep.subr.bf16.mxu0 %v857
    %1090 = vmatpush1.bf16.msra.mxu0 %v856
    %1091 = vmatprep.subr.bf16.mxu0 %v861
    %1092 = vmatpush1.bf16.msra.mxu0 %v860
    %1093 = vmatprep.subr.bf16.mxu0 %v865
    %1094 = vmatpush1.bf16.msra.mxu0 %v864
    %1095 = vmatprep.subr.bf16.mxu0 %v869
    %1096 = vmatpush1.bf16.msra.mxu0 %v868
    %1097 = vmatprep.subr.bf16.mxu0 %v873
    %1098 = vmatpush1.bf16.msra.mxu0 %v872
    %1099 = vmatprep.subr.bf16.mxu0 %v877
    %1100 = vmatpush1.bf16.msra.mxu0 %v876
    %1101 = vmatprep.subr.bf16.mxu0 %v881
    %1102 = vmatpush1.bf16.msra.mxu0 %v880
    %1103 = vmatprep.subr.bf16.mxu0 %v885
    %1104 = vmatpush1.bf16.msra.mxu0 %v884
    %1105 = vmatprep.subr.bf16.mxu0 %v889
    %1106 = vmatpush1.bf16.msra.mxu0 %v888
    %1107 = vmatprep.subr.bf16.mxu0 %v893
    %1108 = vmatpush1.bf16.msra.mxu0 %v892
    %1109 = vmatprep.subr.bf16.mxu0 %v897
    %1110 = vmatpush1.bf16.msra.mxu0 %v896
    %1111 = vmatprep.subr.bf16.mxu0 %v901
    %1112 = vmatpush1.bf16.msra.mxu0 %v900
    %1113 = vmatprep.mubr.bf16.mxu0 %v973
    %1114 = vmatmul.mubr.bf16.gmra.mrb[0].mxu0 %v972
    %v1115 = vpop.f32.mrb[0].mxu0
    %v1116 = vadd.f32 %v1075, %v1115
    %v1117 = vpop.f32.mrb[0].mxu0
    %v1118 = vadd.f32 %v1077, %v1117
    %v1119 = vpop.f32.mrb[0].mxu0
    %v1120 = vpop.f32.mrb[0].mxu0
    %1121 = vdwg.mxu0
    %1122 = vmatprep.subr.bf16.mxu0 %v905
    %1123 = vmatpush1.bf16.msra.mxu0 %v904
    %1124 = vmatprep.subr.bf16.mxu0 %v909
    %1125 = vmatpush1.bf16.msra.mxu0 %v908
    %1126 = vmatprep.subr.bf16.mxu0 %v913
    %1127 = vmatpush1.bf16.msra.mxu0 %v912
    %1128 = vmatprep.subr.bf16.mxu0 %v917
    %1129 = vmatpush1.bf16.msra.mxu0 %v916
    %1130 = vmatprep.subr.bf16.mxu0 %v921
    %1131 = vmatpush1.bf16.msra.mxu0 %v920
    %1132 = vmatprep.subr.bf16.mxu0 %v925
    %1133 = vmatpush1.bf16.msra.mxu0 %v924
    %1134 = vmatprep.subr.bf16.mxu0 %v929
    %1135 = vmatpush1.bf16.msra.mxu0 %v928
    %1136 = vmatprep.subr.bf16.mxu0 %v933
    %1137 = vmatpush1.bf16.msra.mxu0 %v932
    %1138 = vmatprep.subr.bf16.mxu0 %v937
    %1139 = vmatpush1.bf16.msra.mxu0 %v936
    %1140 = vmatprep.subr.bf16.mxu0 %v941
    %1141 = vmatpush1.bf16.msra.mxu0 %v940
    %1142 = vmatprep.subr.bf16.mxu0 %v945
    %1143 = vmatpush1.bf16.msra.mxu0 %v944
    %1144 = vmatprep.subr.bf16.mxu0 %v949
    %1145 = vmatpush1.bf16.msra.mxu0 %v948
    %1146 = vmatprep.subr.bf16.mxu0 %v953
    %1147 = vmatpush1.bf16.msra.mxu0 %v952
    %1148 = vmatprep.subr.bf16.mxu0 %v957
    %1149 = vmatpush1.bf16.msra.mxu0 %v956
    %1150 = vmatprep.subr.bf16.mxu0 %v961
    %1151 = vmatpush1.bf16.msra.mxu0 %v960
    %1152 = vmatprep.subr.bf16.mxu0 %v965
    %1153 = vmatpush1.bf16.msra.mxu0 %v964
    %1154 = vmatprep.mubr.bf16.mxu0 %v975
    %1155 = vmatmul.mubr.bf16.gmra.mrb[0].mxu0 %v974
    %v1156 = vpop.f32.mrb[0].mxu0
    %v1157 = vadd.f32 %v1116, %v1156
    %v1158 = vpop.f32.mrb[0].mxu0
    %v1159 = vadd.f32 %v1118, %v1158
    %v1160 = vpop.f32.mrb[0].mxu0
    %v1161 = vpop.f32.mrb[0].mxu0
    %1162 = vdwg.mxu0
    %1163 = vmatprep.subr.bf16.mxu0 %v715
    %1164 = vmatpush1.bf16.msra.mxu0 %v714
    %1165 = vmatprep.subr.bf16.mxu0 %v719
    %1166 = vmatpush1.bf16.msra.mxu0 %v718
    %1167 = vmatprep.subr.bf16.mxu0 %v723
    %1168 = vmatpush1.bf16.msra.mxu0 %v722
    %1169 = vmatprep.subr.bf16.mxu0 %v727
    %1170 = vmatpush1.bf16.msra.mxu0 %v726
    %1171 = vmatprep.subr.bf16.mxu0 %v731
    %1172 = vmatpush1.bf16.msra.mxu0 %v730
    %1173 = vmatprep.subr.bf16.mxu0 %v735
    %1174 = vmatpush1.bf16.msra.mxu0 %v734
    %1175 = vmatprep.subr.bf16.mxu0 %v739
    %1176 = vmatpush1.bf16.msra.mxu0 %v738
    %1177 = vmatprep.subr.bf16.mxu0 %v743
    %1178 = vmatpush1.bf16.msra.mxu0 %v742
    %1179 = vmatprep.subr.bf16.mxu0 %v747
    %1180 = vmatpush1.bf16.msra.mxu0 %v746
    %1181 = vmatprep.subr.bf16.mxu0 %v751
    %1182 = vmatpush1.bf16.msra.mxu0 %v750
    %1183 = vmatprep.subr.bf16.mxu0 %v755
    %1184 = vmatpush1.bf16.msra.mxu0 %v754
    %1185 = vmatprep.subr.bf16.mxu0 %v759
    %1186 = vmatpush1.bf16.msra.mxu0 %v758
    %1187 = vmatprep.subr.bf16.mxu0 %v763
    %1188 = vmatpush1.bf16.msra.mxu0 %v762
    %1189 = vmatprep.subr.bf16.mxu0 %v767
    %1190 = vmatpush1.bf16.msra.mxu0 %v766
    %1191 = vmatprep.subr.bf16.mxu0 %v771
    %1192 = vmatpush1.bf16.msra.mxu0 %v770
    %1193 = vmatprep.subr.bf16.mxu0 %v775
    %1194 = vmatpush1.bf16.msra.mxu0 %v774
    %1195 = vmatprep.mubr.bf16.mxu0 %v969
    %1196 = vmatmul.mubr.bf16.gmra.mrb[0].mxu0 %v968
    %v1197 = vpop.f32.mrb[0].mxu0
    %v1198 = vadd.f32 %v990, %v1197
    %v1199 = vpop.f32.mrb[0].mxu0
    %v1200 = vadd.f32 %v994, %v1199
    %v1201 = vpop.f32.mrb[0].mxu0
    %v1202 = vpop.f32.mrb[0].mxu0
    %1203 = vdwg.mxu0
    %1204 = vmatprep.subr.bf16.mxu0 %v779
    %1205 = vmatpush1.bf16.msra.mxu0 %v778
    %1206 = vmatprep.subr.bf16.mxu0 %v783
    %1207 = vmatpush1.bf16.msra.mxu0 %v782
    %1208 = vmatprep.subr.bf16.mxu0 %v787
    %1209 = vmatpush1.bf16.msra.mxu0 %v786
    %1210 = vmatprep.subr.bf16.mxu0 %v791
    %1211 = vmatpush1.bf16.msra.mxu0 %v790
    %1212 = vmatprep.subr.bf16.mxu0 %v795
    %1213 = vmatpush1.bf16.msra.mxu0 %v794
    %1214 = vmatprep.subr.bf16.mxu0 %v799
    %1215 = vmatpush1.bf16.msra.mxu0 %v798
    %1216 = vmatprep.subr.bf16.mxu0 %v803
    %1217 = vmatpush1.bf16.msra.mxu0 %v802
    %1218 = vmatprep.subr.bf16.mxu0 %v807
    %1219 = vmatpush1.bf16.msra.mxu0 %v806
    %1220 = vmatprep.subr.bf16.mxu0 %v811
    %1221 = vmatpush1.bf16.msra.mxu0 %v810
    %1222 = vmatprep.subr.bf16.mxu0 %v815
    %1223 = vmatpush1.bf16.msra.mxu0 %v814
    %1224 = vmatprep.subr.bf16.mxu0 %v819
    %1225 = vmatpush1.bf16.msra.mxu0 %v818
    %1226 = vmatprep.subr.bf16.mxu0 %v823
    %1227 = vmatpush1.bf16.msra.mxu0 %v822
    %1228 = vmatprep.subr.bf16.mxu0 %v827
    %1229 = vmatpush1.bf16.msra.mxu0 %v826
    %1230 = vmatprep.subr.bf16.mxu0 %v831
    %1231 = vmatpush1.bf16.msra.mxu0 %v830
    %1232 = vmatprep.subr.bf16.mxu0 %v835
    %1233 = vmatpush1.bf16.msra.mxu0 %v834
    %1234 = vmatprep.subr.bf16.mxu0 %v839
    %1235 = vmatpush1.bf16.msra.mxu0 %v838
    %1236 = vmatprep.mubr.bf16.mxu0 %v971
    %1237 = vmatmul.mubr.bf16.gmra.mrb[0].mxu0 %v970
    %v1238 = vpop.f32.mrb[0].mxu0
    %v1239 = vadd.f32 %v1198, %v1238
    %v1240 = vpop.f32.mrb[0].mxu0
    %v1241 = vadd.f32 %v1200, %v1240
    %v1242 = vpop.f32.mrb[0].mxu0
    %v1243 = vpop.f32.mrb[0].mxu0
    %1244 = vdwg.mxu0
    %1245 = vmatprep.subr.bf16.mxu0 %v843
    %1246 = vmatpush1.bf16.msra.mxu0 %v842
    %1247 = vmatprep.subr.bf16.mxu0 %v847
    %1248 = vmatpush1.bf16.msra.mxu0 %v846
    %1249 = vmatprep.subr.bf16.mxu0 %v851
    %1250 = vmatpush1.bf16.msra.mxu0 %v850
    %1251 = vmatprep.subr.bf16.mxu0 %v855
    %1252 = vmatpush1.bf16.msra.mxu0 %v854
    %1253 = vmatprep.subr.bf16.mxu0 %v859
    %1254 = vmatpush1.bf16.msra.mxu0 %v858
    %1255 = vmatprep.subr.bf16.mxu0 %v863
    %1256 = vmatpush1.bf16.msra.mxu0 %v862
    %1257 = vmatprep.subr.bf16.mxu0 %v867
    %1258 = vmatpush1.bf16.msra.mxu0 %v866
    %1259 = vmatprep.subr.bf16.mxu0 %v871
    %1260 = vmatpush1.bf16.msra.mxu0 %v870
    %1261 = vmatprep.subr.bf16.mxu0 %v875
    %1262 = vmatpush1.bf16.msra.mxu0 %v874
    %1263 = vmatprep.subr.bf16.mxu0 %v879
    %1264 = vmatpush1.bf16.msra.mxu0 %v878
    %1265 = vmatprep.subr.bf16.mxu0 %v883
    %1266 = vmatpush1.bf16.msra.mxu0 %v882
    %1267 = vmatprep.subr.bf16.mxu0 %v887
    %1268 = vmatpush1.bf16.msra.mxu0 %v886
    %1269 = vmatprep.subr.bf16.mxu0 %v891
    %1270 = vmatpush1.bf16.msra.mxu0 %v890
    %1271 = vmatprep.subr.bf16.mxu0 %v895
    %1272 = vmatpush1.bf16.msra.mxu0 %v894
    %1273 = vmatprep.subr.bf16.mxu0 %v899
    %1274 = vmatpush1.bf16.msra.mxu0 %v898
    %1275 = vmatprep.subr.bf16.mxu0 %v903
    %1276 = vmatpush1.bf16.msra.mxu0 %v902
    %1277 = vmatprep.mubr.bf16.mxu0 %v973
    %1278 = vmatmul.mubr.bf16.gmra.mrb[0].mxu0 %v972
    %v1279 = vpop.f32.mrb[0].mxu0
    %v1280 = vadd.f32 %v1239, %v1279
    %v1281 = vpop.f32.mrb[0].mxu0
    %v1282 = vadd.f32 %v1241, %v1281
    %v1283 = vpop.f32.mrb[0].mxu0
    %v1284 = vpop.f32.mrb[0].mxu0
    %1285 = vdwg.mxu0
    %1286 = vmatprep.subr.bf16.mxu0 %v907
    %1287 = vmatpush1.bf16.msra.mxu0 %v906
    %1288 = vmatprep.subr.bf16.mxu0 %v911
    %1289 = vmatpush1.bf16.msra.mxu0 %v910
    %1290 = vmatprep.subr.bf16.mxu0 %v915
    %1291 = vmatpush1.bf16.msra.mxu0 %v914
    %1292 = vmatprep.subr.bf16.mxu0 %v919
    %1293 = vmatpush1.bf16.msra.mxu0 %v918
    %1294 = vmatprep.subr.bf16.mxu0 %v923
    %1295 = vmatpush1.bf16.msra.mxu0 %v922
    %1296 = vmatprep.subr.bf16.mxu0 %v927
    %1297 = vmatpush1.bf16.msra.mxu0 %v926
    %1298 = vmatprep.subr.bf16.mxu0 %v931
    %1299 = vmatpush1.bf16.msra.mxu0 %v930
    %1300 = vmatprep.subr.bf16.mxu0 %v935
    %1301 = vmatpush1.bf16.msra.mxu0 %v934
    %1302 = vmatprep.subr.bf16.mxu0 %v939
    %1303 = vmatpush1.bf16.msra.mxu0 %v938
    %1304 = vmatprep.subr.bf16.mxu0 %v943
    %1305 = vmatpush1.bf16.msra.mxu0 %v942
    %1306 = vmatprep.subr.bf16.mxu0 %v947
    %1307 = vmatpush1.bf16.msra.mxu0 %v946
    %1308 = vmatprep.subr.bf16.mxu0 %v951
    %1309 = vmatpush1.bf16.msra.mxu0 %v950
    %1310 = vmatprep.subr.bf16.mxu0 %v955
    %1311 = vmatpush1.bf16.msra.mxu0 %v954
    %1312 = vmatprep.subr.bf16.mxu0 %v959
    %1313 = vmatpush1.bf16.msra.mxu0 %v958
    %1314 = vmatprep.subr.bf16.mxu0 %v963
    %1315 = vmatpush1.bf16.msra.mxu0 %v962
    %1316 = vmatprep.subr.bf16.mxu0 %v967
    %1317 = vmatpush1.bf16.msra.mxu0 %v966
    %1318 = vmatprep.mubr.bf16.mxu0 %v975
    %1319 = vmatmul.mubr.bf16.gmra.mrb[0].mxu0 %v974
    %v1320 = vpop.f32.mrb[0].mxu0
    %v1321 = vadd.f32 %v1280, %v1320
    %v1322 = vpop.f32.mrb[0].mxu0
    %v1323 = vadd.f32 %v1282, %v1322
    %v1324 = vpop.f32.mrb[0].mxu0
    %v1325 = vpop.f32.mrb[0].mxu0
    %1326 = vdwg.mxu0
    %v1327 = vmax.f32 %v1157, 0.0
    %v1328 = vmax.f32 %v1159, 0.0
    %v1329 = vmax.f32 %v1321, 0.0
    %v1330 = vmax.f32 %v1323, 0.0
    %s1331 = smul.u32 4, 64
    %s1332 = smul.u32 %s1331, 2
    %s1333 = sshll.u32 %s1332, 4
    %1334 = dma.done %s121, %s1333
    %v1335 = vld [vmem:[#allocation4] sm:$0xff]
    %v1336 = vld [vmem:[#allocation4 + $0x8] sm:$0xff]
    %v1337 = vld [vmem:[#allocation4 + $0x10] sm:$0xff]
    %v1338 = vld [vmem:[#allocation4 + $0x18] sm:$0xff]
    %v1339 = vld [vmem:[#allocation4 + $0x20] sm:$0xff]
    %v1340 = vld [vmem:[#allocation4 + $0x28] sm:$0xff]
    %v1341 = vld [vmem:[#allocation4 + $0x30] sm:$0xff]
    %v1342 = vld [vmem:[#allocation4 + $0x38] sm:$0xff]
    %v1343 = vld [vmem:[#allocation4 + $0x40] sm:$0xff]
    %v1344 = vld [vmem:[#allocation4 + $0x48] sm:$0xff]
    %v1345 = vld [vmem:[#allocation4 + $0x50] sm:$0xff]
    %v1346 = vld [vmem:[#allocation4 + $0x58] sm:$0xff]
    %v1347 = vld [vmem:[#allocation4 + $0x60] sm:$0xff]
    %v1348 = vld [vmem:[#allocation4 + $0x68] sm:$0xff]
    %v1349 = vld [vmem:[#allocation4 + $0x70] sm:$0xff]
    %v1350 = vld [vmem:[#allocation4 + $0x78] sm:$0xff]
    %v1351 = vld [vmem:[#allocation4 + $0x80] sm:$0xff]
    %v1352 = vld [vmem:[#allocation4 + $0x88] sm:$0xff]
    %v1353 = vld [vmem:[#allocation4 + $0x90] sm:$0xff]
    %v1354 = vld [vmem:[#allocation4 + $0x98] sm:$0xff]
    %v1355 = vld [vmem:[#allocation4 + $0xa0] sm:$0xff]
    %v1356 = vld [vmem:[#allocation4 + $0xa8] sm:$0xff]
    %v1357 = vld [vmem:[#allocation4 + $0xb0] sm:$0xff]
    %v1358 = vld [vmem:[#allocation4 + $0xb8] sm:$0xff]
    %v1359 = vld [vmem:[#allocation4 + $0xc0] sm:$0xff]
    %v1360 = vld [vmem:[#allocation4 + $0xc8] sm:$0xff]
    %v1361 = vld [vmem:[#allocation4 + $0xd0] sm:$0xff]
    %v1362 = vld [vmem:[#allocation4 + $0xd8] sm:$0xff]
    %v1363 = vld [vmem:[#allocation4 + $0xe0] sm:$0xff]
    %v1364 = vld [vmem:[#allocation4 + $0xe8] sm:$0xff]
    %v1365 = vld [vmem:[#allocation4 + $0xf0] sm:$0xff]
    %v1366 = vld [vmem:[#allocation4 + $0xf8] sm:$0xff]
    %v1367 = vld [vmem:[#allocation4 + $0x100] sm:$0xff]
    %v1368 = vld [vmem:[#allocation4 + $0x108] sm:$0xff]
    %v1369 = vld [vmem:[#allocation4 + $0x110] sm:$0xff]
    %v1370 = vld [vmem:[#allocation4 + $0x118] sm:$0xff]
    %v1371 = vld [vmem:[#allocation4 + $0x120] sm:$0xff]
    %v1372 = vld [vmem:[#allocation4 + $0x128] sm:$0xff]
    %v1373 = vld [vmem:[#allocation4 + $0x130] sm:$0xff]
    %v1374 = vld [vmem:[#allocation4 + $0x138] sm:$0xff]
    %v1375 = vld [vmem:[#allocation4 + $0x140] sm:$0xff]
    %v1376 = vld [vmem:[#allocation4 + $0x148] sm:$0xff]
    %v1377 = vld [vmem:[#allocation4 + $0x150] sm:$0xff]
    %v1378 = vld [vmem:[#allocation4 + $0x158] sm:$0xff]
    %v1379 = vld [vmem:[#allocation4 + $0x160] sm:$0xff]
    %v1380 = vld [vmem:[#allocation4 + $0x168] sm:$0xff]
    %v1381 = vld [vmem:[#allocation4 + $0x170] sm:$0xff]
    %v1382 = vld [vmem:[#allocation4 + $0x178] sm:$0xff]
    %v1383 = vld [vmem:[#allocation4 + $0x180] sm:$0xff]
    %v1384 = vld [vmem:[#allocation4 + $0x188] sm:$0xff]
    %v1385 = vld [vmem:[#allocation4 + $0x190] sm:$0xff]
    %v1386 = vld [vmem:[#allocation4 + $0x198] sm:$0xff]
    %v1387 = vld [vmem:[#allocation4 + $0x1a0] sm:$0xff]
    %v1388 = vld [vmem:[#allocation4 + $0x1a8] sm:$0xff]
    %v1389 = vld [vmem:[#allocation4 + $0x1b0] sm:$0xff]
    %v1390 = vld [vmem:[#allocation4 + $0x1b8] sm:$0xff]
    %v1391 = vld [vmem:[#allocation4 + $0x1c0] sm:$0xff]
    %v1392 = vld [vmem:[#allocation4 + $0x1c8] sm:$0xff]
    %v1393 = vld [vmem:[#allocation4 + $0x1d0] sm:$0xff]
    %v1394 = vld [vmem:[#allocation4 + $0x1d8] sm:$0xff]
    %v1395 = vld [vmem:[#allocation4 + $0x1e0] sm:$0xff]
    %v1396 = vld [vmem:[#allocation4 + $0x1e8] sm:$0xff]
    %v1397 = vld [vmem:[#allocation4 + $0x1f0] sm:$0xff]
    %v1398 = vld [vmem:[#allocation4 + $0x1f8] sm:$0xff]
    %v1399 = vpack.c.bf16 %v1327, %v1327
    %v1400 = vpack.c.bf16 %v1328, %v1328
    %v1401 = vpack.c.bf16 %v1329, %v1329
    %v1402 = vpack.c.bf16 %v1330, %v1330
    %s1403 = scalar_lea.vmem [#allocation18], 2
    %v1404 = vld [vmem:[%s1403] ss:$8 sm:$0x3]
    %v1406 = vlaneseq
    %v1407 = vshrl.u32 %v1406, 7
    %v1408 = vsub.s32 0, %v1407
    %v1409 = vrot.slane %v1404, %v1408
    %v1410 = vlaneseq
    %v1411 = vshrl.u32 %v1410, 7
    %v1412 = vsub.s32 1, %v1411
    %v1413 = vrot.slane %v1404, %v1412
    %1416 = vmatprep.subr.bf16.mxu0 %v1336
    %1417 = vmatpush1.bf16.msra.mxu0 %v1335
    %1418 = vmatprep.subr.bf16.mxu0 %v1338
    %1419 = vmatpush1.bf16.msra.mxu0 %v1337
    %1420 = vmatprep.subr.bf16.mxu0 %v1340
    %1421 = vmatpush1.bf16.msra.mxu0 %v1339
    %1422 = vmatprep.subr.bf16.mxu0 %v1342
    %1423 = vmatpush1.bf16.msra.mxu0 %v1341
    %1424 = vmatprep.subr.bf16.mxu0 %v1344
    %1425 = vmatpush1.bf16.msra.mxu0 %v1343
    %1426 = vmatprep.subr.bf16.mxu0 %v1346
    %1427 = vmatpush1.bf16.msra.mxu0 %v1345
    %1428 = vmatprep.subr.bf16.mxu0 %v1348
    %1429 = vmatpush1.bf16.msra.mxu0 %v1347
    %1430 = vmatprep.subr.bf16.mxu0 %v1350
    %1431 = vmatpush1.bf16.msra.mxu0 %v1349
    %1432 = vmatprep.subr.bf16.mxu0 %v1352
    %1433 = vmatpush1.bf16.msra.mxu0 %v1351
    %1434 = vmatprep.subr.bf16.mxu0 %v1354
    %1435 = vmatpush1.bf16.msra.mxu0 %v1353
    %1436 = vmatprep.subr.bf16.mxu0 %v1356
    %1437 = vmatpush1.bf16.msra.mxu0 %v1355
    %1438 = vmatprep.subr.bf16.mxu0 %v1358
    %1439 = vmatpush1.bf16.msra.mxu0 %v1357
    %1440 = vmatprep.subr.bf16.mxu0 %v1360
    %1441 = vmatpush1.bf16.msra.mxu0 %v1359
    %1442 = vmatprep.subr.bf16.mxu0 %v1362
    %1443 = vmatpush1.bf16.msra.mxu0 %v1361
    %1444 = vmatprep.subr.bf16.mxu0 %v1364
    %1445 = vmatpush1.bf16.msra.mxu0 %v1363
    %1446 = vmatprep.subr.bf16.mxu0 %v1366
    %1447 = vmatpush1.bf16.msra.mxu0 %v1365
    %1448 = vmatprep.mubr.bf16.mxu0 %v1400
    %1449 = vmatmul.mubr.bf16.gmra.mrb[0].mxu0 %v1399
    %v1450 = vpop.f32.mrb[0].mxu0
    %v1451 = vadd.f32 %v1409, %v1450
    %v1452 = vpop.f32.mrb[0].mxu0
    %v1453 = vadd.f32 %v1413, %v1452
    %v1454 = vpop.f32.mrb[0].mxu0
    %v1455 = vpop.f32.mrb[0].mxu0
    %1456 = vdwg.mxu0
    %1457 = vmatprep.subr.bf16.mxu0 %v1368
    %1458 = vmatpush1.bf16.msra.mxu0 %v1367
    %1459 = vmatprep.subr.bf16.mxu0 %v1370
    %1460 = vmatpush1.bf16.msra.mxu0 %v1369
    %1461 = vmatprep.subr.bf16.mxu0 %v1372
    %1462 = vmatpush1.bf16.msra.mxu0 %v1371
    %1463 = vmatprep.subr.bf16.mxu0 %v1374
    %1464 = vmatpush1.bf16.msra.mxu0 %v1373
    %1465 = vmatprep.subr.bf16.mxu0 %v1376
    %1466 = vmatpush1.bf16.msra.mxu0 %v1375
    %1467 = vmatprep.subr.bf16.mxu0 %v1378
    %1468 = vmatpush1.bf16.msra.mxu0 %v1377
    %1469 = vmatprep.subr.bf16.mxu0 %v1380
    %1470 = vmatpush1.bf16.msra.mxu0 %v1379
    %1471 = vmatprep.subr.bf16.mxu0 %v1382
    %1472 = vmatpush1.bf16.msra.mxu0 %v1381
    %1473 = vmatprep.subr.bf16.mxu0 %v1384
    %1474 = vmatpush1.bf16.msra.mxu0 %v1383
    %1475 = vmatprep.subr.bf16.mxu0 %v1386
    %1476 = vmatpush1.bf16.msra.mxu0 %v1385
    %1477 = vmatprep.subr.bf16.mxu0 %v1388
    %1478 = vmatpush1.bf16.msra.mxu0 %v1387
    %1479 = vmatprep.subr.bf16.mxu0 %v1390
    %1480 = vmatpush1.bf16.msra.mxu0 %v1389
    %1481 = vmatprep.subr.bf16.mxu0 %v1392
    %1482 = vmatpush1.bf16.msra.mxu0 %v1391
    %1483 = vmatprep.subr.bf16.mxu0 %v1394
    %1484 = vmatpush1.bf16.msra.mxu0 %v1393
    %1485 = vmatprep.subr.bf16.mxu0 %v1396
    %1486 = vmatpush1.bf16.msra.mxu0 %v1395
    %1487 = vmatprep.subr.bf16.mxu0 %v1398
    %1488 = vmatpush1.bf16.msra.mxu0 %v1397
    %1489 = vmatprep.mubr.bf16.mxu0 %v1402
    %1490 = vmatmul.mubr.bf16.gmra.mrb[0].mxu0 %v1401
    %v1491 = vpop.f32.mrb[0].mxu0
    %v1492 = vadd.f32 %v1451, %v1491
    %v1493 = vpop.f32.mrb[0].mxu0
    %v1494 = vadd.f32 %v1453, %v1493
    %v1495 = vpop.f32.mrb[0].mxu0
    %v1496 = vpop.f32.mrb[0].mxu0
    %1497 = vdwg.mxu0
    %v1498 = vmax.f32 %v1492, 0.0
    %v1499 = vmax.f32 %v1494, 0.0
    %s1500 = smul.u32 %s358, 1
    %s1501 = sshll.u32 %s1500, 4
    %1502 = dma.done %s156, %s1501
    %v1503 = vld [vmem:[#allocation5] sm:$0xff]
    %v1504 = vld [vmem:[#allocation5 + $0x8] sm:$0xff]
    %v1505 = vld [vmem:[#allocation5 + $0x10] sm:$0xff]
    %v1506 = vld [vmem:[#allocation5 + $0x18] sm:$0xff]
    %v1507 = vld [vmem:[#allocation5 + $0x20] sm:$0xff]
    %v1508 = vld [vmem:[#allocation5 + $0x28] sm:$0xff]
    %v1509 = vld [vmem:[#allocation5 + $0x30] sm:$0xff]
    %v1510 = vld [vmem:[#allocation5 + $0x38] sm:$0xff]
    %v1511 = vld [vmem:[#allocation5 + $0x40] sm:$0xff]
    %v1512 = vld [vmem:[#allocation5 + $0x48] sm:$0xff]
    %v1513 = vld [vmem:[#allocation5 + $0x50] sm:$0xff]
    %v1514 = vld [vmem:[#allocation5 + $0x58] sm:$0xff]
    %v1515 = vld [vmem:[#allocation5 + $0x60] sm:$0xff]
    %v1516 = vld [vmem:[#allocation5 + $0x68] sm:$0xff]
    %v1517 = vld [vmem:[#allocation5 + $0x70] sm:$0xff]
    %v1518 = vld [vmem:[#allocation5 + $0x78] sm:$0xff]
    %v1519 = vpack.c.bf16 %v1498, %v1498
    %v1520 = vpack.c.bf16 %v1499, %v1499
    %v1521 = vld [vmem:[#allocation18 + $0x3] ss:$0 sm:$0xff]
    %1522 = vmatprep.subr.bf16.mxu0 0
    %1523 = vmatpush1.bf16.msra.mxu0 %v1503
    %1524 = vmatprep.subr.bf16.mxu0 0
    %1525 = vmatpush1.bf16.msra.mxu0 %v1504
    %1526 = vmatprep.subr.bf16.mxu0 0
    %1527 = vmatpush1.bf16.msra.mxu0 %v1505
    %1528 = vmatprep.subr.bf16.mxu0 0
    %1529 = vmatpush1.bf16.msra.mxu0 %v1506
    %1530 = vmatprep.subr.bf16.mxu0 0
    %1531 = vmatpush1.bf16.msra.mxu0 %v1507
    %1532 = vmatprep.subr.bf16.mxu0 0
    %1533 = vmatpush1.bf16.msra.mxu0 %v1508
    %1534 = vmatprep.subr.bf16.mxu0 0
    %1535 = vmatpush1.bf16.msra.mxu0 %v1509
    %1536 = vmatprep.subr.bf16.mxu0 0
    %1537 = vmatpush1.bf16.msra.mxu0 %v1510
    %1538 = vmatprep.subr.bf16.mxu0 0
    %1539 = vmatpush1.bf16.msra.mxu0 %v1511
    %1540 = vmatprep.subr.bf16.mxu0 0
    %1541 = vmatpush1.bf16.msra.mxu0 %v1512
    %1542 = vmatprep.subr.bf16.mxu0 0
    %1543 = vmatpush1.bf16.msra.mxu0 %v1513
    %1544 = vmatprep.subr.bf16.mxu0 0
    %1545 = vmatpush1.bf16.msra.mxu0 %v1514
    %1546 = vmatprep.subr.bf16.mxu0 0
    %1547 = vmatpush1.bf16.msra.mxu0 %v1515
    %1548 = vmatprep.subr.bf16.mxu0 0
    %1549 = vmatpush1.bf16.msra.mxu0 %v1516
    %1550 = vmatprep.subr.bf16.mxu0 0
    %1551 = vmatpush1.bf16.msra.mxu0 %v1517
    %1552 = vmatprep.subr.bf16.mxu0 0
    %1553 = vmatpush1.bf16.msra.mxu0 %v1518
    %1554 = vmatprep.mubr.bf16.mxu0 %v1520
    %1555 = vmatmul.mubr.bf16.gmra.mrb[0].mxu0 %v1519
    %v1556 = vpop.f32.mrb[0].mxu0
    %v1557 = vadd.f32 %v1521, %v1556
    %v1558 = vpop.f32.mrb[0].mxu0
    %v1559 = vpop.f32.mrb[0].mxu0
    %v1560 = vpop.f32.mrb[0].mxu0
    %1561 = vdwg.mxu0
    %v1562 = vmax.f32 %v1557, 0.0
    %s1563 = smul.u32 4, 16
    %s1564 = smul.u32 %s1563, 1
    %s1565 = sshll.u32 %s1564, 4
    %1566 = dma.done %s168, %s1565
    %v1567 = vld [vmem:[#allocation6] sm:$0xff]
    %v1568 = vld [vmem:[#allocation6 + $0x8] sm:$0xff]
    %v1569 = vld [vmem:[#allocation6 + $0x10] sm:$0xff]
    %v1570 = vld [vmem:[#allocation6 + $0x18] sm:$0xff]
    %v1571 = vld [vmem:[#allocation6 + $0x20] sm:$0xff]
    %v1572 = vld [vmem:[#allocation6 + $0x28] sm:$0xff]
    %v1573 = vld [vmem:[#allocation6 + $0x30] sm:$0xff]
    %v1574 = vld [vmem:[#allocation6 + $0x38] sm:$0xff]
    %v1575 = vpack.c.bf16 %v1562, %v1562
    %v1576 = vld [vmem:[#allocation18 + $0x4] ss:$0 sm:$0xff]
    %1577 = vmatprep.subr.bf16.mxu0 0
    %1578 = vmatpush1.bf16.msra.mxu0 %v1567
    %1579 = vmatprep.subr.bf16.mxu0 0
    %1580 = vmatpush1.bf16.msra.mxu0 %v1568
    %1581 = vmatprep.subr.bf16.mxu0 0
    %1582 = vmatpush1.bf16.msra.mxu0 %v1569
    %1583 = vmatprep.subr.bf16.mxu0 0
    %1584 = vmatpush1.bf16.msra.mxu0 %v1570
    %1585 = vmatprep.subr.bf16.mxu0 0
    %1586 = vmatpush1.bf16.msra.mxu0 %v1571
    %1587 = vmatprep.subr.bf16.mxu0 0
    %1588 = vmatpush1.bf16.msra.mxu0 %v1572
    %1589 = vmatprep.subr.bf16.mxu0 0
    %1590 = vmatpush1.bf16.msra.mxu0 %v1573
    %1591 = vmatprep.subr.bf16.mxu0 0
    %1592 = vmatpush1.bf16.msra.mxu0 %v1574
    %1593 = vmatprep.subr.bf16.mxu0 0
    %1594 = vmatpush1.bf16.msra.mxu0 0
    %1595 = vmatprep.subr.bf16.mxu0 0
    %1596 = vmatpush1.bf16.msra.mxu0 0
    %1597 = vmatprep.subr.bf16.mxu0 0
    %1598 = vmatpush1.bf16.msra.mxu0 0
    %1599 = vmatprep.subr.bf16.mxu0 0
    %1600 = vmatpush1.bf16.msra.mxu0 0
    %1601 = vmatprep.subr.bf16.mxu0 0
    %1602 = vmatpush1.bf16.msra.mxu0 0
    %1603 = vmatprep.subr.bf16.mxu0 0
    %1604 = vmatpush1.bf16.msra.mxu0 0
    %1605 = vmatprep.subr.bf16.mxu0 0
    %1606 = vmatpush1.bf16.msra.mxu0 0
    %1607 = vmatprep.subr.bf16.mxu0 0
    %1608 = vmatpush1.bf16.msra.mxu0 0
    %1609 = vmatprep.mubr.bf16.mxu0 0
    %1610 = vmatmul.mubr.bf16.gmra.mrb[0].mxu0 %v1575
    %v1611 = vpop.f32.mrb[0].mxu0
    %v1612 = vadd.f32 %v1576, %v1611
    %v1613 = vpop.f32.mrb[0].mxu0
    %v1614 = vpop.f32.mrb[0].mxu0
    %v1615 = vpop.f32.mrb[0].mxu0
    %1616 = vdwg.mxu0
    %v1617 = vmax.f32 %v1612, 0.0
    %s1618 = sshll.u32 %s1564, 4
    %1619 = dma.done %s180, %s1618
    %v1620 = vld [vmem:[#allocation7] sm:$0xff]
    %v1621 = vld [vmem:[#allocation7 + $0x8] sm:$0xff]
    %v1622 = vld [vmem:[#allocation7 + $0x10] sm:$0xff]
    %v1623 = vld [vmem:[#allocation7 + $0x18] sm:$0xff]
    %v1624 = vld [vmem:[#allocation7 + $0x20] sm:$0xff]
    %v1625 = vld [vmem:[#allocation7 + $0x28] sm:$0xff]
    %v1626 = vld [vmem:[#allocation7 + $0x30] sm:$0xff]
    %v1627 = vld [vmem:[#allocation7 + $0x38] sm:$0xff]
    %v1628 = vpack.c.bf16 %v1617, %v1617
    %v1629 = vld [vmem:[#allocation18 + $0x5] ss:$0 sm:$0xff]
    %1630 = vmatprep.subr.bf16.mxu0 0
    %1631 = vmatpush1.bf16.msra.mxu0 %v1620
    %1632 = vmatprep.subr.bf16.mxu0 0
    %1633 = vmatpush1.bf16.msra.mxu0 %v1621
    %1634 = vmatprep.subr.bf16.mxu0 0
    %1635 = vmatpush1.bf16.msra.mxu0 %v1622
    %1636 = vmatprep.subr.bf16.mxu0 0
    %1637 = vmatpush1.bf16.msra.mxu0 %v1623
    %1638 = vmatprep.subr.bf16.mxu0 0
    %1639 = vmatpush1.bf16.msra.mxu0 %v1624
    %1640 = vmatprep.subr.bf16.mxu0 0
    %1641 = vmatpush1.bf16.msra.mxu0 %v1625
    %1642 = vmatprep.subr.bf16.mxu0 0
    %1643 = vmatpush1.bf16.msra.mxu0 %v1626
    %1644 = vmatprep.subr.bf16.mxu0 0
    %1645 = vmatpush1.bf16.msra.mxu0 %v1627
    %1646 = vmatprep.subr.bf16.mxu0 0
    %1647 = vmatpush1.bf16.msra.mxu0 0
    %1648 = vmatprep.subr.bf16.mxu0 0
    %1649 = vmatpush1.bf16.msra.mxu0 0
    %1650 = vmatprep.subr.bf16.mxu0 0
    %1651 = vmatpush1.bf16.msra.mxu0 0
    %1652 = vmatprep.subr.bf16.mxu0 0
    %1653 = vmatpush1.bf16.msra.mxu0 0
    %1654 = vmatprep.subr.bf16.mxu0 0
    %1655 = vmatpush1.bf16.msra.mxu0 0
    %1656 = vmatprep.subr.bf16.mxu0 0
    %1657 = vmatpush1.bf16.msra.mxu0 0
    %1658 = vmatprep.subr.bf16.mxu0 0
    %1659 = vmatpush1.bf16.msra.mxu0 0
    %1660 = vmatprep.subr.bf16.mxu0 0
    %1661 = vmatpush1.bf16.msra.mxu0 0
    %1662 = vmatprep.mubr.bf16.mxu0 0
    %1663 = vmatmul.mubr.bf16.gmra.mrb[0].mxu0 %v1628
    %v1664 = vpop.f32.mrb[0].mxu0
    %v1665 = vadd.f32 %v1629, %v1664
    %v1666 = vpop.f32.mrb[0].mxu0
    %v1667 = vpop.f32.mrb[0].mxu0
    %v1668 = vpop.f32.mrb[0].mxu0
    %1669 = vdwg.mxu0
    %s1670 = sshll.u32 %s1564, 4
    %1671 = dma.done %s192, %s1670
    %v1672 = vld [vmem:[#allocation8] sm:$0xff]
    %v1673 = vld [vmem:[#allocation8 + $0x8] sm:$0xff]
    %v1674 = vld [vmem:[#allocation8 + $0x10] sm:$0xff]
    %v1675 = vld [vmem:[#allocation8 + $0x18] sm:$0xff]
    %v1676 = vld [vmem:[#allocation8 + $0x20] sm:$0xff]
    %v1677 = vld [vmem:[#allocation8 + $0x28] sm:$0xff]
    %v1678 = vld [vmem:[#allocation8 + $0x30] sm:$0xff]
    %v1679 = vld [vmem:[#allocation8 + $0x38] sm:$0xff]
    %v1680 = vpack.c.bf16 %v1665, %v1665
    %v1681 = vld [vmem:[#allocation18 + $0x6] ss:$0 sm:$0xff]
    %1682 = vmatprep.subr.bf16.mxu0 0
    %1683 = vmatpush1.bf16.msra.mxu0 %v1672
    %1684 = vmatprep.subr.bf16.mxu0 0
    %1685 = vmatpush1.bf16.msra.mxu0 %v1673
    %1686 = vmatprep.subr.bf16.mxu0 0
    %1687 = vmatpush1.bf16.msra.mxu0 %v1674
    %1688 = vmatprep.subr.bf16.mxu0 0
    %1689 = vmatpush1.bf16.msra.mxu0 %v1675
    %1690 = vmatprep.subr.bf16.mxu0 0
    %1691 = vmatpush1.bf16.msra.mxu0 %v1676
    %1692 = vmatprep.subr.bf16.mxu0 0
    %1693 = vmatpush1.bf16.msra.mxu0 %v1677
    %1694 = vmatprep.subr.bf16.mxu0 0
    %1695 = vmatpush1.bf16.msra.mxu0 %v1678
    %1696 = vmatprep.subr.bf16.mxu0 0
    %1697 = vmatpush1.bf16.msra.mxu0 %v1679
    %1698 = vmatprep.subr.bf16.mxu0 0
    %1699 = vmatpush1.bf16.msra.mxu0 0
    %1700 = vmatprep.subr.bf16.mxu0 0
    %1701 = vmatpush1.bf16.msra.mxu0 0
    %1702 = vmatprep.subr.bf16.mxu0 0
    %1703 = vmatpush1.bf16.msra.mxu0 0
    %1704 = vmatprep.subr.bf16.mxu0 0
    %1705 = vmatpush1.bf16.msra.mxu0 0
    %1706 = vmatprep.subr.bf16.mxu0 0
    %1707 = vmatpush1.bf16.msra.mxu0 0
    %1708 = vmatprep.subr.bf16.mxu0 0
    %1709 = vmatpush1.bf16.msra.mxu0 0
    %1710 = vmatprep.subr.bf16.mxu0 0
    %1711 = vmatpush1.bf16.msra.mxu0 0
    %1712 = vmatprep.subr.bf16.mxu0 0
    %1713 = vmatpush1.bf16.msra.mxu0 0
    %1714 = vmatprep.mubr.bf16.mxu0 0
    %1715 = vmatmul.mubr.bf16.gmra.mrb[0].mxu0 %v1680
    %v1716 = vpop.f32.mrb[0].mxu0
    %v1717 = vadd.f32 %v1681, %v1716
    %v1718 = vpop.f32.mrb[0].mxu0
    %v1719 = vpop.f32.mrb[0].mxu0
    %v1720 = vpop.f32.mrb[0].mxu0
    %1721 = vdwg.mxu0
    %v1722 = vmax.f32 %v1717, 0.0
    %s1723 = sshll.u32 %s1564, 4
    %1724 = dma.done %s204, %s1723
    %v1725 = vld [vmem:[#allocation9] sm:$0xff]
    %v1726 = vld [vmem:[#allocation9 + $0x8] sm:$0xff]
    %v1727 = vld [vmem:[#allocation9 + $0x10] sm:$0xff]
    %v1728 = vld [vmem:[#allocation9 + $0x18] sm:$0xff]
    %v1729 = vld [vmem:[#allocation9 + $0x20] sm:$0xff]
    %v1730 = vld [vmem:[#allocation9 + $0x28] sm:$0xff]
    %v1731 = vld [vmem:[#allocation9 + $0x30] sm:$0xff]
    %v1732 = vld [vmem:[#allocation9 + $0x38] sm:$0xff]
    %v1733 = vpack.c.bf16 %v1722, %v1722
    %v1734 = vld [vmem:[#allocation18 + $0x7] ss:$0 sm:$0xff]
    %1735 = vmatprep.subr.bf16.mxu0 0
    %1736 = vmatpush1.bf16.msra.mxu0 %v1725
    %1737 = vmatprep.subr.bf16.mxu0 0
    %1738 = vmatpush1.bf16.msra.mxu0 %v1726
    %1739 = vmatprep.subr.bf16.mxu0 0
    %1740 = vmatpush1.bf16.msra.mxu0 %v1727
    %1741 = vmatprep.subr.bf16.mxu0 0
    %1742 = vmatpush1.bf16.msra.mxu0 %v1728
    %1743 = vmatprep.subr.bf16.mxu0 0
    %1744 = vmatpush1.bf16.msra.mxu0 %v1729
    %1745 = vmatprep.subr.bf16.mxu0 0
    %1746 = vmatpush1.bf16.msra.mxu0 %v1730
    %1747 = vmatprep.subr.bf16.mxu0 0
    %1748 = vmatpush1.bf16.msra.mxu0 %v1731
    %1749 = vmatprep.subr.bf16.mxu0 0
    %1750 = vmatpush1.bf16.msra.mxu0 %v1732
    %1751 = vmatprep.subr.bf16.mxu0 0
    %1752 = vmatpush1.bf16.msra.mxu0 0
    %1753 = vmatprep.subr.bf16.mxu0 0
    %1754 = vmatpush1.bf16.msra.mxu0 0
    %1755 = vmatprep.subr.bf16.mxu0 0
    %1756 = vmatpush1.bf16.msra.mxu0 0
    %1757 = vmatprep.subr.bf16.mxu0 0
    %1758 = vmatpush1.bf16.msra.mxu0 0
    %1759 = vmatprep.subr.bf16.mxu0 0
    %1760 = vmatpush1.bf16.msra.mxu0 0
    %1761 = vmatprep.subr.bf16.mxu0 0
    %1762 = vmatpush1.bf16.msra.mxu0 0
    %1763 = vmatprep.subr.bf16.mxu0 0
    %1764 = vmatpush1.bf16.msra.mxu0 0
    %1765 = vmatprep.subr.bf16.mxu0 0
    %1766 = vmatpush1.bf16.msra.mxu0 0
    %1767 = vmatprep.mubr.bf16.mxu0 0
    %1768 = vmatmul.mubr.bf16.gmra.mrb[0].mxu0 %v1733
    %v1769 = vpop.f32.mrb[0].mxu0
    %v1770 = vadd.f32 %v1734, %v1769
    %v1771 = vpop.f32.mrb[0].mxu0
    %v1772 = vpop.f32.mrb[0].mxu0
    %v1773 = vpop.f32.mrb[0].mxu0
    %1774 = vdwg.mxu0
    %v1775 = vmax.f32 %v1770, 0.0
    %s1776 = smul.u32 %s1563, 2
    %s1777 = sshll.u32 %s1776, 4
    %1778 = dma.done %s216, %s1777
    %v1779 = vld [vmem:[#allocation10] sm:$0xff]
    %v1780 = vld [vmem:[#allocation10 + $0x8] sm:$0xff]
    %v1781 = vld [vmem:[#allocation10 + $0x10] sm:$0xff]
    %v1782 = vld [vmem:[#allocation10 + $0x18] sm:$0xff]
    %v1783 = vld [vmem:[#allocation10 + $0x20] sm:$0xff]
    %v1784 = vld [vmem:[#allocation10 + $0x28] sm:$0xff]
    %v1785 = vld [vmem:[#allocation10 + $0x30] sm:$0xff]
    %v1786 = vld [vmem:[#allocation10 + $0x38] sm:$0xff]
    %v1787 = vld [vmem:[#allocation10 + $0x40] sm:$0xff]
    %v1788 = vld [vmem:[#allocation10 + $0x48] sm:$0xff]
    %v1789 = vld [vmem:[#allocation10 + $0x50] sm:$0xff]
    %v1790 = vld [vmem:[#allocation10 + $0x58] sm:$0xff]
    %v1791 = vld [vmem:[#allocation10 + $0x60] sm:$0xff]
    %v1792 = vld [vmem:[#allocation10 + $0x68] sm:$0xff]
    %v1793 = vld [vmem:[#allocation10 + $0x70] sm:$0xff]
    %v1794 = vld [vmem:[#allocation10 + $0x78] sm:$0xff]
    %v1795 = vpack.c.bf16 %v1775, %v1775
    %s1796 = scalar_lea.vmem [#allocation18], 64
    %v1797 = vld [vmem:[%s1796] ss:$8 sm:$0x3]
    %v1799 = vlaneseq
    %v1800 = vshrl.u32 %v1799, 7
    %v1801 = vsub.s32 0, %v1800
    %v1802 = vrot.slane %v1797, %v1801
    %v1803 = vlaneseq
    %v1804 = vshrl.u32 %v1803, 7
    %v1805 = vsub.s32 1, %v1804
    %v1806 = vrot.slane %v1797, %v1805
    %1809 = vmatprep.subr.bf16.mxu0 %v1780
    %1810 = vmatpush1.bf16.msra.mxu0 %v1779
    %1811 = vmatprep.subr.bf16.mxu0 %v1782
    %1812 = vmatpush1.bf16.msra.mxu0 %v1781
    %1813 = vmatprep.subr.bf16.mxu0 %v1784
    %1814 = vmatpush1.bf16.msra.mxu0 %v1783
    %1815 = vmatprep.subr.bf16.mxu0 %v1786
    %1816 = vmatpush1.bf16.msra.mxu0 %v1785
    %1817 = vmatprep.subr.bf16.mxu0 %v1788
    %1818 = vmatpush1.bf16.msra.mxu0 %v1787
    %1819 = vmatprep.subr.bf16.mxu0 %v1790
    %1820 = vmatpush1.bf16.msra.mxu0 %v1789
    %1821 = vmatprep.subr.bf16.mxu0 %v1792
    %1822 = vmatpush1.bf16.msra.mxu0 %v1791
    %1823 = vmatprep.subr.bf16.mxu0 %v1794
    %1824 = vmatpush1.bf16.msra.mxu0 %v1793
    %1825 = vmatprep.subr.bf16.mxu0 0
    %1826 = vmatpush1.bf16.msra.mxu0 0
    %1827 = vmatprep.subr.bf16.mxu0 0
    %1828 = vmatpush1.bf16.msra.mxu0 0
    %1829 = vmatprep.subr.bf16.mxu0 0
    %1830 = vmatpush1.bf16.msra.mxu0 0
    %1831 = vmatprep.subr.bf16.mxu0 0
    %1832 = vmatpush1.bf16.msra.mxu0 0
    %1833 = vmatprep.subr.bf16.mxu0 0
    %1834 = vmatpush1.bf16.msra.mxu0 0
    %1835 = vmatprep.subr.bf16.mxu0 0
    %1836 = vmatpush1.bf16.msra.mxu0 0
    %1837 = vmatprep.subr.bf16.mxu0 0
    %1838 = vmatpush1.bf16.msra.mxu0 0
    %1839 = vmatprep.subr.bf16.mxu0 0
    %1840 = vmatpush1.bf16.msra.mxu0 0
    %1841 = vmatprep.mubr.bf16.mxu0 0
    %1842 = vmatmul.mubr.bf16.gmra.mrb[0].mxu0 %v1795
    %v1843 = vpop.f32.mrb[0].mxu0
    %v1844 = vadd.f32 %v1802, %v1843
    %v1845 = vpop.f32.mrb[0].mxu0
    %v1846 = vadd.f32 %v1806, %v1845
    %v1847 = vpop.f32.mrb[0].mxu0
    %v1848 = vpop.f32.mrb[0].mxu0
    %1849 = vdwg.mxu0
    %v1850 = vmax.f32 %v1844, 0.0
    %v1851 = vmax.f32 %v1846, 0.0
    %s1852 = smul.u32 %s358, 4
    %s1853 = sshll.u32 %s1852, 4
    %1854 = dma.done %s251, %s1853
    %v1855 = vld [vmem:[#allocation11] sm:$0xff]
    %v1856 = vld [vmem:[#allocation11 + $0x8] sm:$0xff]
    %v1857 = vld [vmem:[#allocation11 + $0x10] sm:$0xff]
    %v1858 = vld [vmem:[#allocation11 + $0x18] sm:$0xff]
    %v1859 = vld [vmem:[#allocation11 + $0x20] sm:$0xff]
    %v1860 = vld [vmem:[#allocation11 + $0x28] sm:$0xff]
    %v1861 = vld [vmem:[#allocation11 + $0x30] sm:$0xff]
    %v1862 = vld [vmem:[#allocation11 + $0x38] sm:$0xff]
    %v1863 = vld [vmem:[#allocation11 + $0x40] sm:$0xff]
    %v1864 = vld [vmem:[#allocation11 + $0x48] sm:$0xff]
    %v1865 = vld [vmem:[#allocation11 + $0x50] sm:$0xff]
    %v1866 = vld [vmem:[#allocation11 + $0x58] sm:$0xff]
    %v1867 = vld [vmem:[#allocation11 + $0x60] sm:$0xff]
    %v1868 = vld [vmem:[#allocation11 + $0x68] sm:$0xff]
    %v1869 = vld [vmem:[#allocation11 + $0x70] sm:$0xff]
    %v1870 = vld [vmem:[#allocation11 + $0x78] sm:$0xff]
    %v1871 = vld [vmem:[#allocation11 + $0x80] sm:$0xff]
    %v1872 = vld [vmem:[#allocation11 + $0x88] sm:$0xff]
    %v1873 = vld [vmem:[#allocation11 + $0x90] sm:$0xff]
    %v1874 = vld [vmem:[#allocation11 + $0x98] sm:$0xff]
    %v1875 = vld [vmem:[#allocation11 + $0xa0] sm:$0xff]
    %v1876 = vld [vmem:[#allocation11 + $0xa8] sm:$0xff]
    %v1877 = vld [vmem:[#allocation11 + $0xb0] sm:$0xff]
    %v1878 = vld [vmem:[#allocation11 + $0xb8] sm:$0xff]
    %v1879 = vld [vmem:[#allocation11 + $0xc0] sm:$0xff]
    %v1880 = vld [vmem:[#allocation11 + $0xc8] sm:$0xff]
    %v1881 = vld [vmem:[#allocation11 + $0xd0] sm:$0xff]
    %v1882 = vld [vmem:[#allocation11 + $0xd8] sm:$0xff]
    %v1883 = vld [vmem:[#allocation11 + $0xe0] sm:$0xff]
    %v1884 = vld [vmem:[#allocation11 + $0xe8] sm:$0xff]
    %v1885 = vld [vmem:[#allocation11 + $0xf0] sm:$0xff]
    %v1886 = vld [vmem:[#allocation11 + $0xf8] sm:$0xff]
    %v1887 = vld [vmem:[#allocation11 + $0x100] sm:$0xff]
    %v1888 = vld [vmem:[#allocation11 + $0x108] sm:$0xff]
    %v1889 = vld [vmem:[#allocation11 + $0x110] sm:$0xff]
    %v1890 = vld [vmem:[#allocation11 + $0x118] sm:$0xff]
    %v1891 = vld [vmem:[#allocation11 + $0x120] sm:$0xff]
    %v1892 = vld [vmem:[#allocation11 + $0x128] sm:$0xff]
    %v1893 = vld [vmem:[#allocation11 + $0x130] sm:$0xff]
    %v1894 = vld [vmem:[#allocation11 + $0x138] sm:$0xff]
    %v1895 = vld [vmem:[#allocation11 + $0x140] sm:$0xff]
    %v1896 = vld [vmem:[#allocation11 + $0x148] sm:$0xff]
    %v1897 = vld [vmem:[#allocation11 + $0x150] sm:$0xff]
    %v1898 = vld [vmem:[#allocation11 + $0x158] sm:$0xff]
    %v1899 = vld [vmem:[#allocation11 + $0x160] sm:$0xff]
    %v1900 = vld [vmem:[#allocation11 + $0x168] sm:$0xff]
    %v1901 = vld [vmem:[#allocation11 + $0x170] sm:$0xff]
    %v1902 = vld [vmem:[#allocation11 + $0x178] sm:$0xff]
    %v1903 = vld [vmem:[#allocation11 + $0x180] sm:$0xff]
    %v1904 = vld [vmem:[#allocation11 + $0x188] sm:$0xff]
    %v1905 = vld [vmem:[#allocation11 + $0x190] sm:$0xff]
    %v1906 = vld [vmem:[#allocation11 + $0x198] sm:$0xff]
    %v1907 = vld [vmem:[#allocation11 + $0x1a0] sm:$0xff]
    %v1908 = vld [vmem:[#allocation11 + $0x1a8] sm:$0xff]
    %v1909 = vld [vmem:[#allocation11 + $0x1b0] sm:$0xff]
    %v1910 = vld [vmem:[#allocation11 + $0x1b8] sm:$0xff]
    %v1911 = vld [vmem:[#allocation11 + $0x1c0] sm:$0xff]
    %v1912 = vld [vmem:[#allocation11 + $0x1c8] sm:$0xff]
    %v1913 = vld [vmem:[#allocation11 + $0x1d0] sm:$0xff]
    %v1914 = vld [vmem:[#allocation11 + $0x1d8] sm:$0xff]
    %v1915 = vld [vmem:[#allocation11 + $0x1e0] sm:$0xff]
    %v1916 = vld [vmem:[#allocation11 + $0x1e8] sm:$0xff]
    %v1917 = vld [vmem:[#allocation11 + $0x1f0] sm:$0xff]
    %v1918 = vld [vmem:[#allocation11 + $0x1f8] sm:$0xff]
    %v1919 = vpack.c.bf16 %v1850, %v1850
    %v1920 = vpack.c.bf16 %v1851, %v1851
    %s1921 = scalar_lea.vmem [#allocation18], 65
    %v1922 = vld [vmem:[%s1921] ss:$8 sm:$0xf]
    %v1924 = vlaneseq
    %v1925 = vshrl.u32 %v1924, 7
    %v1926 = vsub.s32 0, %v1925
    %v1927 = vrot.slane %v1922, %v1926
    %v1928 = vlaneseq
    %v1929 = vshrl.u32 %v1928, 7
    %v1930 = vsub.s32 1, %v1929
    %v1931 = vrot.slane %v1922, %v1930
    %v1932 = vlaneseq
    %v1933 = vshrl.u32 %v1932, 7
    %v1934 = vsub.s32 2, %v1933
    %v1935 = vrot.slane %v1922, %v1934
    %v1936 = vlaneseq
    %v1937 = vshrl.u32 %v1936, 7
    %v1938 = vsub.s32 3, %v1937
    %v1939 = vrot.slane %v1922, %v1938
    %1944 = vmatprep.subr.bf16.mxu0 %v1856
    %1945 = vmatpush1.bf16.msra.mxu0 %v1855
    %1946 = vmatprep.subr.bf16.mxu0 %v1860
    %1947 = vmatpush1.bf16.msra.mxu0 %v1859
    %1948 = vmatprep.subr.bf16.mxu0 %v1864
    %1949 = vmatpush1.bf16.msra.mxu0 %v1863
    %1950 = vmatprep.subr.bf16.mxu0 %v1868
    %1951 = vmatpush1.bf16.msra.mxu0 %v1867
    %1952 = vmatprep.subr.bf16.mxu0 %v1872
    %1953 = vmatpush1.bf16.msra.mxu0 %v1871
    %1954 = vmatprep.subr.bf16.mxu0 %v1876
    %1955 = vmatpush1.bf16.msra.mxu0 %v1875
    %1956 = vmatprep.subr.bf16.mxu0 %v1880
    %1957 = vmatpush1.bf16.msra.mxu0 %v1879
    %1958 = vmatprep.subr.bf16.mxu0 %v1884
    %1959 = vmatpush1.bf16.msra.mxu0 %v1883
    %1960 = vmatprep.subr.bf16.mxu0 %v1888
    %1961 = vmatpush1.bf16.msra.mxu0 %v1887
    %1962 = vmatprep.subr.bf16.mxu0 %v1892
    %1963 = vmatpush1.bf16.msra.mxu0 %v1891
    %1964 = vmatprep.subr.bf16.mxu0 %v1896
    %1965 = vmatpush1.bf16.msra.mxu0 %v1895
    %1966 = vmatprep.subr.bf16.mxu0 %v1900
    %1967 = vmatpush1.bf16.msra.mxu0 %v1899
    %1968 = vmatprep.subr.bf16.mxu0 %v1904
    %1969 = vmatpush1.bf16.msra.mxu0 %v1903
    %1970 = vmatprep.subr.bf16.mxu0 %v1908
    %1971 = vmatpush1.bf16.msra.mxu0 %v1907
    %1972 = vmatprep.subr.bf16.mxu0 %v1912
    %1973 = vmatpush1.bf16.msra.mxu0 %v1911
    %1974 = vmatprep.subr.bf16.mxu0 %v1916
    %1975 = vmatpush1.bf16.msra.mxu0 %v1915
    %1976 = vmatprep.mubr.bf16.mxu0 %v1920
    %1977 = vmatmul.mubr.bf16.gmra.mrb[0].mxu0 %v1919
    %v1978 = vpop.f32.mrb[0].mxu0
    %v1979 = vadd.f32 %v1927, %v1978
    %v1980 = vpop.f32.mrb[0].mxu0
    %v1981 = vadd.f32 %v1931, %v1980
    %v1982 = vpop.f32.mrb[0].mxu0
    %v1983 = vpop.f32.mrb[0].mxu0
    %1984 = vdwg.mxu0
    %1985 = vmatprep.subr.bf16.mxu0 %v1858
    %1986 = vmatpush1.bf16.msra.mxu0 %v1857
    %1987 = vmatprep.subr.bf16.mxu0 %v1862
    %1988 = vmatpush1.bf16.msra.mxu0 %v1861
    %1989 = vmatprep.subr.bf16.mxu0 %v1866
    %1990 = vmatpush1.bf16.msra.mxu0 %v1865
    %1991 = vmatprep.subr.bf16.mxu0 %v1870
    %1992 = vmatpush1.bf16.msra.mxu0 %v1869
    %1993 = vmatprep.subr.bf16.mxu0 %v1874
    %1994 = vmatpush1.bf16.msra.mxu0 %v1873
    %1995 = vmatprep.subr.bf16.mxu0 %v1878
    %1996 = vmatpush1.bf16.msra.mxu0 %v1877
    %1997 = vmatprep.subr.bf16.mxu0 %v1882
    %1998 = vmatpush1.bf16.msra.mxu0 %v1881
    %1999 = vmatprep.subr.bf16.mxu0 %v1886
    %2000 = vmatpush1.bf16.msra.mxu0 %v1885
    %2001 = vmatprep.subr.bf16.mxu0 %v1890
    %2002 = vmatpush1.bf16.msra.mxu0 %v1889
    %2003 = vmatprep.subr.bf16.mxu0 %v1894
    %2004 = vmatpush1.bf16.msra.mxu0 %v1893
    %2005 = vmatprep.subr.bf16.mxu0 %v1898
    %2006 = vmatpush1.bf16.msra.mxu0 %v1897
    %2007 = vmatprep.subr.bf16.mxu0 %v1902
    %2008 = vmatpush1.bf16.msra.mxu0 %v1901
    %2009 = vmatprep.subr.bf16.mxu0 %v1906
    %2010 = vmatpush1.bf16.msra.mxu0 %v1905
    %2011 = vmatprep.subr.bf16.mxu0 %v1910
    %2012 = vmatpush1.bf16.msra.mxu0 %v1909
    %2013 = vmatprep.subr.bf16.mxu0 %v1914
    %2014 = vmatpush1.bf16.msra.mxu0 %v1913
    %2015 = vmatprep.subr.bf16.mxu0 %v1918
    %2016 = vmatpush1.bf16.msra.mxu0 %v1917
    %2017 = vmatprep.mubr.bf16.mxu0 %v1920
    %2018 = vmatmul.mubr.bf16.gmra.mrb[0].mxu0 %v1919
    %v2019 = vpop.f32.mrb[0].mxu0
    %v2020 = vadd.f32 %v1935, %v2019
    %v2021 = vpop.f32.mrb[0].mxu0
    %v2022 = vadd.f32 %v1939, %v2021
    %v2023 = vpop.f32.mrb[0].mxu0
    %v2024 = vpop.f32.mrb[0].mxu0
    %2025 = vdwg.mxu0
    %v2026 = vmax.f32 %v1979, 0.0
    %v2027 = vmax.f32 %v1981, 0.0
    %v2028 = vmax.f32 %v2020, 0.0
    %v2029 = vmax.f32 %v2022, 0.0
    %s2030 = smul.u32 %s1331, 8
    %s2031 = sshll.u32 %s2030, 4
    %2032 = dma.done %s286, %s2031
    %v2033 = vld [vmem:[#allocation12] sm:$0xff]
    %v2034 = vld [vmem:[#allocation12 + $0x8] sm:$0xff]
    %v2035 = vld [vmem:[#allocation12 + $0x10] sm:$0xff]
    %v2036 = vld [vmem:[#allocation12 + $0x18] sm:$0xff]
    %v2037 = vld [vmem:[#allocation12 + $0x20] sm:$0xff]
    %v2038 = vld [vmem:[#allocation12 + $0x28] sm:$0xff]
    %v2039 = vld [vmem:[#allocation12 + $0x30] sm:$0xff]
    %v2040 = vld [vmem:[#allocation12 + $0x38] sm:$0xff]
    %v2041 = vld [vmem:[#allocation12 + $0x40] sm:$0xff]
    %v2042 = vld [vmem:[#allocation12 + $0x48] sm:$0xff]
    %v2043 = vld [vmem:[#allocation12 + $0x50] sm:$0xff]
    %v2044 = vld [vmem:[#allocation12 + $0x58] sm:$0xff]
    %v2045 = vld [vmem:[#allocation12 + $0x60] sm:$0xff]
    %v2046 = vld [vmem:[#allocation12 + $0x68] sm:$0xff]
    %v2047 = vld [vmem:[#allocation12 + $0x70] sm:$0xff]
    %v2048 = vld [vmem:[#allocation12 + $0x78] sm:$0xff]
    %v2049 = vld [vmem:[#allocation12 + $0x80] sm:$0xff]
    %v2050 = vld [vmem:[#allocation12 + $0x88] sm:$0xff]
    %v2051 = vld [vmem:[#allocation12 + $0x90] sm:$0xff]
    %v2052 = vld [vmem:[#allocation12 + $0x98] sm:$0xff]
    %v2053 = vld [vmem:[#allocation12 + $0xa0] sm:$0xff]
    %v2054 = vld [vmem:[#allocation12 + $0xa8] sm:$0xff]
    %v2055 = vld [vmem:[#allocation12 + $0xb0] sm:$0xff]
    %v2056 = vld [vmem:[#allocation12 + $0xb8] sm:$0xff]
    %v2057 = vld [vmem:[#allocation12 + $0xc0] sm:$0xff]
    %v2058 = vld [vmem:[#allocation12 + $0xc8] sm:$0xff]
    %v2059 = vld [vmem:[#allocation12 + $0xd0] sm:$0xff]
    %v2060 = vld [vmem:[#allocation12 + $0xd8] sm:$0xff]
    %v2061 = vld [vmem:[#allocation12 + $0xe0] sm:$0xff]
    %v2062 = vld [vmem:[#allocation12 + $0xe8] sm:$0xff]
    %v2063 = vld [vmem:[#allocation12 + $0xf0] sm:$0xff]
    %v2064 = vld [vmem:[#allocation12 + $0xf8] sm:$0xff]
    %v2065 = vld [vmem:[#allocation12 + $0x100] sm:$0xff]
    %v2066 = vld [vmem:[#allocation12 + $0x108] sm:$0xff]
    %v2067 = vld [vmem:[#allocation12 + $0x110] sm:$0xff]
    %v2068 = vld [vmem:[#allocation12 + $0x118] sm:$0xff]
    %v2069 = vld [vmem:[#allocation12 + $0x120] sm:$0xff]
    %v2070 = vld [vmem:[#allocation12 + $0x128] sm:$0xff]
    %v2071 = vld [vmem:[#allocation12 + $0x130] sm:$0xff]
    %v2072 = vld [vmem:[#allocation12 + $0x138] sm:$0xff]
    %v2073 = vld [vmem:[#allocation12 + $0x140] sm:$0xff]
    %v2074 = vld [vmem:[#allocation12 + $0x148] sm:$0xff]
    %v2075 = vld [vmem:[#allocation12 + $0x150] sm:$0xff]
    %v2076 = vld [vmem:[#allocation12 + $0x158] sm:$0xff]
    %v2077 = vld [vmem:[#allocation12 + $0x160] sm:$0xff]
    %v2078 = vld [vmem:[#allocation12 + $0x168] sm:$0xff]
    %v2079 = vld [vmem:[#allocation12 + $0x170] sm:$0xff]
    %v2080 = vld [vmem:[#allocation12 + $0x178] sm:$0xff]
    %v2081 = vld [vmem:[#allocation12 + $0x180] sm:$0xff]
    %v2082 = vld [vmem:[#allocation12 + $0x188] sm:$0xff]
    %v2083 = vld [vmem:[#allocation12 + $0x190] sm:$0xff]
    %v2084 = vld [vmem:[#allocation12 + $0x198] sm:$0xff]
    %v2085 = vld [vmem:[#allocation12 + $0x1a0] sm:$0xff]
    %v2086 = vld [vmem:[#allocation12 + $0x1a8] sm:$0xff]
    %v2087 = vld [vmem:[#allocation12 + $0x1b0] sm:$0xff]
    %v2088 = vld [vmem:[#allocation12 + $0x1b8] sm:$0xff]
    %v2089 = vld [vmem:[#allocation12 + $0x1c0] sm:$0xff]
    %v2090 = vld [vmem:[#allocation12 + $0x1c8] sm:$0xff]
    %v2091 = vld [vmem:[#allocation12 + $0x1d0] sm:$0xff]
    %v2092 = vld [vmem:[#allocation12 + $0x1d8] sm:$0xff]
    %v2093 = vld [vmem:[#allocation12 + $0x1e0] sm:$0xff]
    %v2094 = vld [vmem:[#allocation12 + $0x1e8] sm:$0xff]
    %v2095 = vld [vmem:[#allocation12 + $0x1f0] sm:$0xff]
    %v2096 = vld [vmem:[#allocation12 + $0x1f8] sm:$0xff]
    %v2097 = vld [vmem:[#allocation12 + $0x200] sm:$0xff]
    %v2098 = vld [vmem:[#allocation12 + $0x208] sm:$0xff]
    %v2099 = vld [vmem:[#allocation12 + $0x210] sm:$0xff]
    %v2100 = vld [vmem:[#allocation12 + $0x218] sm:$0xff]
    %v2101 = vld [vmem:[#allocation12 + $0x220] sm:$0xff]
    %v2102 = vld [vmem:[#allocation12 + $0x228] sm:$0xff]
    %v2103 = vld [vmem:[#allocation12 + $0x230] sm:$0xff]
    %v2104 = vld [vmem:[#allocation12 + $0x238] sm:$0xff]
    %v2105 = vld [vmem:[#allocation12 + $0x240] sm:$0xff]
    %v2106 = vld [vmem:[#allocation12 + $0x248] sm:$0xff]
    %v2107 = vld [vmem:[#allocation12 + $0x250] sm:$0xff]
    %v2108 = vld [vmem:[#allocation12 + $0x258] sm:$0xff]
    %v2109 = vld [vmem:[#allocation12 + $0x260] sm:$0xff]
    %v2110 = vld [vmem:[#allocation12 + $0x268] sm:$0xff]
    %v2111 = vld [vmem:[#allocation12 + $0x270] sm:$0xff]
    %v2112 = vld [vmem:[#allocation12 + $0x278] sm:$0xff]
    %v2113 = vld [vmem:[#allocation12 + $0x280] sm:$0xff]
    %v2114 = vld [vmem:[#allocation12 + $0x288] sm:$0xff]
    %v2115 = vld [vmem:[#allocation12 + $0x290] sm:$0xff]
    %v2116 = vld [vmem:[#allocation12 + $0x298] sm:$0xff]
    %v2117 = vld [vmem:[#allocation12 + $0x2a0] sm:$0xff]
    %v2118 = vld [vmem:[#allocation12 + $0x2a8] sm:$0xff]
    %v2119 = vld [vmem:[#allocation12 + $0x2b0] sm:$0xff]
    %v2120 = vld [vmem:[#allocation12 + $0x2b8] sm:$0xff]
    %v2121 = vld [vmem:[#allocation12 + $0x2c0] sm:$0xff]
    %v2122 = vld [vmem:[#allocation12 + $0x2c8] sm:$0xff]
    %v2123 = vld [vmem:[#allocation12 + $0x2d0] sm:$0xff]
    %v2124 = vld [vmem:[#allocation12 + $0x2d8] sm:$0xff]
    %v2125 = vld [vmem:[#allocation12 + $0x2e0] sm:$0xff]
    %v2126 = vld [vmem:[#allocation12 + $0x2e8] sm:$0xff]
    %v2127 = vld [vmem:[#allocation12 + $0x2f0] sm:$0xff]
    %v2128 = vld [vmem:[#allocation12 + $0x2f8] sm:$0xff]
    %v2129 = vld [vmem:[#allocation12 + $0x300] sm:$0xff]
    %v2130 = vld [vmem:[#allocation12 + $0x308] sm:$0xff]
    %v2131 = vld [vmem:[#allocation12 + $0x310] sm:$0xff]
    %v2132 = vld [vmem:[#allocation12 + $0x318] sm:$0xff]
    %v2133 = vld [vmem:[#allocation12 + $0x320] sm:$0xff]
    %v2134 = vld [vmem:[#allocation12 + $0x328] sm:$0xff]
    %v2135 = vld [vmem:[#allocation12 + $0x330] sm:$0xff]
    %v2136 = vld [vmem:[#allocation12 + $0x338] sm:$0xff]
    %v2137 = vld [vmem:[#allocation12 + $0x340] sm:$0xff]
    %v2138 = vld [vmem:[#allocation12 + $0x348] sm:$0xff]
    %v2139 = vld [vmem:[#allocation12 + $0x350] sm:$0xff]
    %v2140 = vld [vmem:[#allocation12 + $0x358] sm:$0xff]
    %v2141 = vld [vmem:[#allocation12 + $0x360] sm:$0xff]
    %v2142 = vld [vmem:[#allocation12 + $0x368] sm:$0xff]
    %v2143 = vld [vmem:[#allocation12 + $0x370] sm:$0xff]
    %v2144 = vld [vmem:[#allocation12 + $0x378] sm:$0xff]
    %v2145 = vld [vmem:[#allocation12 + $0x380] sm:$0xff]
    %v2146 = vld [vmem:[#allocation12 + $0x388] sm:$0xff]
    %v2147 = vld [vmem:[#allocation12 + $0x390] sm:$0xff]
    %v2148 = vld [vmem:[#allocation12 + $0x398] sm:$0xff]
    %v2149 = vld [vmem:[#allocation12 + $0x3a0] sm:$0xff]
    %v2150 = vld [vmem:[#allocation12 + $0x3a8] sm:$0xff]
    %v2151 = vld [vmem:[#allocation12 + $0x3b0] sm:$0xff]
    %v2152 = vld [vmem:[#allocation12 + $0x3b8] sm:$0xff]
    %v2153 = vld [vmem:[#allocation12 + $0x3c0] sm:$0xff]
    %v2154 = vld [vmem:[#allocation12 + $0x3c8] sm:$0xff]
    %v2155 = vld [vmem:[#allocation12 + $0x3d0] sm:$0xff]
    %v2156 = vld [vmem:[#allocation12 + $0x3d8] sm:$0xff]
    %v2157 = vld [vmem:[#allocation12 + $0x3e0] sm:$0xff]
    %v2158 = vld [vmem:[#allocation12 + $0x3e8] sm:$0xff]
    %v2159 = vld [vmem:[#allocation12 + $0x3f0] sm:$0xff]
    %v2160 = vld [vmem:[#allocation12 + $0x3f8] sm:$0xff]
    %v2161 = vld [vmem:[#allocation12 + $0x400] sm:$0xff]
    %v2162 = vld [vmem:[#allocation12 + $0x408] sm:$0xff]
    %v2163 = vld [vmem:[#allocation12 + $0x410] sm:$0xff]
    %v2164 = vld [vmem:[#allocation12 + $0x418] sm:$0xff]
    %v2165 = vld [vmem:[#allocation12 + $0x420] sm:$0xff]
    %v2166 = vld [vmem:[#allocation12 + $0x428] sm:$0xff]
    %v2167 = vld [vmem:[#allocation12 + $0x430] sm:$0xff]
    %v2168 = vld [vmem:[#allocation12 + $0x438] sm:$0xff]
    %v2169 = vld [vmem:[#allocation12 + $0x440] sm:$0xff]
    %v2170 = vld [vmem:[#allocation12 + $0x448] sm:$0xff]
    %v2171 = vld [vmem:[#allocation12 + $0x450] sm:$0xff]
    %v2172 = vld [vmem:[#allocation12 + $0x458] sm:$0xff]
    %v2173 = vld [vmem:[#allocation12 + $0x460] sm:$0xff]
    %v2174 = vld [vmem:[#allocation12 + $0x468] sm:$0xff]
    %v2175 = vld [vmem:[#allocation12 + $0x470] sm:$0xff]
    %v2176 = vld [vmem:[#allocation12 + $0x478] sm:$0xff]
    %v2177 = vld [vmem:[#allocation12 + $0x480] sm:$0xff]
    %v2178 = vld [vmem:[#allocation12 + $0x488] sm:$0xff]
    %v2179 = vld [vmem:[#allocation12 + $0x490] sm:$0xff]
    %v2180 = vld [vmem:[#allocation12 + $0x498] sm:$0xff]
    %v2181 = vld [vmem:[#allocation12 + $0x4a0] sm:$0xff]
    %v2182 = vld [vmem:[#allocation12 + $0x4a8] sm:$0xff]
    %v2183 = vld [vmem:[#allocation12 + $0x4b0] sm:$0xff]
    %v2184 = vld [vmem:[#allocation12 + $0x4b8] sm:$0xff]
    %v2185 = vld [vmem:[#allocation12 + $0x4c0] sm:$0xff]
    %v2186 = vld [vmem:[#allocation12 + $0x4c8] sm:$0xff]
    %v2187 = vld [vmem:[#allocation12 + $0x4d0] sm:$0xff]
    %v2188 = vld [vmem:[#allocation12 + $0x4d8] sm:$0xff]
    %v2189 = vld [vmem:[#allocation12 + $0x4e0] sm:$0xff]
    %v2190 = vld [vmem:[#allocation12 + $0x4e8] sm:$0xff]
    %v2191 = vld [vmem:[#allocation12 + $0x4f0] sm:$0xff]
    %v2192 = vld [vmem:[#allocation12 + $0x4f8] sm:$0xff]
    %v2193 = vld [vmem:[#allocation12 + $0x500] sm:$0xff]
    %v2194 = vld [vmem:[#allocation12 + $0x508] sm:$0xff]
    %v2195 = vld [vmem:[#allocation12 + $0x510] sm:$0xff]
    %v2196 = vld [vmem:[#allocation12 + $0x518] sm:$0xff]
    %v2197 = vld [vmem:[#allocation12 + $0x520] sm:$0xff]
    %v2198 = vld [vmem:[#allocation12 + $0x528] sm:$0xff]
    %v2199 = vld [vmem:[#allocation12 + $0x530] sm:$0xff]
    %v2200 = vld [vmem:[#allocation12 + $0x538] sm:$0xff]
    %v2201 = vld [vmem:[#allocation12 + $0x540] sm:$0xff]
    %v2202 = vld [vmem:[#allocation12 + $0x548] sm:$0xff]
    %v2203 = vld [vmem:[#allocation12 + $0x550] sm:$0xff]
    %v2204 = vld [vmem:[#allocation12 + $0x558] sm:$0xff]
    %v2205 = vld [vmem:[#allocation12 + $0x560] sm:$0xff]
    %v2206 = vld [vmem:[#allocation12 + $0x568] sm:$0xff]
    %v2207 = vld [vmem:[#allocation12 + $0x570] sm:$0xff]
    %v2208 = vld [vmem:[#allocation12 + $0x578] sm:$0xff]
    %v2209 = vld [vmem:[#allocation12 + $0x580] sm:$0xff]
    %v2210 = vld [vmem:[#allocation12 + $0x588] sm:$0xff]
    %v2211 = vld [vmem:[#allocation12 + $0x590] sm:$0xff]
    %v2212 = vld [vmem:[#allocation12 + $0x598] sm:$0xff]
    %v2213 = vld [vmem:[#allocation12 + $0x5a0] sm:$0xff]
    %v2214 = vld [vmem:[#allocation12 + $0x5a8] sm:$0xff]
    %v2215 = vld [vmem:[#allocation12 + $0x5b0] sm:$0xff]
    %v2216 = vld [vmem:[#allocation12 + $0x5b8] sm:$0xff]
    %v2217 = vld [vmem:[#allocation12 + $0x5c0] sm:$0xff]
    %v2218 = vld [vmem:[#allocation12 + $0x5c8] sm:$0xff]
    %v2219 = vld [vmem:[#allocation12 + $0x5d0] sm:$0xff]
    %v2220 = vld [vmem:[#allocation12 + $0x5d8] sm:$0xff]
    %v2221 = vld [vmem:[#allocation12 + $0x5e0] sm:$0xff]
    %v2222 = vld [vmem:[#allocation12 + $0x5e8] sm:$0xff]
    %v2223 = vld [vmem:[#allocation12 + $0x5f0] sm:$0xff]
    %v2224 = vld [vmem:[#allocation12 + $0x5f8] sm:$0xff]
    %v2225 = vld [vmem:[#allocation12 + $0x600] sm:$0xff]
    %v2226 = vld [vmem:[#allocation12 + $0x608] sm:$0xff]
    %v2227 = vld [vmem:[#allocation12 + $0x610] sm:$0xff]
    %v2228 = vld [vmem:[#allocation12 + $0x618] sm:$0xff]
    %v2229 = vld [vmem:[#allocation12 + $0x620] sm:$0xff]
    %v2230 = vld [vmem:[#allocation12 + $0x628] sm:$0xff]
    %v2231 = vld [vmem:[#allocation12 + $0x630] sm:$0xff]
    %v2232 = vld [vmem:[#allocation12 + $0x638] sm:$0xff]
    %v2233 = vld [vmem:[#allocation12 + $0x640] sm:$0xff]
    %v2234 = vld [vmem:[#allocation12 + $0x648] sm:$0xff]
    %v2235 = vld [vmem:[#allocation12 + $0x650] sm:$0xff]
    %v2236 = vld [vmem:[#allocation12 + $0x658] sm:$0xff]
    %v2237 = vld [vmem:[#allocation12 + $0x660] sm:$0xff]
    %v2238 = vld [vmem:[#allocation12 + $0x668] sm:$0xff]
    %v2239 = vld [vmem:[#allocation12 + $0x670] sm:$0xff]
    %v2240 = vld [vmem:[#allocation12 + $0x678] sm:$0xff]
    %v2241 = vld [vmem:[#allocation12 + $0x680] sm:$0xff]
    %v2242 = vld [vmem:[#allocation12 + $0x688] sm:$0xff]
    %v2243 = vld [vmem:[#allocation12 + $0x690] sm:$0xff]
    %v2244 = vld [vmem:[#allocation12 + $0x698] sm:$0xff]
    %v2245 = vld [vmem:[#allocation12 + $0x6a0] sm:$0xff]
    %v2246 = vld [vmem:[#allocation12 + $0x6a8] sm:$0xff]
    %v2247 = vld [vmem:[#allocation12 + $0x6b0] sm:$0xff]
    %v2248 = vld [vmem:[#allocation12 + $0x6b8] sm:$0xff]
    %v2249 = vld [vmem:[#allocation12 + $0x6c0] sm:$0xff]
    %v2250 = vld [vmem:[#allocation12 + $0x6c8] sm:$0xff]
    %v2251 = vld [vmem:[#allocation12 + $0x6d0] sm:$0xff]
    %v2252 = vld [vmem:[#allocation12 + $0x6d8] sm:$0xff]
    %v2253 = vld [vmem:[#allocation12 + $0x6e0] sm:$0xff]
    %v2254 = vld [vmem:[#allocation12 + $0x6e8] sm:$0xff]
    %v2255 = vld [vmem:[#allocation12 + $0x6f0] sm:$0xff]
    %v2256 = vld [vmem:[#allocation12 + $0x6f8] sm:$0xff]
    %v2257 = vld [vmem:[#allocation12 + $0x700] sm:$0xff]
    %v2258 = vld [vmem:[#allocation12 + $0x708] sm:$0xff]
    %v2259 = vld [vmem:[#allocation12 + $0x710] sm:$0xff]
    %v2260 = vld [vmem:[#allocation12 + $0x718] sm:$0xff]
    %v2261 = vld [vmem:[#allocation12 + $0x720] sm:$0xff]
    %v2262 = vld [vmem:[#allocation12 + $0x728] sm:$0xff]
    %v2263 = vld [vmem:[#allocation12 + $0x730] sm:$0xff]
    %v2264 = vld [vmem:[#allocation12 + $0x738] sm:$0xff]
    %v2265 = vld [vmem:[#allocation12 + $0x740] sm:$0xff]
    %v2266 = vld [vmem:[#allocation12 + $0x748] sm:$0xff]
    %v2267 = vld [vmem:[#allocation12 + $0x750] sm:$0xff]
    %v2268 = vld [vmem:[#allocation12 + $0x758] sm:$0xff]
    %v2269 = vld [vmem:[#allocation12 + $0x760] sm:$0xff]
    %v2270 = vld [vmem:[#allocation12 + $0x768] sm:$0xff]
    %v2271 = vld [vmem:[#allocation12 + $0x770] sm:$0xff]
    %v2272 = vld [vmem:[#allocation12 + $0x778] sm:$0xff]
    %v2273 = vld [vmem:[#allocation12 + $0x780] sm:$0xff]
    %v2274 = vld [vmem:[#allocation12 + $0x788] sm:$0xff]
    %v2275 = vld [vmem:[#allocation12 + $0x790] sm:$0xff]
    %v2276 = vld [vmem:[#allocation12 + $0x798] sm:$0xff]
    %v2277 = vld [vmem:[#allocation12 + $0x7a0] sm:$0xff]
    %v2278 = vld [vmem:[#allocation12 + $0x7a8] sm:$0xff]
    %v2279 = vld [vmem:[#allocation12 + $0x7b0] sm:$0xff]
    %v2280 = vld [vmem:[#allocation12 + $0x7b8] sm:$0xff]
    %v2281 = vld [vmem:[#allocation12 + $0x7c0] sm:$0xff]
    %v2282 = vld [vmem:[#allocation12 + $0x7c8] sm:$0xff]
    %v2283 = vld [vmem:[#allocation12 + $0x7d0] sm:$0xff]
    %v2284 = vld [vmem:[#allocation12 + $0x7d8] sm:$0xff]
    %v2285 = vld [vmem:[#allocation12 + $0x7e0] sm:$0xff]
    %v2286 = vld [vmem:[#allocation12 + $0x7e8] sm:$0xff]
    %v2287 = vld [vmem:[#allocation12 + $0x7f0] sm:$0xff]
    %v2288 = vld [vmem:[#allocation12 + $0x7f8] sm:$0xff]
    %v2289 = vpack.c.bf16 %v2026, %v2026
    %v2290 = vpack.c.bf16 %v2027, %v2027
    %v2291 = vpack.c.bf16 %v2028, %v2028
    %v2292 = vpack.c.bf16 %v2029, %v2029
    %s2293 = scalar_lea.vmem [#allocation18], 66
    %v2294 = vld [vmem:[%s2293] ss:$8 sm:$0xf]
    %v2295 = vld [vmem:[%s2293] ss:$8 sm:$0xf0]
    %v2296 = vor.u32 %v2294, %v2295
    %v2298 = vlaneseq
    %v2299 = vshrl.u32 %v2298, 7
    %v2300 = vsub.s32 0, %v2299
    %v2301 = vrot.slane %v2296, %v2300
    %v2302 = vlaneseq
    %v2303 = vshrl.u32 %v2302, 7
    %v2304 = vsub.s32 1, %v2303
    %v2305 = vrot.slane %v2296, %v2304
    %v2306 = vlaneseq
    %v2307 = vshrl.u32 %v2306, 7
    %v2308 = vsub.s32 2, %v2307
    %v2309 = vrot.slane %v2296, %v2308
    %v2310 = vlaneseq
    %v2311 = vshrl.u32 %v2310, 7
    %v2312 = vsub.s32 3, %v2311
    %v2313 = vrot.slane %v2296, %v2312
    %v2314 = vlaneseq
    %v2315 = vshrl.u32 %v2314, 7
    %v2316 = vsub.s32 4, %v2315
    %v2317 = vrot.slane %v2296, %v2316
    %v2318 = vlaneseq
    %v2319 = vshrl.u32 %v2318, 7
    %v2320 = vsub.s32 5, %v2319
    %v2321 = vrot.slane %v2296, %v2320
    %v2322 = vlaneseq
    %v2323 = vshrl.u32 %v2322, 7
    %v2324 = vsub.s32 6, %v2323
    %v2325 = vrot.slane %v2296, %v2324
    %v2326 = vlaneseq
    %v2327 = vshrl.u32 %v2326, 7
    %v2328 = vsub.s32 7, %v2327
    %v2329 = vrot.slane %v2296, %v2328
    %2338 = vmatprep.subr.bf16.mxu0 %v2034
    %2339 = vmatpush1.bf16.msra.mxu0 %v2033
    %2340 = vmatprep.subr.bf16.mxu0 %v2042
    %2341 = vmatpush1.bf16.msra.mxu0 %v2041
    %2342 = vmatprep.subr.bf16.mxu0 %v2050
    %2343 = vmatpush1.bf16.msra.mxu0 %v2049
    %2344 = vmatprep.subr.bf16.mxu0 %v2058
    %2345 = vmatpush1.bf16.msra.mxu0 %v2057
    %2346 = vmatprep.subr.bf16.mxu0 %v2066
    %2347 = vmatpush1.bf16.msra.mxu0 %v2065
    %2348 = vmatprep.subr.bf16.mxu0 %v2074
    %2349 = vmatpush1.bf16.msra.mxu0 %v2073
    %2350 = vmatprep.subr.bf16.mxu0 %v2082
    %2351 = vmatpush1.bf16.msra.mxu0 %v2081
    %2352 = vmatprep.subr.bf16.mxu0 %v2090
    %2353 = vmatpush1.bf16.msra.mxu0 %v2089
    %2354 = vmatprep.subr.bf16.mxu0 %v2098
    %2355 = vmatpush1.bf16.msra.mxu0 %v2097
    %2356 = vmatprep.subr.bf16.mxu0 %v2106
    %2357 = vmatpush1.bf16.msra.mxu0 %v2105
    %2358 = vmatprep.subr.bf16.mxu0 %v2114
    %2359 = vmatpush1.bf16.msra.mxu0 %v2113
    %2360 = vmatprep.subr.bf16.mxu0 %v2122
    %2361 = vmatpush1.bf16.msra.mxu0 %v2121
    %2362 = vmatprep.subr.bf16.mxu0 %v2130
    %2363 = vmatpush1.bf16.msra.mxu0 %v2129
    %2364 = vmatprep.subr.bf16.mxu0 %v2138
    %2365 = vmatpush1.bf16.msra.mxu0 %v2137
    %2366 = vmatprep.subr.bf16.mxu0 %v2146
    %2367 = vmatpush1.bf16.msra.mxu0 %v2145
    %2368 = vmatprep.subr.bf16.mxu0 %v2154
    %2369 = vmatpush1.bf16.msra.mxu0 %v2153
    %2370 = vmatprep.mubr.bf16.mxu0 %v2290
    %2371 = vmatmul.mubr.bf16.gmra.mrb[0].mxu0 %v2289
    %v2372 = vpop.f32.mrb[0].mxu0
    %v2373 = vadd.f32 %v2301, %v2372
    %v2374 = vpop.f32.mrb[0].mxu0
    %v2375 = vadd.f32 %v2305, %v2374
    %v2376 = vpop.f32.mrb[0].mxu0
    %v2377 = vpop.f32.mrb[0].mxu0
    %2378 = vdwg.mxu0
    %2379 = vmatprep.subr.bf16.mxu0 %v2162
    %2380 = vmatpush1.bf16.msra.mxu0 %v2161
    %2381 = vmatprep.subr.bf16.mxu0 %v2170
    %2382 = vmatpush1.bf16.msra.mxu0 %v2169
    %2383 = vmatprep.subr.bf16.mxu0 %v2178
    %2384 = vmatpush1.bf16.msra.mxu0 %v2177
    %2385 = vmatprep.subr.bf16.mxu0 %v2186
    %2386 = vmatpush1.bf16.msra.mxu0 %v2185
    %2387 = vmatprep.subr.bf16.mxu0 %v2194
    %2388 = vmatpush1.bf16.msra.mxu0 %v2193
    %2389 = vmatprep.subr.bf16.mxu0 %v2202
    %2390 = vmatpush1.bf16.msra.mxu0 %v2201
    %2391 = vmatprep.subr.bf16.mxu0 %v2210
    %2392 = vmatpush1.bf16.msra.mxu0 %v2209
    %2393 = vmatprep.subr.bf16.mxu0 %v2218
    %2394 = vmatpush1.bf16.msra.mxu0 %v2217
    %2395 = vmatprep.subr.bf16.mxu0 %v2226
    %2396 = vmatpush1.bf16.msra.mxu0 %v2225
    %2397 = vmatprep.subr.bf16.mxu0 %v2234
    %2398 = vmatpush1.bf16.msra.mxu0 %v2233
    %2399 = vmatprep.subr.bf16.mxu0 %v2242
    %2400 = vmatpush1.bf16.msra.mxu0 %v2241
    %2401 = vmatprep.subr.bf16.mxu0 %v2250
    %2402 = vmatpush1.bf16.msra.mxu0 %v2249
    %2403 = vmatprep.subr.bf16.mxu0 %v2258
    %2404 = vmatpush1.bf16.msra.mxu0 %v2257
    %2405 = vmatprep.subr.bf16.mxu0 %v2266
    %2406 = vmatpush1.bf16.msra.mxu0 %v2265
    %2407 = vmatprep.subr.bf16.mxu0 %v2274
    %2408 = vmatpush1.bf16.msra.mxu0 %v2273
    %2409 = vmatprep.subr.bf16.mxu0 %v2282
    %2410 = vmatpush1.bf16.msra.mxu0 %v2281
    %2411 = vmatprep.mubr.bf16.mxu0 %v2292
    %2412 = vmatmul.mubr.bf16.gmra.mrb[0].mxu0 %v2291
    %v2413 = vpop.f32.mrb[0].mxu0
    %v2414 = vadd.f32 %v2373, %v2413
    %v2415 = vpop.f32.mrb[0].mxu0
    %v2416 = vadd.f32 %v2375, %v2415
    %v2417 = vpop.f32.mrb[0].mxu0
    %v2418 = vpop.f32.mrb[0].mxu0
    %2419 = vdwg.mxu0
    %2420 = vmatprep.subr.bf16.mxu0 %v2036
    %2421 = vmatpush1.bf16.msra.mxu0 %v2035
    %2422 = vmatprep.subr.bf16.mxu0 %v2044
    %2423 = vmatpush1.bf16.msra.mxu0 %v2043
    %2424 = vmatprep.subr.bf16.mxu0 %v2052
    %2425 = vmatpush1.bf16.msra.mxu0 %v2051
    %2426 = vmatprep.subr.bf16.mxu0 %v2060
    %2427 = vmatpush1.bf16.msra.mxu0 %v2059
    %2428 = vmatprep.subr.bf16.mxu0 %v2068
    %2429 = vmatpush1.bf16.msra.mxu0 %v2067
    %2430 = vmatprep.subr.bf16.mxu0 %v2076
    %2431 = vmatpush1.bf16.msra.mxu0 %v2075
    %2432 = vmatprep.subr.bf16.mxu0 %v2084
    %2433 = vmatpush1.bf16.msra.mxu0 %v2083
    %2434 = vmatprep.subr.bf16.mxu0 %v2092
    %2435 = vmatpush1.bf16.msra.mxu0 %v2091
    %2436 = vmatprep.subr.bf16.mxu0 %v2100
    %2437 = vmatpush1.bf16.msra.mxu0 %v2099
    %2438 = vmatprep.subr.bf16.mxu0 %v2108
    %2439 = vmatpush1.bf16.msra.mxu0 %v2107
    %2440 = vmatprep.subr.bf16.mxu0 %v2116
    %2441 = vmatpush1.bf16.msra.mxu0 %v2115
    %2442 = vmatprep.subr.bf16.mxu0 %v2124
    %2443 = vmatpush1.bf16.msra.mxu0 %v2123
    %2444 = vmatprep.subr.bf16.mxu0 %v2132
    %2445 = vmatpush1.bf16.msra.mxu0 %v2131
    %2446 = vmatprep.subr.bf16.mxu0 %v2140
    %2447 = vmatpush1.bf16.msra.mxu0 %v2139
    %2448 = vmatprep.subr.bf16.mxu0 %v2148
    %2449 = vmatpush1.bf16.msra.mxu0 %v2147
    %2450 = vmatprep.subr.bf16.mxu0 %v2156
    %2451 = vmatpush1.bf16.msra.mxu0 %v2155
    %2452 = vmatprep.mubr.bf16.mxu0 %v2290
    %2453 = vmatmul.mubr.bf16.gmra.mrb[0].mxu0 %v2289
    %v2454 = vpop.f32.mrb[0].mxu0
    %v2455 = vadd.f32 %v2309, %v2454
    %v2456 = vpop.f32.mrb[0].mxu0
    %v2457 = vadd.f32 %v2313, %v2456
    %v2458 = vpop.f32.mrb[0].mxu0
    %v2459 = vpop.f32.mrb[0].mxu0
    %2460 = vdwg.mxu0
    %2461 = vmatprep.subr.bf16.mxu0 %v2164
    %2462 = vmatpush1.bf16.msra.mxu0 %v2163
    %2463 = vmatprep.subr.bf16.mxu0 %v2172
    %2464 = vmatpush1.bf16.msra.mxu0 %v2171
    %2465 = vmatprep.subr.bf16.mxu0 %v2180
    %2466 = vmatpush1.bf16.msra.mxu0 %v2179
    %2467 = vmatprep.subr.bf16.mxu0 %v2188
    %2468 = vmatpush1.bf16.msra.mxu0 %v2187
    %2469 = vmatprep.subr.bf16.mxu0 %v2196
    %2470 = vmatpush1.bf16.msra.mxu0 %v2195
    %2471 = vmatprep.subr.bf16.mxu0 %v2204
    %2472 = vmatpush1.bf16.msra.mxu0 %v2203
    %2473 = vmatprep.subr.bf16.mxu0 %v2212
    %2474 = vmatpush1.bf16.msra.mxu0 %v2211
    %2475 = vmatprep.subr.bf16.mxu0 %v2220
    %2476 = vmatpush1.bf16.msra.mxu0 %v2219
    %2477 = vmatprep.subr.bf16.mxu0 %v2228
    %2478 = vmatpush1.bf16.msra.mxu0 %v2227
    %2479 = vmatprep.subr.bf16.mxu0 %v2236
    %2480 = vmatpush1.bf16.msra.mxu0 %v2235
    %2481 = vmatprep.subr.bf16.mxu0 %v2244
    %2482 = vmatpush1.bf16.msra.mxu0 %v2243
    %2483 = vmatprep.subr.bf16.mxu0 %v2252
    %2484 = vmatpush1.bf16.msra.mxu0 %v2251
    %2485 = vmatprep.subr.bf16.mxu0 %v2260
    %2486 = vmatpush1.bf16.msra.mxu0 %v2259
    %2487 = vmatprep.subr.bf16.mxu0 %v2268
    %2488 = vmatpush1.bf16.msra.mxu0 %v2267
    %2489 = vmatprep.subr.bf16.mxu0 %v2276
    %2490 = vmatpush1.bf16.msra.mxu0 %v2275
    %2491 = vmatprep.subr.bf16.mxu0 %v2284
    %2492 = vmatpush1.bf16.msra.mxu0 %v2283
    %2493 = vmatprep.mubr.bf16.mxu0 %v2292
    %2494 = vmatmul.mubr.bf16.gmra.mrb[0].mxu0 %v2291
    %v2495 = vpop.f32.mrb[0].mxu0
    %v2496 = vadd.f32 %v2455, %v2495
    %v2497 = vpop.f32.mrb[0].mxu0
    %v2498 = vadd.f32 %v2457, %v2497
    %v2499 = vpop.f32.mrb[0].mxu0
    %v2500 = vpop.f32.mrb[0].mxu0
    %2501 = vdwg.mxu0
    %2502 = vmatprep.subr.bf16.mxu0 %v2038
    %2503 = vmatpush1.bf16.msra.mxu0 %v2037
    %2504 = vmatprep.subr.bf16.mxu0 %v2046
    %2505 = vmatpush1.bf16.msra.mxu0 %v2045
    %2506 = vmatprep.subr.bf16.mxu0 %v2054
    %2507 = vmatpush1.bf16.msra.mxu0 %v2053
    %2508 = vmatprep.subr.bf16.mxu0 %v2062
    %2509 = vmatpush1.bf16.msra.mxu0 %v2061
    %2510 = vmatprep.subr.bf16.mxu0 %v2070
    %2511 = vmatpush1.bf16.msra.mxu0 %v2069
    %2512 = vmatprep.subr.bf16.mxu0 %v2078
    %2513 = vmatpush1.bf16.msra.mxu0 %v2077
    %2514 = vmatprep.subr.bf16.mxu0 %v2086
    %2515 = vmatpush1.bf16.msra.mxu0 %v2085
    %2516 = vmatprep.subr.bf16.mxu0 %v2094
    %2517 = vmatpush1.bf16.msra.mxu0 %v2093
    %2518 = vmatprep.subr.bf16.mxu0 %v2102
    %2519 = vmatpush1.bf16.msra.mxu0 %v2101
    %2520 = vmatprep.subr.bf16.mxu0 %v2110
    %2521 = vmatpush1.bf16.msra.mxu0 %v2109
    %2522 = vmatprep.subr.bf16.mxu0 %v2118
    %2523 = vmatpush1.bf16.msra.mxu0 %v2117
    %2524 = vmatprep.subr.bf16.mxu0 %v2126
    %2525 = vmatpush1.bf16.msra.mxu0 %v2125
    %2526 = vmatprep.subr.bf16.mxu0 %v2134
    %2527 = vmatpush1.bf16.msra.mxu0 %v2133
    %2528 = vmatprep.subr.bf16.mxu0 %v2142
    %2529 = vmatpush1.bf16.msra.mxu0 %v2141
    %2530 = vmatprep.subr.bf16.mxu0 %v2150
    %2531 = vmatpush1.bf16.msra.mxu0 %v2149
    %2532 = vmatprep.subr.bf16.mxu0 %v2158
    %2533 = vmatpush1.bf16.msra.mxu0 %v2157
    %2534 = vmatprep.mubr.bf16.mxu0 %v2290
    %2535 = vmatmul.mubr.bf16.gmra.mrb[0].mxu0 %v2289
    %v2536 = vpop.f32.mrb[0].mxu0
    %v2537 = vadd.f32 %v2317, %v2536
    %v2538 = vpop.f32.mrb[0].mxu0
    %v2539 = vadd.f32 %v2321, %v2538
    %v2540 = vpop.f32.mrb[0].mxu0
    %v2541 = vpop.f32.mrb[0].mxu0
    %2542 = vdwg.mxu0
    %2543 = vmatprep.subr.bf16.mxu0 %v2166
    %2544 = vmatpush1.bf16.msra.mxu0 %v2165
    %2545 = vmatprep.subr.bf16.mxu0 %v2174
    %2546 = vmatpush1.bf16.msra.mxu0 %v2173
    %2547 = vmatprep.subr.bf16.mxu0 %v2182
    %2548 = vmatpush1.bf16.msra.mxu0 %v2181
    %2549 = vmatprep.subr.bf16.mxu0 %v2190
    %2550 = vmatpush1.bf16.msra.mxu0 %v2189
    %2551 = vmatprep.subr.bf16.mxu0 %v2198
    %2552 = vmatpush1.bf16.msra.mxu0 %v2197
    %2553 = vmatprep.subr.bf16.mxu0 %v2206
    %2554 = vmatpush1.bf16.msra.mxu0 %v2205
    %2555 = vmatprep.subr.bf16.mxu0 %v2214
    %2556 = vmatpush1.bf16.msra.mxu0 %v2213
    %2557 = vmatprep.subr.bf16.mxu0 %v2222
    %2558 = vmatpush1.bf16.msra.mxu0 %v2221
    %2559 = vmatprep.subr.bf16.mxu0 %v2230
    %2560 = vmatpush1.bf16.msra.mxu0 %v2229
    %2561 = vmatprep.subr.bf16.mxu0 %v2238
    %2562 = vmatpush1.bf16.msra.mxu0 %v2237
    %2563 = vmatprep.subr.bf16.mxu0 %v2246
    %2564 = vmatpush1.bf16.msra.mxu0 %v2245
    %2565 = vmatprep.subr.bf16.mxu0 %v2254
    %2566 = vmatpush1.bf16.msra.mxu0 %v2253
    %2567 = vmatprep.subr.bf16.mxu0 %v2262
    %2568 = vmatpush1.bf16.msra.mxu0 %v2261
    %2569 = vmatprep.subr.bf16.mxu0 %v2270
    %2570 = vmatpush1.bf16.msra.mxu0 %v2269
    %2571 = vmatprep.subr.bf16.mxu0 %v2278
    %2572 = vmatpush1.bf16.msra.mxu0 %v2277
    %2573 = vmatprep.subr.bf16.mxu0 %v2286
    %2574 = vmatpush1.bf16.msra.mxu0 %v2285
    %2575 = vmatprep.mubr.bf16.mxu0 %v2292
    %2576 = vmatmul.mubr.bf16.gmra.mrb[0].mxu0 %v2291
    %v2577 = vpop.f32.mrb[0].mxu0
    %v2578 = vadd.f32 %v2537, %v2577
    %v2579 = vpop.f32.mrb[0].mxu0
    %v2580 = vadd.f32 %v2539, %v2579
    %v2581 = vpop.f32.mrb[0].mxu0
    %v2582 = vpop.f32.mrb[0].mxu0
    %2583 = vdwg.mxu0
    %2584 = vmatprep.subr.bf16.mxu0 %v2040
    %2585 = vmatpush1.bf16.msra.mxu0 %v2039
    %2586 = vmatprep.subr.bf16.mxu0 %v2048
    %2587 = vmatpush1.bf16.msra.mxu0 %v2047
    %2588 = vmatprep.subr.bf16.mxu0 %v2056
    %2589 = vmatpush1.bf16.msra.mxu0 %v2055
    %2590 = vmatprep.subr.bf16.mxu0 %v2064
    %2591 = vmatpush1.bf16.msra.mxu0 %v2063
    %2592 = vmatprep.subr.bf16.mxu0 %v2072
    %2593 = vmatpush1.bf16.msra.mxu0 %v2071
    %2594 = vmatprep.subr.bf16.mxu0 %v2080
    %2595 = vmatpush1.bf16.msra.mxu0 %v2079
    %2596 = vmatprep.subr.bf16.mxu0 %v2088
    %2597 = vmatpush1.bf16.msra.mxu0 %v2087
    %2598 = vmatprep.subr.bf16.mxu0 %v2096
    %2599 = vmatpush1.bf16.msra.mxu0 %v2095
    %2600 = vmatprep.subr.bf16.mxu0 %v2104
    %2601 = vmatpush1.bf16.msra.mxu0 %v2103
    %2602 = vmatprep.subr.bf16.mxu0 %v2112
    %2603 = vmatpush1.bf16.msra.mxu0 %v2111
    %2604 = vmatprep.subr.bf16.mxu0 %v2120
    %2605 = vmatpush1.bf16.msra.mxu0 %v2119
    %2606 = vmatprep.subr.bf16.mxu0 %v2128
    %2607 = vmatpush1.bf16.msra.mxu0 %v2127
    %2608 = vmatprep.subr.bf16.mxu0 %v2136
    %2609 = vmatpush1.bf16.msra.mxu0 %v2135
    %2610 = vmatprep.subr.bf16.mxu0 %v2144
    %2611 = vmatpush1.bf16.msra.mxu0 %v2143
    %2612 = vmatprep.subr.bf16.mxu0 %v2152
    %2613 = vmatpush1.bf16.msra.mxu0 %v2151
    %2614 = vmatprep.subr.bf16.mxu0 %v2160
    %2615 = vmatpush1.bf16.msra.mxu0 %v2159
    %2616 = vmatprep.mubr.bf16.mxu0 %v2290
    %2617 = vmatmul.mubr.bf16.gmra.mrb[0].mxu0 %v2289
    %v2618 = vpop.f32.mrb[0].mxu0
    %v2619 = vadd.f32 %v2325, %v2618
    %v2620 = vpop.f32.mrb[0].mxu0
    %v2621 = vadd.f32 %v2329, %v2620
    %v2622 = vpop.f32.mrb[0].mxu0
    %v2623 = vpop.f32.mrb[0].mxu0
    %2624 = vdwg.mxu0
    %2625 = vmatprep.subr.bf16.mxu0 %v2168
    %2626 = vmatpush1.bf16.msra.mxu0 %v2167
    %2627 = vmatprep.subr.bf16.mxu0 %v2176
    %2628 = vmatpush1.bf16.msra.mxu0 %v2175
    %2629 = vmatprep.subr.bf16.mxu0 %v2184
    %2630 = vmatpush1.bf16.msra.mxu0 %v2183
    %2631 = vmatprep.subr.bf16.mxu0 %v2192
    %2632 = vmatpush1.bf16.msra.mxu0 %v2191
    %2633 = vmatprep.subr.bf16.mxu0 %v2200
    %2634 = vmatpush1.bf16.msra.mxu0 %v2199
    %2635 = vmatprep.subr.bf16.mxu0 %v2208
    %2636 = vmatpush1.bf16.msra.mxu0 %v2207
    %2637 = vmatprep.subr.bf16.mxu0 %v2216
    %2638 = vmatpush1.bf16.msra.mxu0 %v2215
    %2639 = vmatprep.subr.bf16.mxu0 %v2224
    %2640 = vmatpush1.bf16.msra.mxu0 %v2223
    %2641 = vmatprep.subr.bf16.mxu0 %v2232
    %2642 = vmatpush1.bf16.msra.mxu0 %v2231
    %2643 = vmatprep.subr.bf16.mxu0 %v2240
    %2644 = vmatpush1.bf16.msra.mxu0 %v2239
    %2645 = vmatprep.subr.bf16.mxu0 %v2248
    %2646 = vmatpush1.bf16.msra.mxu0 %v2247
    %2647 = vmatprep.subr.bf16.mxu0 %v2256
    %2648 = vmatpush1.bf16.msra.mxu0 %v2255
    %2649 = vmatprep.subr.bf16.mxu0 %v2264
    %2650 = vmatpush1.bf16.msra.mxu0 %v2263
    %2651 = vmatprep.subr.bf16.mxu0 %v2272
    %2652 = vmatpush1.bf16.msra.mxu0 %v2271
    %2653 = vmatprep.subr.bf16.mxu0 %v2280
    %2654 = vmatpush1.bf16.msra.mxu0 %v2279
    %2655 = vmatprep.subr.bf16.mxu0 %v2288
    %2656 = vmatpush1.bf16.msra.mxu0 %v2287
    %2657 = vmatprep.mubr.bf16.mxu0 %v2292
    %2658 = vmatmul.mubr.bf16.gmra.mrb[0].mxu0 %v2291
    %v2659 = vpop.f32.mrb[0].mxu0
    %v2660 = vadd.f32 %v2619, %v2659
    %v2661 = vpop.f32.mrb[0].mxu0
    %v2662 = vadd.f32 %v2621, %v2661
    %v2663 = vpop.f32.mrb[0].mxu0
    %v2664 = vpop.f32.mrb[0].mxu0
    %2665 = vdwg.mxu0
    %v2666 = vmax.f32 %v2414, 0.0
    %v2667 = vmax.f32 %v2416, 0.0
    %v2668 = vmax.f32 %v2496, 0.0
    %v2669 = vmax.f32 %v2498, 0.0
    %v2670 = vmax.f32 %v2578, 0.0
    %v2671 = vmax.f32 %v2580, 0.0
    %v2672 = vmax.f32 %v2660, 0.0
    %v2673 = vmax.f32 %v2662, 0.0
    %s2674 = smul.u32 %s708, 2
    %s2675 = sshll.u32 %s2674, 4
    %2676 = dma.done %s321, %s2675
    %v2677 = vld [vmem:[#allocation13] sm:$0xff]
    %v2678 = vld [vmem:[#allocation13 + $0x8] sm:$0xff]
    %v2679 = vld [vmem:[#allocation13 + $0x10] sm:$0xff]
    %v2680 = vld [vmem:[#allocation13 + $0x18] sm:$0xff]
    %v2681 = vld [vmem:[#allocation13 + $0x20] sm:$0xff]
    %v2682 = vld [vmem:[#allocation13 + $0x28] sm:$0xff]
    %v2683 = vld [vmem:[#allocation13 + $0x30] sm:$0xff]
    %v2684 = vld [vmem:[#allocation13 + $0x38] sm:$0xff]
    %v2685 = vld [vmem:[#allocation13 + $0x40] sm:$0xff]
    %v2686 = vld [vmem:[#allocation13 + $0x48] sm:$0xff]
    %v2687 = vld [vmem:[#allocation13 + $0x50] sm:$0xff]
    %v2688 = vld [vmem:[#allocation13 + $0x58] sm:$0xff]
    %v2689 = vld [vmem:[#allocation13 + $0x60] sm:$0xff]
    %v2690 = vld [vmem:[#allocation13 + $0x68] sm:$0xff]
    %v2691 = vld [vmem:[#allocation13 + $0x70] sm:$0xff]
    %v2692 = vld [vmem:[#allocation13 + $0x78] sm:$0xff]
    %v2693 = vld [vmem:[#allocation13 + $0x80] sm:$0xff]
    %v2694 = vld [vmem:[#allocation13 + $0x88] sm:$0xff]
    %v2695 = vld [vmem:[#allocation13 + $0x90] sm:$0xff]
    %v2696 = vld [vmem:[#allocation13 + $0x98] sm:$0xff]
    %v2697 = vld [vmem:[#allocation13 + $0xa0] sm:$0xff]
    %v2698 = vld [vmem:[#allocation13 + $0xa8] sm:$0xff]
    %v2699 = vld [vmem:[#allocation13 + $0xb0] sm:$0xff]
    %v2700 = vld [vmem:[#allocation13 + $0xb8] sm:$0xff]
    %v2701 = vld [vmem:[#allocation13 + $0xc0] sm:$0xff]
    %v2702 = vld [vmem:[#allocation13 + $0xc8] sm:$0xff]
    %v2703 = vld [vmem:[#allocation13 + $0xd0] sm:$0xff]
    %v2704 = vld [vmem:[#allocation13 + $0xd8] sm:$0xff]
    %v2705 = vld [vmem:[#allocation13 + $0xe0] sm:$0xff]
    %v2706 = vld [vmem:[#allocation13 + $0xe8] sm:$0xff]
    %v2707 = vld [vmem:[#allocation13 + $0xf0] sm:$0xff]
    %v2708 = vld [vmem:[#allocation13 + $0xf8] sm:$0xff]
    %v2709 = vld [vmem:[#allocation13 + $0x100] sm:$0xff]
    %v2710 = vld [vmem:[#allocation13 + $0x108] sm:$0xff]
    %v2711 = vld [vmem:[#allocation13 + $0x110] sm:$0xff]
    %v2712 = vld [vmem:[#allocation13 + $0x118] sm:$0xff]
    %v2713 = vld [vmem:[#allocation13 + $0x120] sm:$0xff]
    %v2714 = vld [vmem:[#allocation13 + $0x128] sm:$0xff]
    %v2715 = vld [vmem:[#allocation13 + $0x130] sm:$0xff]
    %v2716 = vld [vmem:[#allocation13 + $0x138] sm:$0xff]
    %v2717 = vld [vmem:[#allocation13 + $0x140] sm:$0xff]
    %v2718 = vld [vmem:[#allocation13 + $0x148] sm:$0xff]
    %v2719 = vld [vmem:[#allocation13 + $0x150] sm:$0xff]
    %v2720 = vld [vmem:[#allocation13 + $0x158] sm:$0xff]
    %v2721 = vld [vmem:[#allocation13 + $0x160] sm:$0xff]
    %v2722 = vld [vmem:[#allocation13 + $0x168] sm:$0xff]
    %v2723 = vld [vmem:[#allocation13 + $0x170] sm:$0xff]
    %v2724 = vld [vmem:[#allocation13 + $0x178] sm:$0xff]
    %v2725 = vld [vmem:[#allocation13 + $0x180] sm:$0xff]
    %v2726 = vld [vmem:[#allocation13 + $0x188] sm:$0xff]
    %v2727 = vld [vmem:[#allocation13 + $0x190] sm:$0xff]
    %v2728 = vld [vmem:[#allocation13 + $0x198] sm:$0xff]
    %v2729 = vld [vmem:[#allocation13 + $0x1a0] sm:$0xff]
    %v2730 = vld [vmem:[#allocation13 + $0x1a8] sm:$0xff]
    %v2731 = vld [vmem:[#allocation13 + $0x1b0] sm:$0xff]
    %v2732 = vld [vmem:[#allocation13 + $0x1b8] sm:$0xff]
    %v2733 = vld [vmem:[#allocation13 + $0x1c0] sm:$0xff]
    %v2734 = vld [vmem:[#allocation13 + $0x1c8] sm:$0xff]
    %v2735 = vld [vmem:[#allocation13 + $0x1d0] sm:$0xff]
    %v2736 = vld [vmem:[#allocation13 + $0x1d8] sm:$0xff]
    %v2737 = vld [vmem:[#allocation13 + $0x1e0] sm:$0xff]
    %v2738 = vld [vmem:[#allocation13 + $0x1e8] sm:$0xff]
    %v2739 = vld [vmem:[#allocation13 + $0x1f0] sm:$0xff]
    %v2740 = vld [vmem:[#allocation13 + $0x1f8] sm:$0xff]
    %v2741 = vld [vmem:[#allocation13 + $0x200] sm:$0xff]
    %v2742 = vld [vmem:[#allocation13 + $0x208] sm:$0xff]
    %v2743 = vld [vmem:[#allocation13 + $0x210] sm:$0xff]
    %v2744 = vld [vmem:[#allocation13 + $0x218] sm:$0xff]
    %v2745 = vld [vmem:[#allocation13 + $0x220] sm:$0xff]
    %v2746 = vld [vmem:[#allocation13 + $0x228] sm:$0xff]
    %v2747 = vld [vmem:[#allocation13 + $0x230] sm:$0xff]
    %v2748 = vld [vmem:[#allocation13 + $0x238] sm:$0xff]
    %v2749 = vld [vmem:[#allocation13 + $0x240] sm:$0xff]
    %v2750 = vld [vmem:[#allocation13 + $0x248] sm:$0xff]
    %v2751 = vld [vmem:[#allocation13 + $0x250] sm:$0xff]
    %v2752 = vld [vmem:[#allocation13 + $0x258] sm:$0xff]
    %v2753 = vld [vmem:[#allocation13 + $0x260] sm:$0xff]
    %v2754 = vld [vmem:[#allocation13 + $0x268] sm:$0xff]
    %v2755 = vld [vmem:[#allocation13 + $0x270] sm:$0xff]
    %v2756 = vld [vmem:[#allocation13 + $0x278] sm:$0xff]
    %v2757 = vld [vmem:[#allocation13 + $0x280] sm:$0xff]
    %v2758 = vld [vmem:[#allocation13 + $0x288] sm:$0xff]
    %v2759 = vld [vmem:[#allocation13 + $0x290] sm:$0xff]
    %v2760 = vld [vmem:[#allocation13 + $0x298] sm:$0xff]
    %v2761 = vld [vmem:[#allocation13 + $0x2a0] sm:$0xff]
    %v2762 = vld [vmem:[#allocation13 + $0x2a8] sm:$0xff]
    %v2763 = vld [vmem:[#allocation13 + $0x2b0] sm:$0xff]
    %v2764 = vld [vmem:[#allocation13 + $0x2b8] sm:$0xff]
    %v2765 = vld [vmem:[#allocation13 + $0x2c0] sm:$0xff]
    %v2766 = vld [vmem:[#allocation13 + $0x2c8] sm:$0xff]
    %v2767 = vld [vmem:[#allocation13 + $0x2d0] sm:$0xff]
    %v2768 = vld [vmem:[#allocation13 + $0x2d8] sm:$0xff]
    %v2769 = vld [vmem:[#allocation13 + $0x2e0] sm:$0xff]
    %v2770 = vld [vmem:[#allocation13 + $0x2e8] sm:$0xff]
    %v2771 = vld [vmem:[#allocation13 + $0x2f0] sm:$0xff]
    %v2772 = vld [vmem:[#allocation13 + $0x2f8] sm:$0xff]
    %v2773 = vld [vmem:[#allocation13 + $0x300] sm:$0xff]
    %v2774 = vld [vmem:[#allocation13 + $0x308] sm:$0xff]
    %v2775 = vld [vmem:[#allocation13 + $0x310] sm:$0xff]
    %v2776 = vld [vmem:[#allocation13 + $0x318] sm:$0xff]
    %v2777 = vld [vmem:[#allocation13 + $0x320] sm:$0xff]
    %v2778 = vld [vmem:[#allocation13 + $0x328] sm:$0xff]
    %v2779 = vld [vmem:[#allocation13 + $0x330] sm:$0xff]
    %v2780 = vld [vmem:[#allocation13 + $0x338] sm:$0xff]
    %v2781 = vld [vmem:[#allocation13 + $0x340] sm:$0xff]
    %v2782 = vld [vmem:[#allocation13 + $0x348] sm:$0xff]
    %v2783 = vld [vmem:[#allocation13 + $0x350] sm:$0xff]
    %v2784 = vld [vmem:[#allocation13 + $0x358] sm:$0xff]
    %v2785 = vld [vmem:[#allocation13 + $0x360] sm:$0xff]
    %v2786 = vld [vmem:[#allocation13 + $0x368] sm:$0xff]
    %v2787 = vld [vmem:[#allocation13 + $0x370] sm:$0xff]
    %v2788 = vld [vmem:[#allocation13 + $0x378] sm:$0xff]
    %v2789 = vld [vmem:[#allocation13 + $0x380] sm:$0xff]
    %v2790 = vld [vmem:[#allocation13 + $0x388] sm:$0xff]
    %v2791 = vld [vmem:[#allocation13 + $0x390] sm:$0xff]
    %v2792 = vld [vmem:[#allocation13 + $0x398] sm:$0xff]
    %v2793 = vld [vmem:[#allocation13 + $0x3a0] sm:$0xff]
    %v2794 = vld [vmem:[#allocation13 + $0x3a8] sm:$0xff]
    %v2795 = vld [vmem:[#allocation13 + $0x3b0] sm:$0xff]
    %v2796 = vld [vmem:[#allocation13 + $0x3b8] sm:$0xff]
    %v2797 = vld [vmem:[#allocation13 + $0x3c0] sm:$0xff]
    %v2798 = vld [vmem:[#allocation13 + $0x3c8] sm:$0xff]
    %v2799 = vld [vmem:[#allocation13 + $0x3d0] sm:$0xff]
    %v2800 = vld [vmem:[#allocation13 + $0x3d8] sm:$0xff]
    %v2801 = vld [vmem:[#allocation13 + $0x3e0] sm:$0xff]
    %v2802 = vld [vmem:[#allocation13 + $0x3e8] sm:$0xff]
    %v2803 = vld [vmem:[#allocation13 + $0x3f0] sm:$0xff]
    %v2804 = vld [vmem:[#allocation13 + $0x3f8] sm:$0xff]
    %v2805 = vpack.c.bf16 %v2666, %v2666
    %v2806 = vpack.c.bf16 %v2667, %v2667
    %v2807 = vpack.c.bf16 %v2668, %v2668
    %v2808 = vpack.c.bf16 %v2669, %v2669
    %v2809 = vpack.c.bf16 %v2670, %v2670
    %v2810 = vpack.c.bf16 %v2671, %v2671
    %v2811 = vpack.c.bf16 %v2672, %v2672
    %v2812 = vpack.c.bf16 %v2673, %v2673
    %s2813 = scalar_lea.vmem [#allocation18], 67
    %v2814 = vld [vmem:[%s2813] ss:$8 sm:$0x3]
    %v2816 = vlaneseq
    %v2817 = vshrl.u32 %v2816, 7
    %v2818 = vsub.s32 0, %v2817
    %v2819 = vrot.slane %v2814, %v2818
    %v2820 = vlaneseq
    %v2821 = vshrl.u32 %v2820, 7
    %v2822 = vsub.s32 1, %v2821
    %v2823 = vrot.slane %v2814, %v2822
    %2826 = vmatprep.subr.bf16.mxu0 %v2678
    %2827 = vmatpush1.bf16.msra.mxu0 %v2677
    %2828 = vmatprep.subr.bf16.mxu0 %v2680
    %2829 = vmatpush1.bf16.msra.mxu0 %v2679
    %2830 = vmatprep.subr.bf16.mxu0 %v2682
    %2831 = vmatpush1.bf16.msra.mxu0 %v2681
    %2832 = vmatprep.subr.bf16.mxu0 %v2684
    %2833 = vmatpush1.bf16.msra.mxu0 %v2683
    %2834 = vmatprep.subr.bf16.mxu0 %v2686
    %2835 = vmatpush1.bf16.msra.mxu0 %v2685
    %2836 = vmatprep.subr.bf16.mxu0 %v2688
    %2837 = vmatpush1.bf16.msra.mxu0 %v2687
    %2838 = vmatprep.subr.bf16.mxu0 %v2690
    %2839 = vmatpush1.bf16.msra.mxu0 %v2689
    %2840 = vmatprep.subr.bf16.mxu0 %v2692
    %2841 = vmatpush1.bf16.msra.mxu0 %v2691
    %2842 = vmatprep.subr.bf16.mxu0 %v2694
    %2843 = vmatpush1.bf16.msra.mxu0 %v2693
    %2844 = vmatprep.subr.bf16.mxu0 %v2696
    %2845 = vmatpush1.bf16.msra.mxu0 %v2695
    %2846 = vmatprep.subr.bf16.mxu0 %v2698
    %2847 = vmatpush1.bf16.msra.mxu0 %v2697
    %2848 = vmatprep.subr.bf16.mxu0 %v2700
    %2849 = vmatpush1.bf16.msra.mxu0 %v2699
    %2850 = vmatprep.subr.bf16.mxu0 %v2702
    %2851 = vmatpush1.bf16.msra.mxu0 %v2701
    %2852 = vmatprep.subr.bf16.mxu0 %v2704
    %2853 = vmatpush1.bf16.msra.mxu0 %v2703
    %2854 = vmatprep.subr.bf16.mxu0 %v2706
    %2855 = vmatpush1.bf16.msra.mxu0 %v2705
    %2856 = vmatprep.subr.bf16.mxu0 %v2708
    %2857 = vmatpush1.bf16.msra.mxu0 %v2707
    %2858 = vmatprep.mubr.bf16.mxu0 %v2806
    %2859 = vmatmul.mubr.bf16.gmra.mrb[0].mxu0 %v2805
    %v2860 = vpop.f32.mrb[0].mxu0
    %v2861 = vadd.f32 %v2819, %v2860
    %v2862 = vpop.f32.mrb[0].mxu0
    %v2863 = vadd.f32 %v2823, %v2862
    %v2864 = vpop.f32.mrb[0].mxu0
    %v2865 = vpop.f32.mrb[0].mxu0
    %2866 = vdwg.mxu0
    %2867 = vmatprep.subr.bf16.mxu0 %v2710
    %2868 = vmatpush1.bf16.msra.mxu0 %v2709
    %2869 = vmatprep.subr.bf16.mxu0 %v2712
    %2870 = vmatpush1.bf16.msra.mxu0 %v2711
    %2871 = vmatprep.subr.bf16.mxu0 %v2714
    %2872 = vmatpush1.bf16.msra.mxu0 %v2713
    %2873 = vmatprep.subr.bf16.mxu0 %v2716
    %2874 = vmatpush1.bf16.msra.mxu0 %v2715
    %2875 = vmatprep.subr.bf16.mxu0 %v2718
    %2876 = vmatpush1.bf16.msra.mxu0 %v2717
    %2877 = vmatprep.subr.bf16.mxu0 %v2720
    %2878 = vmatpush1.bf16.msra.mxu0 %v2719
    %2879 = vmatprep.subr.bf16.mxu0 %v2722
    %2880 = vmatpush1.bf16.msra.mxu0 %v2721
    %2881 = vmatprep.subr.bf16.mxu0 %v2724
    %2882 = vmatpush1.bf16.msra.mxu0 %v2723
    %2883 = vmatprep.subr.bf16.mxu0 %v2726
    %2884 = vmatpush1.bf16.msra.mxu0 %v2725
    %2885 = vmatprep.subr.bf16.mxu0 %v2728
    %2886 = vmatpush1.bf16.msra.mxu0 %v2727
    %2887 = vmatprep.subr.bf16.mxu0 %v2730
    %2888 = vmatpush1.bf16.msra.mxu0 %v2729
    %2889 = vmatprep.subr.bf16.mxu0 %v2732
    %2890 = vmatpush1.bf16.msra.mxu0 %v2731
    %2891 = vmatprep.subr.bf16.mxu0 %v2734
    %2892 = vmatpush1.bf16.msra.mxu0 %v2733
    %2893 = vmatprep.subr.bf16.mxu0 %v2736
    %2894 = vmatpush1.bf16.msra.mxu0 %v2735
    %2895 = vmatprep.subr.bf16.mxu0 %v2738
    %2896 = vmatpush1.bf16.msra.mxu0 %v2737
    %2897 = vmatprep.subr.bf16.mxu0 %v2740
    %2898 = vmatpush1.bf16.msra.mxu0 %v2739
    %2899 = vmatprep.mubr.bf16.mxu0 %v2808
    %2900 = vmatmul.mubr.bf16.gmra.mrb[0].mxu0 %v2807
    %v2901 = vpop.f32.mrb[0].mxu0
    %v2902 = vadd.f32 %v2861, %v2901
    %v2903 = vpop.f32.mrb[0].mxu0
    %v2904 = vadd.f32 %v2863, %v2903
    %v2905 = vpop.f32.mrb[0].mxu0
    %v2906 = vpop.f32.mrb[0].mxu0
    %2907 = vdwg.mxu0
    %2908 = vmatprep.subr.bf16.mxu0 %v2742
    %2909 = vmatpush1.bf16.msra.mxu0 %v2741
    %2910 = vmatprep.subr.bf16.mxu0 %v2744
    %2911 = vmatpush1.bf16.msra.mxu0 %v2743
    %2912 = vmatprep.subr.bf16.mxu0 %v2746
    %2913 = vmatpush1.bf16.msra.mxu0 %v2745
    %2914 = vmatprep.subr.bf16.mxu0 %v2748
    %2915 = vmatpush1.bf16.msra.mxu0 %v2747
    %2916 = vmatprep.subr.bf16.mxu0 %v2750
    %2917 = vmatpush1.bf16.msra.mxu0 %v2749
    %2918 = vmatprep.subr.bf16.mxu0 %v2752
    %2919 = vmatpush1.bf16.msra.mxu0 %v2751
    %2920 = vmatprep.subr.bf16.mxu0 %v2754
    %2921 = vmatpush1.bf16.msra.mxu0 %v2753
    %2922 = vmatprep.subr.bf16.mxu0 %v2756
    %2923 = vmatpush1.bf16.msra.mxu0 %v2755
    %2924 = vmatprep.subr.bf16.mxu0 %v2758
    %2925 = vmatpush1.bf16.msra.mxu0 %v2757
    %2926 = vmatprep.subr.bf16.mxu0 %v2760
    %2927 = vmatpush1.bf16.msra.mxu0 %v2759
    %2928 = vmatprep.subr.bf16.mxu0 %v2762
    %2929 = vmatpush1.bf16.msra.mxu0 %v2761
    %2930 = vmatprep.subr.bf16.mxu0 %v2764
    %2931 = vmatpush1.bf16.msra.mxu0 %v2763
    %2932 = vmatprep.subr.bf16.mxu0 %v2766
    %2933 = vmatpush1.bf16.msra.mxu0 %v2765
    %2934 = vmatprep.subr.bf16.mxu0 %v2768
    %2935 = vmatpush1.bf16.msra.mxu0 %v2767
    %2936 = vmatprep.subr.bf16.mxu0 %v2770
    %2937 = vmatpush1.bf16.msra.mxu0 %v2769
    %2938 = vmatprep.subr.bf16.mxu0 %v2772
    %2939 = vmatpush1.bf16.msra.mxu0 %v2771
    %2940 = vmatprep.mubr.bf16.mxu0 %v2810
    %2941 = vmatmul.mubr.bf16.gmra.mrb[0].mxu0 %v2809
    %v2942 = vpop.f32.mrb[0].mxu0
    %v2943 = vadd.f32 %v2902, %v2942
    %v2944 = vpop.f32.mrb[0].mxu0
    %v2945 = vadd.f32 %v2904, %v2944
    %v2946 = vpop.f32.mrb[0].mxu0
    %v2947 = vpop.f32.mrb[0].mxu0
    %2948 = vdwg.mxu0
    %2949 = vmatprep.subr.bf16.mxu0 %v2774
    %2950 = vmatpush1.bf16.msra.mxu0 %v2773
    %2951 = vmatprep.subr.bf16.mxu0 %v2776
    %2952 = vmatpush1.bf16.msra.mxu0 %v2775
    %2953 = vmatprep.subr.bf16.mxu0 %v2778
    %2954 = vmatpush1.bf16.msra.mxu0 %v2777
    %2955 = vmatprep.subr.bf16.mxu0 %v2780
    %2956 = vmatpush1.bf16.msra.mxu0 %v2779
    %2957 = vmatprep.subr.bf16.mxu0 %v2782
    %2958 = vmatpush1.bf16.msra.mxu0 %v2781
    %2959 = vmatprep.subr.bf16.mxu0 %v2784
    %2960 = vmatpush1.bf16.msra.mxu0 %v2783
    %2961 = vmatprep.subr.bf16.mxu0 %v2786
    %2962 = vmatpush1.bf16.msra.mxu0 %v2785
    %2963 = vmatprep.subr.bf16.mxu0 %v2788
    %2964 = vmatpush1.bf16.msra.mxu0 %v2787
    %2965 = vmatprep.subr.bf16.mxu0 %v2790
    %2966 = vmatpush1.bf16.msra.mxu0 %v2789
    %2967 = vmatprep.subr.bf16.mxu0 %v2792
    %2968 = vmatpush1.bf16.msra.mxu0 %v2791
    %2969 = vmatprep.subr.bf16.mxu0 %v2794
    %2970 = vmatpush1.bf16.msra.mxu0 %v2793
    %2971 = vmatprep.subr.bf16.mxu0 %v2796
    %2972 = vmatpush1.bf16.msra.mxu0 %v2795
    %2973 = vmatprep.subr.bf16.mxu0 %v2798
    %2974 = vmatpush1.bf16.msra.mxu0 %v2797
    %2975 = vmatprep.subr.bf16.mxu0 %v2800
    %2976 = vmatpush1.bf16.msra.mxu0 %v2799
    %2977 = vmatprep.subr.bf16.mxu0 %v2802
    %2978 = vmatpush1.bf16.msra.mxu0 %v2801
    %2979 = vmatprep.subr.bf16.mxu0 %v2804
    %2980 = vmatpush1.bf16.msra.mxu0 %v2803
    %2981 = vmatprep.mubr.bf16.mxu0 %v2812
    %2982 = vmatmul.mubr.bf16.gmra.mrb[0].mxu0 %v2811
    %v2983 = vpop.f32.mrb[0].mxu0
    %v2984 = vadd.f32 %v2943, %v2983
    %v2985 = vpop.f32.mrb[0].mxu0
    %v2986 = vadd.f32 %v2945, %v2985
    %v2987 = vpop.f32.mrb[0].mxu0
    %v2988 = vpop.f32.mrb[0].mxu0
    %2989 = vdwg.mxu0
    %v2990 = vxor.u32 %v2984, 2147483648
    %v2991 = vxor.u32 %v2986, 2147483648
    %v2992 = vmul.f32 %v2990, 1.442695
    %v2993 = vpow.pop %v2992
    %v2994 = vmul.f32 %v2991, 1.442695
    %v2995 = vpow.pop %v2994
    %v2996 = vadd.f32 %v2993, 1.0
    %v2997 = vadd.f32 %v2995, 1.0
    %v2998 = vrcp.pop %v2996
    %v2999 = vmul.f32 1.0, %v2998
    %v3000 = vrcp.pop %v2997
    %v3001 = vmul.f32 1.0, %v3000
    %3002 = vst [vmem:[#allocation20] sm:$0xff] %v2999
    %3003 = vst [vmem:[#allocation20 + $0x8] sm:$0xff] %v3001
    // Predicated region
    $region38: #{tpu_custom_call.1} parent=1 // pred_check
      _
    $region39: #{tpu_custom_call.1} parent=1 // pred_check_branch
      %3005 = sbr.rel (0) target = $region41
    $region40: #{tpu_custom_call.1} parent=1 // pred_region
      %s3007 = ssub.s32 256, 256
      %3008 = vsyncadd [#allocation17], %s3007
      %s3010 = sshll.u32 [#allocation20], 4
      %s3011 = int_to_ptr.vmem [resolvable:$true] %s3010
      %3013 = dma.vmem_to_hbm [thread:$0]  %s3011, 256, %s14, [#allocation17]
    $region41: #{tpu_custom_call.1} parent=1 // pred_fallthru
      _
    // Predicated region
    $region42: #{tpu_custom_call.1} parent=1 // pred_check
      _
    $region43: #{tpu_custom_call.1} parent=1 // pred_check_branch
      %3015 = sbr.rel (0) target = $region45
    $region44: #{tpu_custom_call.1} parent=1 // pred_region
      %3016 = dma.done [#allocation17], 256
    $region45: #{tpu_custom_call.1} parent=1 // pred_fallthru
      _
    %3017 = vsyncpa [#allocation16], 1
    %3018 = vsyncpa [#allocation19], 1
    %3019 = vsyncpa [#allocation17], 1
  %3020 = vsyncmov [#allocation14]
  %s3021 = vpop.sfrf %3020
  %p3022 = scmp.eq.s32.totalorder %s3021, 0
  %p3023 = pneg %p3022
  %3025 = shalt.err (%p3023)
  %s3026 = scalar_lea.sflag [#allocation14], 1
  %3027 = vsyncmov %s3026
  %s3028 = vpop.sfrf %3027
  %p3029 = scmp.eq.s32.totalorder %s3028, 0
  %p3030 = pneg %p3029
  %3032 = shalt.err (%p3030)
  %s3033 = scalar_lea.sflag [#allocation14], 2
  %3034 = vsyncmov %s3033
  %s3035 = vpop.sfrf %3034
  %p3036 = scmp.eq.s32.totalorder %s3035, 0
  %p3037 = pneg %p3036
  %3039 = shalt.err (%p3037)
  %s3040 = scalar_lea.sflag [#allocation14], 3
  %3041 = vsyncmov %s3040
  %s3042 = vpop.sfrf %3041
  %p3043 = scmp.eq.s32.totalorder %s3042, 0
  %p3044 = pneg %p3043
  %3046 = shalt.err (%p3044)
  %s3047 = scalar_lea.sflag [#allocation14], 4
  %3048 = vsyncmov %s3047
  %s3049 = vpop.sfrf %3048
  %p3050 = scmp.eq.s32.totalorder %s3049, 0
  %p3051 = pneg %p3050
  %3053 = shalt.err (%p3051)
  %s3054 = scalar_lea.sflag [#allocation14], 5
  %3055 = vsyncmov %s3054
  %s3056 = vpop.sfrf %3055
  %p3057 = scmp.eq.s32.totalorder %s3056, 0
  %p3058 = pneg %p3057
  %3060 = shalt.err (%p3058)
  %s3061 = scalar_lea.sflag [#allocation14], 6
  %3062 = vsyncmov %s3061
  %s3063 = vpop.sfrf %3062
  %p3064 = scmp.eq.s32.totalorder %s3063, 0
  %p3065 = pneg %p3064
  %3067 = shalt.err (%p3065)
  %s3068 = scalar_lea.sflag [#allocation14], 7
  %3069 = vsyncmov %s3068
  %s3070 = vpop.sfrf %3069
  %p3071 = scmp.eq.s32.totalorder %s3070, 0
  %p3072 = pneg %p3071
  %3074 = shalt.err (%p3072)
  %s3075 = scalar_lea.sflag [#allocation14], 8
  %3076 = vsyncmov %s3075
  %s3077 = vpop.sfrf %3076
  %p3078 = scmp.eq.s32.totalorder %s3077, 0
  %p3079 = pneg %p3078
  %3081 = shalt.err (%p3079)
  %s3082 = scalar_lea.sflag [#allocation14], 9
  %3083 = vsyncmov %s3082
  %s3084 = vpop.sfrf %3083
  %p3085 = scmp.eq.s32.totalorder %s3084, 0
  %p3086 = pneg %p3085
  %3088 = shalt.err (%p3086)
  %s3089 = scalar_lea.sflag [#allocation14], 10
  %3090 = vsyncmov %s3089
  %s3091 = vpop.sfrf %3090
  %p3092 = scmp.eq.s32.totalorder %s3091, 0
  %p3093 = pneg %p3092
  %3095 = shalt.err (%p3093)
  %s3096 = scalar_lea.sflag [#allocation14], 11
  %3097 = vsyncmov %s3096
  %s3098 = vpop.sfrf %3097
  %p3099 = scmp.eq.s32.totalorder %s3098, 0
  %p3100 = pneg %p3099
  %3102 = shalt.err (%p3100)

</llo_original>
